<compile_context>
chip_gen: v7x
topology: tpu7x:2x2x1
jax: 0.10.0
libtpu: 0.0.40
codegen_flags: <defaults>
</compile_context>

<pallas_src>
import jax
import jax.numpy as jnp
from jax.experimental import pallas as pl
from jax.experimental.pallas import tpu as pltpu


GATE_PAD = 128  # per-gate column stride (hidden padded to one full vreg lane width)


# ----------------------------- Pallas kernel ------------------------------

def hybrid_kernel(x_ref, wconv_ref, bconv_ref,
                  wih0_ref, whh0_ref, b0_ref,
                  w1_ref, b1_ref,
                  wfc_ref, bfc_ref, out_ref):
    B, T, F = x_ref.shape
    P = whh0_ref.shape[0]          # padded hidden (= gate stride = 128)

    xs = x_ref[...]                # (B, T, F)
    wconv = wconv_ref[...]         # (3, F, C)
    bconv = bconv_ref[...]         # (1, C)
    wih0 = wih0_ref[...]           # (C, 4P)
    whh0 = whh0_ref[...]           # (P, 4P)
    b0 = b0_ref[...]               # (1, 4P)
    w1 = w1_ref[...]               # (2P, 4P)   stacked [Wih1 ; Whh1] (padded)
    b1 = b1_ref[...]               # (1, 4P)

    # ---- Hoisted off the recurrence: conv1d(k=3, pad=1) + bias + ReLU and
    #      the layer-0 input projection (+ bias) for ALL timesteps. ----
    zrow = jnp.zeros((1, F), jnp.float32)
    gin0_per_b = []
    for b in range(B):                               # B is small & static
        x_b = xs[b]                                  # (T, F)
        x_prev = jnp.concatenate([zrow, x_b[:T - 1, :]], axis=0)   # x[t-1]
        x_next = jnp.concatenate([x_b[1:, :], zrow], axis=0)       # x[t+1]
        conv_b = (jnp.dot(x_prev, wconv[0], preferred_element_type=jnp.float32)
                  + jnp.dot(x_b, wconv[1], preferred_element_type=jnp.float32)
                  + jnp.dot(x_next, wconv[2], preferred_element_type=jnp.float32))
        conv_b = jnp.maximum(conv_b + bconv, 0.0)    # (T, C)
        gin0_per_b.append(
            jnp.dot(conv_b, wih0, preferred_element_type=jnp.float32) + b0)  # (T, 4P)

    # Per-step (B, 4P) layer-0 gate inputs (cheap hoisted row slices).
    gin0_steps = [
        jnp.concatenate([g[t:t + 1, :] for g in gin0_per_b], axis=0)
        for t in range(T)
    ]

    def gates(g, c):
        # Gate blocks are 128-lane aligned -> slices are free vreg selects.
        sig_if = jax.nn.sigmoid(g[:, 0:2 * P])       # i, f in one EUP pass
        i = sig_if[:, 0:P]
        f = sig_if[:, P:2 * P]
        gg = jnp.tanh(g[:, 2 * P:3 * P])
        o = jax.nn.sigmoid(g[:, 3 * P:4 * P])
        c_new = f * c + i * gg
        h_new = o * jnp.tanh(c_new)
        return h_new, c_new

    h0 = jnp.zeros((B, P), jnp.float32)
    c0 = jnp.zeros((B, P), jnp.float32)
    h1 = jnp.zeros((B, P), jnp.float32)
    c1 = jnp.zeros((B, P), jnp.float32)

    # Recurrence: only 2 MXU ops + aligned gate math per timestep.
    # TODO(synk): if T grows beyond ~16, switch to lax.fori_loop over a VMEM
    # scratch holding gin0 instead of full static unrolling.
    for t in range(T):
        g0 = gin0_steps[t] + jnp.dot(h0, whh0, preferred_element_type=jnp.float32)
        h0, c0 = gates(g0, c0)
        z = jnp.concatenate([h0, h1], axis=1)                      # (B, 2P)
        g1 = jnp.dot(z, w1, preferred_element_type=jnp.float32) + b1
        h1, c1 = gates(g1, c1)

    # fc on the last timestep's top-layer hidden state.
    out_ref[...] = (jnp.dot(h1, wfc_ref[...], preferred_element_type=jnp.float32)
                    + bfc_ref[...])


# ------------------------------ JAX wrapper -------------------------------

def hybrid_forward(x, packed):
    B, T, F = x.shape
    O = packed["wfc"].shape[1]
    args = (x, packed["wconv"], packed["bconv"],
            packed["wih0"], packed["whh0"], packed["b0"],
            packed["w1"], packed["b1"],
            packed["wfc"], packed["bfc"])
    vmem = pl.BlockSpec(memory_space=pltpu.MemorySpace.VMEM)
    return pl.pallas_call(
        hybrid_kernel,
        out_shape=jax.ShapeDtypeStruct((B, O), jnp.float32),
        in_specs=[vmem] * len(args),
        out_specs=vmem,
    )(*args)


# ----------------------- Params, packing & reference -----------------------

def init_params(key, input_size, cnn_out, hidden, output_size):
    ks = jax.random.split(key, 10)

    def u(k, shape, fan_in):
        bound = 1.0 / jnp.sqrt(fan_in)
        return jax.random.uniform(k, shape, jnp.float32, -bound, bound)

    return {
        # Conv1d(input_size -> cnn_out, kernel=3), stored as (3, F, C)
        "wconv": u(ks[0], (3, input_size, cnn_out), 3 * input_size),
        "bconv": u(ks[1], (1, cnn_out), 3 * input_size),
        # LSTM layer 0 (input = cnn_out), combined bias b_ih + b_hh; gates i,f,g,o
        "wih0": u(ks[2], (cnn_out, 4 * hidden), hidden),
        "whh0": u(ks[3], (hidden, 4 * hidden), hidden),
        "b0":   u(ks[4], (1, 4 * hidden), hidden),
        # LSTM layer 1 (input = hidden)
        "wih1": u(ks[5], (hidden, 4 * hidden), hidden),
        "whh1": u(ks[6], (hidden, 4 * hidden), hidden),
        "b1":   u(ks[7], (1, 4 * hidden), hidden),
        # Linear(hidden -> output_size)
        "wfc":  u(ks[8], (hidden, output_size), hidden),
        "bfc":  u(ks[9], (1, output_size), hidden),
    }


def pack_params(p, gate_pad=GATE_PAD):
    """One-time layout packing: hidden padded to `gate_pad`, gate stride 128."""
    H = p["whh0"].shape[0]
    P = gate_pad

    def pad_gate_cols(w):                      # (in, 4H) -> (in, 4P), zeros elsewhere
        out = jnp.zeros((w.shape[0], 4 * P), jnp.float32)
        for k in range(4):
            out = out.at[:, k * P:k * P + H].set(w[:, k * H:(k + 1) * H])
        return out

    wih0 = pad_gate_cols(p["wih0"])                                     # (C, 4P)
    whh0 = jnp.zeros((P, 4 * P), jnp.float32).at[:H, :].set(pad_gate_cols(p["whh0"]))
    b0 = pad_gate_cols(p["b0"])                                         # (1, 4P)
    w1 = jnp.zeros((2 * P, 4 * P), jnp.float32)
    w1 = w1.at[:H, :].set(pad_gate_cols(p["wih1"]))                     # x-part rows
    w1 = w1.at[P:P + H, :].set(pad_gate_cols(p["whh1"]))                # h-part rows
    b1 = pad_gate_cols(p["b1"])
    wfc = jnp.zeros((P, p["wfc"].shape[1]), jnp.float32).at[:H, :].set(p["wfc"])
    return {"wconv": p["wconv"], "bconv": p["bconv"],
            "wih0": wih0, "whh0": whh0, "b0": b0,
            "w1": w1, "b1": b1, "wfc": wfc, "bfc": p["bfc"]}


def reference_forward(x, p):
    B, T, F = x.shape
    C = p["wconv"].shape[2]
    H = p["whh0"].shape[0]
    x_pad = jnp.pad(x, ((0, 0), (1, 1), (0, 0)))
    conv = jnp.zeros((B, T, C), jnp.float32)
    for k in range(3):
        conv = conv + jnp.einsum("btf,fc->btc", x_pad[:, k:k + T, :], p["wconv"][k])
    conv = jnp.maximum(conv + p["bconv"][None], 0.0)

    def cell(x_t, h, c, wih, whh, b):
        g = x_t @ wih + h @ whh + b
        i = jax.nn.sigmoid(g[:, 0 * H:1 * H])
        f = jax.nn.sigmoid(g[:, 1 * H:2 * H])
        gg = jnp.tanh(g[:, 2 * H:3 * H])
        o = jax.nn.sigmoid(g[:, 3 * H:4 * H])
        c = f * c + i * gg
        return o * jnp.tanh(c), c

    h0 = c0 = h1 = c1 = jnp.zeros((B, H), jnp.float32)
    for t in range(T):
        h0, c0 = cell(conv[:, t, :], h0, c0, p["wih0"], p["whh0"], p["b0"])
        h1, c1 = cell(h0, h1, c1, p["wih1"], p["whh1"], p["b1"])
    return h1 @ p["wfc"] + p["bfc"]


# ---------------------------------- main -----------------------------------

if __name__ == "__main__":
    B, T = 2, 8
    input_size, cnn_out, hidden, output_size = 4, 8, 16, 4   # lstm_num_layers=2

    key = jax.random.PRNGKey(0)
    kx, kp = jax.random.split(key)
    x = jax.random.normal(kx, (B, T, input_size), jnp.float32)
    params = init_params(kp, input_size, cnn_out, hidden, output_size)
    packed = pack_params(params)

    out = hybrid_forward(x, packed)
    out = jax.block_until_ready(out)

    ref = reference_forward(x, params)
    assert out.shape == (B, output_size), out.shape
    assert jnp.allclose(out, ref, atol=1e-5, rtol=1e-5), (out, ref)
    print("KERNEL_OK")
</pallas_src>

<mosaic_0001>
module attributes {stable_mosaic.version = 11 : i64} {
  func.func @hybrid_kernel(%arg0: memref<2x8x4xf32, #tpu.memory_space<vmem>>, %arg1: memref<3x4x8xf32, #tpu.memory_space<vmem>>, %arg2: memref<1x8xf32, #tpu.memory_space<vmem>>, %arg3: memref<8x512xf32, #tpu.memory_space<vmem>>, %arg4: memref<128x512xf32, #tpu.memory_space<vmem>>, %arg5: memref<1x512xf32, #tpu.memory_space<vmem>>, %arg6: memref<256x512xf32, #tpu.memory_space<vmem>>, %arg7: memref<1x512xf32, #tpu.memory_space<vmem>>, %arg8: memref<128x4xf32, #tpu.memory_space<vmem>>, %arg9: memref<1x4xf32, #tpu.memory_space<vmem>>, %arg10: memref<2x4xf32, #tpu.memory_space<vmem>>) attributes {dimension_semantics = [], scalar_prefetch = 0 : i64, scratch_operands = 0 : i64, tpu.core_type = #tpu.core_type<tc>} {
    %c0 = arith.constant 0 : index
    %c0_0 = arith.constant 0 : index
    %c0_1 = arith.constant 0 : index
    %0 = vector.load %arg0[%c0, %c0_0, %c0_1] : memref<2x8x4xf32, #tpu.memory_space<vmem>>, vector<2x8x4xf32>
    %c0_2 = arith.constant 0 : index
    %c0_3 = arith.constant 0 : index
    %c0_4 = arith.constant 0 : index
    %1 = vector.load %arg1[%c0_2, %c0_3, %c0_4] : memref<3x4x8xf32, #tpu.memory_space<vmem>>, vector<3x4x8xf32>
    %c0_5 = arith.constant 0 : index
    %c0_6 = arith.constant 0 : index
    %2 = vector.load %arg2[%c0_5, %c0_6] : memref<1x8xf32, #tpu.memory_space<vmem>>, vector<1x8xf32>
    %c0_7 = arith.constant 0 : index
    %c0_8 = arith.constant 0 : index
    %3 = vector.load %arg3[%c0_7, %c0_8] : memref<8x512xf32, #tpu.memory_space<vmem>>, vector<8x512xf32>
    %c0_9 = arith.constant 0 : index
    %c0_10 = arith.constant 0 : index
    %4 = vector.load %arg4[%c0_9, %c0_10] : memref<128x512xf32, #tpu.memory_space<vmem>>, vector<128x512xf32>
    %c0_11 = arith.constant 0 : index
    %c0_12 = arith.constant 0 : index
    %5 = vector.load %arg5[%c0_11, %c0_12] : memref<1x512xf32, #tpu.memory_space<vmem>>, vector<1x512xf32>
    %c0_13 = arith.constant 0 : index
    %c0_14 = arith.constant 0 : index
    %6 = vector.load %arg6[%c0_13, %c0_14] : memref<256x512xf32, #tpu.memory_space<vmem>>, vector<256x512xf32>
    %c0_15 = arith.constant 0 : index
    %c0_16 = arith.constant 0 : index
    %7 = vector.load %arg7[%c0_15, %c0_16] : memref<1x512xf32, #tpu.memory_space<vmem>>, vector<1x512xf32>
    %cst = arith.constant 0.000000e+00 : f32
    %8 = vector.broadcast %cst : f32 to vector<1x4xf32>
    %9 = vector.extract_strided_slice %0 {offsets = [0, 0, 0], sizes = [1, 8, 4], strides = [1, 1, 1]} : vector<2x8x4xf32> to vector<1x8x4xf32>
    %10 = vector.shape_cast %9 : vector<1x8x4xf32> to vector<8x4xf32>
    %11 = vector.extract_strided_slice %10 {offsets = [0, 0], sizes = [7, 4], strides = [1, 1]} : vector<8x4xf32> to vector<7x4xf32>
    %12 = tpu.concatenate %8, %11 in 0 : vector<1x4xf32>, vector<7x4xf32> -> vector<8x4xf32>
    %13 = vector.extract_strided_slice %10 {offsets = [1, 0], sizes = [7, 4], strides = [1, 1]} : vector<8x4xf32> to vector<7x4xf32>
    %14 = tpu.concatenate %13, %8 in 0 : vector<7x4xf32>, vector<1x4xf32> -> vector<8x4xf32>
    %15 = vector.extract_strided_slice %1 {offsets = [0, 0, 0], sizes = [1, 4, 8], strides = [1, 1, 1]} : vector<3x4x8xf32> to vector<1x4x8xf32>
    %16 = vector.shape_cast %15 : vector<1x4x8xf32> to vector<4x8xf32>
    %cst_17 = arith.constant dense<0.000000e+00> : vector<8x8xf32>
    %17 = tpu.matmul %12, %16, %cst_17 {dimension_numbers = #tpu.dot_dimension_numbers<[1], [0], [0], [1], [0, 0, 1, 1], [], []>} : vector<8x4xf32>, vector<4x8xf32>, vector<8x8xf32> -> vector<8x8xf32>
    %18 = vector.extract_strided_slice %1 {offsets = [1, 0, 0], sizes = [1, 4, 8], strides = [1, 1, 1]} : vector<3x4x8xf32> to vector<1x4x8xf32>
    %19 = vector.shape_cast %18 : vector<1x4x8xf32> to vector<4x8xf32>
    %cst_18 = arith.constant dense<0.000000e+00> : vector<8x8xf32>
    %20 = tpu.matmul %10, %19, %cst_18 {dimension_numbers = #tpu.dot_dimension_numbers<[1], [0], [0], [1], [0, 0, 1, 1], [], []>} : vector<8x4xf32>, vector<4x8xf32>, vector<8x8xf32> -> vector<8x8xf32>
    %21 = arith.addf %17, %20 : vector<8x8xf32>
    %22 = vector.extract_strided_slice %1 {offsets = [2, 0, 0], sizes = [1, 4, 8], strides = [1, 1, 1]} : vector<3x4x8xf32> to vector<1x4x8xf32>
    %23 = vector.shape_cast %22 : vector<1x4x8xf32> to vector<4x8xf32>
    %cst_19 = arith.constant dense<0.000000e+00> : vector<8x8xf32>
    %24 = tpu.matmul %14, %23, %cst_19 {dimension_numbers = #tpu.dot_dimension_numbers<[1], [0], [0], [1], [0, 0, 1, 1], [], []>} : vector<8x4xf32>, vector<4x8xf32>, vector<8x8xf32> -> vector<8x8xf32>
    %25 = arith.addf %21, %24 : vector<8x8xf32>
    %26 = vector.broadcast %2 : vector<1x8xf32> to vector<8x8xf32>
    %27 = arith.addf %25, %26 : vector<8x8xf32>
    %cst_20 = arith.constant 0.000000e+00 : f32
    %28 = vector.broadcast %cst_20 : f32 to vector<8x8xf32>
    %29 = arith.maximumf %27, %28 : vector<8x8xf32>
    %cst_21 = arith.constant dense<0.000000e+00> : vector<8x512xf32>
    %30 = tpu.matmul %29, %3, %cst_21 {dimension_numbers = #tpu.dot_dimension_numbers<[1], [0], [0], [1], [0, 0, 1, 1], [], []>} : vector<8x8xf32>, vector<8x512xf32>, vector<8x512xf32> -> vector<8x512xf32>
    %31 = vector.broadcast %5 : vector<1x512xf32> to vector<8x512xf32>
    %32 = arith.addf %30, %31 : vector<8x512xf32>
    %33 = vector.extract_strided_slice %0 {offsets = [1, 0, 0], sizes = [1, 8, 4], strides = [1, 1, 1]} : vector<2x8x4xf32> to vector<1x8x4xf32>
    %34 = vector.shape_cast %33 : vector<1x8x4xf32> to vector<8x4xf32>
    %35 = vector.extract_strided_slice %34 {offsets = [0, 0], sizes = [7, 4], strides = [1, 1]} : vector<8x4xf32> to vector<7x4xf32>
    %36 = tpu.concatenate %8, %35 in 0 : vector<1x4xf32>, vector<7x4xf32> -> vector<8x4xf32>
    %37 = vector.extract_strided_slice %34 {offsets = [1, 0], sizes = [7, 4], strides = [1, 1]} : vector<8x4xf32> to vector<7x4xf32>
    %38 = tpu.concatenate %37, %8 in 0 : vector<7x4xf32>, vector<1x4xf32> -> vector<8x4xf32>
    %39 = vector.extract_strided_slice %1 {offsets = [0, 0, 0], sizes = [1, 4, 8], strides = [1, 1, 1]} : vector<3x4x8xf32> to vector<1x4x8xf32>
    %40 = vector.shape_cast %39 : vector<1x4x8xf32> to vector<4x8xf32>
    %cst_22 = arith.constant dense<0.000000e+00> : vector<8x8xf32>
    %41 = tpu.matmul %36, %40, %cst_22 {dimension_numbers = #tpu.dot_dimension_numbers<[1], [0], [0], [1], [0, 0, 1, 1], [], []>} : vector<8x4xf32>, vector<4x8xf32>, vector<8x8xf32> -> vector<8x8xf32>
    %42 = vector.extract_strided_slice %1 {offsets = [1, 0, 0], sizes = [1, 4, 8], strides = [1, 1, 1]} : vector<3x4x8xf32> to vector<1x4x8xf32>
    %43 = vector.shape_cast %42 : vector<1x4x8xf32> to vector<4x8xf32>
    %cst_23 = arith.constant dense<0.000000e+00> : vector<8x8xf32>
    %44 = tpu.matmul %34, %43, %cst_23 {dimension_numbers = #tpu.dot_dimension_numbers<[1], [0], [0], [1], [0, 0, 1, 1], [], []>} : vector<8x4xf32>, vector<4x8xf32>, vector<8x8xf32> -> vector<8x8xf32>
    %45 = arith.addf %41, %44 : vector<8x8xf32>
    %46 = vector.extract_strided_slice %1 {offsets = [2, 0, 0], sizes = [1, 4, 8], strides = [1, 1, 1]} : vector<3x4x8xf32> to vector<1x4x8xf32>
    %47 = vector.shape_cast %46 : vector<1x4x8xf32> to vector<4x8xf32>
    %cst_24 = arith.constant dense<0.000000e+00> : vector<8x8xf32>
    %48 = tpu.matmul %38, %47, %cst_24 {dimension_numbers = #tpu.dot_dimension_numbers<[1], [0], [0], [1], [0, 0, 1, 1], [], []>} : vector<8x4xf32>, vector<4x8xf32>, vector<8x8xf32> -> vector<8x8xf32>
    %49 = arith.addf %45, %48 : vector<8x8xf32>
    %50 = vector.broadcast %2 : vector<1x8xf32> to vector<8x8xf32>
    %51 = arith.addf %49, %50 : vector<8x8xf32>
    %cst_25 = arith.constant 0.000000e+00 : f32
    %52 = vector.broadcast %cst_25 : f32 to vector<8x8xf32>
    %53 = arith.maximumf %51, %52 : vector<8x8xf32>
    %cst_26 = arith.constant dense<0.000000e+00> : vector<8x512xf32>
    %54 = tpu.matmul %53, %3, %cst_26 {dimension_numbers = #tpu.dot_dimension_numbers<[1], [0], [0], [1], [0, 0, 1, 1], [], []>} : vector<8x8xf32>, vector<8x512xf32>, vector<8x512xf32> -> vector<8x512xf32>
    %55 = vector.broadcast %5 : vector<1x512xf32> to vector<8x512xf32>
    %56 = arith.addf %54, %55 : vector<8x512xf32>
    %57 = vector.extract_strided_slice %32 {offsets = [0, 0], sizes = [1, 512], strides = [1, 1]} : vector<8x512xf32> to vector<1x512xf32>
    %58 = vector.extract_strided_slice %56 {offsets = [0, 0], sizes = [1, 512], strides = [1, 1]} : vector<8x512xf32> to vector<1x512xf32>
    %59 = tpu.concatenate %57, %58 in 0 : vector<1x512xf32>, vector<1x512xf32> -> vector<2x512xf32>
    %60 = vector.extract_strided_slice %32 {offsets = [1, 0], sizes = [1, 512], strides = [1, 1]} : vector<8x512xf32> to vector<1x512xf32>
    %61 = vector.extract_strided_slice %56 {offsets = [1, 0], sizes = [1, 512], strides = [1, 1]} : vector<8x512xf32> to vector<1x512xf32>
    %62 = tpu.concatenate %60, %61 in 0 : vector<1x512xf32>, vector<1x512xf32> -> vector<2x512xf32>
    %63 = vector.extract_strided_slice %32 {offsets = [2, 0], sizes = [1, 512], strides = [1, 1]} : vector<8x512xf32> to vector<1x512xf32>
    %64 = vector.extract_strided_slice %56 {offsets = [2, 0], sizes = [1, 512], strides = [1, 1]} : vector<8x512xf32> to vector<1x512xf32>
    %65 = tpu.concatenate %63, %64 in 0 : vector<1x512xf32>, vector<1x512xf32> -> vector<2x512xf32>
    %66 = vector.extract_strided_slice %32 {offsets = [3, 0], sizes = [1, 512], strides = [1, 1]} : vector<8x512xf32> to vector<1x512xf32>
    %67 = vector.extract_strided_slice %56 {offsets = [3, 0], sizes = [1, 512], strides = [1, 1]} : vector<8x512xf32> to vector<1x512xf32>
    %68 = tpu.concatenate %66, %67 in 0 : vector<1x512xf32>, vector<1x512xf32> -> vector<2x512xf32>
    %69 = vector.extract_strided_slice %32 {offsets = [4, 0], sizes = [1, 512], strides = [1, 1]} : vector<8x512xf32> to vector<1x512xf32>
    %70 = vector.extract_strided_slice %56 {offsets = [4, 0], sizes = [1, 512], strides = [1, 1]} : vector<8x512xf32> to vector<1x512xf32>
    %71 = tpu.concatenate %69, %70 in 0 : vector<1x512xf32>, vector<1x512xf32> -> vector<2x512xf32>
    %72 = vector.extract_strided_slice %32 {offsets = [5, 0], sizes = [1, 512], strides = [1, 1]} : vector<8x512xf32> to vector<1x512xf32>
    %73 = vector.extract_strided_slice %56 {offsets = [5, 0], sizes = [1, 512], strides = [1, 1]} : vector<8x512xf32> to vector<1x512xf32>
    %74 = tpu.concatenate %72, %73 in 0 : vector<1x512xf32>, vector<1x512xf32> -> vector<2x512xf32>
    %75 = vector.extract_strided_slice %32 {offsets = [6, 0], sizes = [1, 512], strides = [1, 1]} : vector<8x512xf32> to vector<1x512xf32>
    %76 = vector.extract_strided_slice %56 {offsets = [6, 0], sizes = [1, 512], strides = [1, 1]} : vector<8x512xf32> to vector<1x512xf32>
    %77 = tpu.concatenate %75, %76 in 0 : vector<1x512xf32>, vector<1x512xf32> -> vector<2x512xf32>
    %78 = vector.extract_strided_slice %32 {offsets = [7, 0], sizes = [1, 512], strides = [1, 1]} : vector<8x512xf32> to vector<1x512xf32>
    %79 = vector.extract_strided_slice %56 {offsets = [7, 0], sizes = [1, 512], strides = [1, 1]} : vector<8x512xf32> to vector<1x512xf32>
    %80 = tpu.concatenate %78, %79 in 0 : vector<1x512xf32>, vector<1x512xf32> -> vector<2x512xf32>
    %cst_27 = arith.constant 0.000000e+00 : f32
    %81 = vector.broadcast %cst_27 : f32 to vector<2x128xf32>
    %cst_28 = arith.constant 0.000000e+00 : f32
    %82 = vector.broadcast %cst_28 : f32 to vector<2x128xf32>
    %cst_29 = arith.constant 0.000000e+00 : f32
    %83 = vector.broadcast %cst_29 : f32 to vector<2x128xf32>
    %cst_30 = arith.constant 0.000000e+00 : f32
    %84 = vector.broadcast %cst_30 : f32 to vector<2x128xf32>
    %cst_31 = arith.constant dense<0.000000e+00> : vector<2x512xf32>
    %85 = tpu.matmul %81, %4, %cst_31 {dimension_numbers = #tpu.dot_dimension_numbers<[1], [0], [0], [1], [0, 0, 1, 1], [], []>} : vector<2x128xf32>, vector<128x512xf32>, vector<2x512xf32> -> vector<2x512xf32>
    %86 = arith.addf %59, %85 : vector<2x512xf32>
    %87 = vector.extract_strided_slice %86 {offsets = [0, 0], sizes = [2, 256], strides = [1, 1]} : vector<2x512xf32> to vector<2x256xf32>
    %88 = arith.negf %87 : vector<2x256xf32>
    %89 = math.exp %88 : vector<2x256xf32>
    %cst_32 = arith.constant 1.000000e+00 : f32
    %90 = vector.broadcast %cst_32 : f32 to vector<2x256xf32>
    %91 = arith.addf %90, %89 : vector<2x256xf32>
    %92 = arith.divf %90, %91 : vector<2x256xf32>
    %93 = vector.extract_strided_slice %92 {offsets = [0, 0], sizes = [2, 128], strides = [1, 1]} : vector<2x256xf32> to vector<2x128xf32>
    %94 = vector.extract_strided_slice %92 {offsets = [0, 128], sizes = [2, 128], strides = [1, 1]} : vector<2x256xf32> to vector<2x128xf32>
    %95 = vector.extract_strided_slice %86 {offsets = [0, 256], sizes = [2, 128], strides = [1, 1]} : vector<2x512xf32> to vector<2x128xf32>
    %96 = math.tanh %95 : vector<2x128xf32>
    %97 = vector.extract_strided_slice %86 {offsets = [0, 384], sizes = [2, 128], strides = [1, 1]} : vector<2x512xf32> to vector<2x128xf32>
    %98 = arith.negf %97 : vector<2x128xf32>
    %99 = math.exp %98 : vector<2x128xf32>
    %cst_33 = arith.constant 1.000000e+00 : f32
    %100 = vector.broadcast %cst_33 : f32 to vector<2x128xf32>
    %101 = arith.addf %100, %99 : vector<2x128xf32>
    %102 = arith.divf %100, %101 : vector<2x128xf32>
    %103 = arith.mulf %94, %82 : vector<2x128xf32>
    %104 = arith.mulf %93, %96 : vector<2x128xf32>
    %105 = arith.addf %103, %104 : vector<2x128xf32>
    %106 = math.tanh %105 : vector<2x128xf32>
    %107 = arith.mulf %102, %106 : vector<2x128xf32>
    %108 = tpu.concatenate %107, %83 in 1 : vector<2x128xf32>, vector<2x128xf32> -> vector<2x256xf32>
    %cst_34 = arith.constant dense<0.000000e+00> : vector<2x512xf32>
    %109 = tpu.matmul %108, %6, %cst_34 {dimension_numbers = #tpu.dot_dimension_numbers<[1], [0], [0], [1], [0, 0, 1, 1], [], []>} : vector<2x256xf32>, vector<256x512xf32>, vector<2x512xf32> -> vector<2x512xf32>
    %110 = vector.broadcast %7 : vector<1x512xf32> to vector<2x512xf32>
    %111 = arith.addf %109, %110 : vector<2x512xf32>
    %112 = vector.extract_strided_slice %111 {offsets = [0, 0], sizes = [2, 256], strides = [1, 1]} : vector<2x512xf32> to vector<2x256xf32>
    %113 = arith.negf %112 : vector<2x256xf32>
    %114 = math.exp %113 : vector<2x256xf32>
    %cst_35 = arith.constant 1.000000e+00 : f32
    %115 = vector.broadcast %cst_35 : f32 to vector<2x256xf32>
    %116 = arith.addf %115, %114 : vector<2x256xf32>
    %117 = arith.divf %115, %116 : vector<2x256xf32>
    %118 = vector.extract_strided_slice %117 {offsets = [0, 0], sizes = [2, 128], strides = [1, 1]} : vector<2x256xf32> to vector<2x128xf32>
    %119 = vector.extract_strided_slice %117 {offsets = [0, 128], sizes = [2, 128], strides = [1, 1]} : vector<2x256xf32> to vector<2x128xf32>
    %120 = vector.extract_strided_slice %111 {offsets = [0, 256], sizes = [2, 128], strides = [1, 1]} : vector<2x512xf32> to vector<2x128xf32>
    %121 = math.tanh %120 : vector<2x128xf32>
    %122 = vector.extract_strided_slice %111 {offsets = [0, 384], sizes = [2, 128], strides = [1, 1]} : vector<2x512xf32> to vector<2x128xf32>
    %123 = arith.negf %122 : vector<2x128xf32>
    %124 = math.exp %123 : vector<2x128xf32>
    %cst_36 = arith.constant 1.000000e+00 : f32
    %125 = vector.broadcast %cst_36 : f32 to vector<2x128xf32>
    %126 = arith.addf %125, %124 : vector<2x128xf32>
    %127 = arith.divf %125, %126 : vector<2x128xf32>
    %128 = arith.mulf %119, %84 : vector<2x128xf32>
    %129 = arith.mulf %118, %121 : vector<2x128xf32>
    %130 = arith.addf %128, %129 : vector<2x128xf32>
    %131 = math.tanh %130 : vector<2x128xf32>
    %132 = arith.mulf %127, %131 : vector<2x128xf32>
    %cst_37 = arith.constant dense<0.000000e+00> : vector<2x512xf32>
    %133 = tpu.matmul %107, %4, %cst_37 {dimension_numbers = #tpu.dot_dimension_numbers<[1], [0], [0], [1], [0, 0, 1, 1], [], []>} : vector<2x128xf32>, vector<128x512xf32>, vector<2x512xf32> -> vector<2x512xf32>
    %134 = arith.addf %62, %133 : vector<2x512xf32>
    %135 = vector.extract_strided_slice %134 {offsets = [0, 0], sizes = [2, 256], strides = [1, 1]} : vector<2x512xf32> to vector<2x256xf32>
    %136 = arith.negf %135 : vector<2x256xf32>
    %137 = math.exp %136 : vector<2x256xf32>
    %cst_38 = arith.constant 1.000000e+00 : f32
    %138 = vector.broadcast %cst_38 : f32 to vector<2x256xf32>
    %139 = arith.addf %138, %137 : vector<2x256xf32>
    %140 = arith.divf %138, %139 : vector<2x256xf32>
    %141 = vector.extract_strided_slice %140 {offsets = [0, 0], sizes = [2, 128], strides = [1, 1]} : vector<2x256xf32> to vector<2x128xf32>
    %142 = vector.extract_strided_slice %140 {offsets = [0, 128], sizes = [2, 128], strides = [1, 1]} : vector<2x256xf32> to vector<2x128xf32>
    %143 = vector.extract_strided_slice %134 {offsets = [0, 256], sizes = [2, 128], strides = [1, 1]} : vector<2x512xf32> to vector<2x128xf32>
    %144 = math.tanh %143 : vector<2x128xf32>
    %145 = vector.extract_strided_slice %134 {offsets = [0, 384], sizes = [2, 128], strides = [1, 1]} : vector<2x512xf32> to vector<2x128xf32>
    %146 = arith.negf %145 : vector<2x128xf32>
    %147 = math.exp %146 : vector<2x128xf32>
    %cst_39 = arith.constant 1.000000e+00 : f32
    %148 = vector.broadcast %cst_39 : f32 to vector<2x128xf32>
    %149 = arith.addf %148, %147 : vector<2x128xf32>
    %150 = arith.divf %148, %149 : vector<2x128xf32>
    %151 = arith.mulf %142, %105 : vector<2x128xf32>
    %152 = arith.mulf %141, %144 : vector<2x128xf32>
    %153 = arith.addf %151, %152 : vector<2x128xf32>
    %154 = math.tanh %153 : vector<2x128xf32>
    %155 = arith.mulf %150, %154 : vector<2x128xf32>
    %156 = tpu.concatenate %155, %132 in 1 : vector<2x128xf32>, vector<2x128xf32> -> vector<2x256xf32>
    %cst_40 = arith.constant dense<0.000000e+00> : vector<2x512xf32>
    %157 = tpu.matmul %156, %6, %cst_40 {dimension_numbers = #tpu.dot_dimension_numbers<[1], [0], [0], [1], [0, 0, 1, 1], [], []>} : vector<2x256xf32>, vector<256x512xf32>, vector<2x512xf32> -> vector<2x512xf32>
    %158 = vector.broadcast %7 : vector<1x512xf32> to vector<2x512xf32>
    %159 = arith.addf %157, %158 : vector<2x512xf32>
    %160 = vector.extract_strided_slice %159 {offsets = [0, 0], sizes = [2, 256], strides = [1, 1]} : vector<2x512xf32> to vector<2x256xf32>
    %161 = arith.negf %160 : vector<2x256xf32>
    %162 = math.exp %161 : vector<2x256xf32>
    %cst_41 = arith.constant 1.000000e+00 : f32
    %163 = vector.broadcast %cst_41 : f32 to vector<2x256xf32>
    %164 = arith.addf %163, %162 : vector<2x256xf32>
    %165 = arith.divf %163, %164 : vector<2x256xf32>
    %166 = vector.extract_strided_slice %165 {offsets = [0, 0], sizes = [2, 128], strides = [1, 1]} : vector<2x256xf32> to vector<2x128xf32>
    %167 = vector.extract_strided_slice %165 {offsets = [0, 128], sizes = [2, 128], strides = [1, 1]} : vector<2x256xf32> to vector<2x128xf32>
    %168 = vector.extract_strided_slice %159 {offsets = [0, 256], sizes = [2, 128], strides = [1, 1]} : vector<2x512xf32> to vector<2x128xf32>
    %169 = math.tanh %168 : vector<2x128xf32>
    %170 = vector.extract_strided_slice %159 {offsets = [0, 384], sizes = [2, 128], strides = [1, 1]} : vector<2x512xf32> to vector<2x128xf32>
    %171 = arith.negf %170 : vector<2x128xf32>
    %172 = math.exp %171 : vector<2x128xf32>
    %cst_42 = arith.constant 1.000000e+00 : f32
    %173 = vector.broadcast %cst_42 : f32 to vector<2x128xf32>
    %174 = arith.addf %173, %172 : vector<2x128xf32>
    %175 = arith.divf %173, %174 : vector<2x128xf32>
    %176 = arith.mulf %167, %130 : vector<2x128xf32>
    %177 = arith.mulf %166, %169 : vector<2x128xf32>
    %178 = arith.addf %176, %177 : vector<2x128xf32>
    %179 = math.tanh %178 : vector<2x128xf32>
    %180 = arith.mulf %175, %179 : vector<2x128xf32>
    %cst_43 = arith.constant dense<0.000000e+00> : vector<2x512xf32>
    %181 = tpu.matmul %155, %4, %cst_43 {dimension_numbers = #tpu.dot_dimension_numbers<[1], [0], [0], [1], [0, 0, 1, 1], [], []>} : vector<2x128xf32>, vector<128x512xf32>, vector<2x512xf32> -> vector<2x512xf32>
    %182 = arith.addf %65, %181 : vector<2x512xf32>
    %183 = vector.extract_strided_slice %182 {offsets = [0, 0], sizes = [2, 256], strides = [1, 1]} : vector<2x512xf32> to vector<2x256xf32>
    %184 = arith.negf %183 : vector<2x256xf32>
    %185 = math.exp %184 : vector<2x256xf32>
    %cst_44 = arith.constant 1.000000e+00 : f32
    %186 = vector.broadcast %cst_44 : f32 to vector<2x256xf32>
    %187 = arith.addf %186, %185 : vector<2x256xf32>
    %188 = arith.divf %186, %187 : vector<2x256xf32>
    %189 = vector.extract_strided_slice %188 {offsets = [0, 0], sizes = [2, 128], strides = [1, 1]} : vector<2x256xf32> to vector<2x128xf32>
    %190 = vector.extract_strided_slice %188 {offsets = [0, 128], sizes = [2, 128], strides = [1, 1]} : vector<2x256xf32> to vector<2x128xf32>
    %191 = vector.extract_strided_slice %182 {offsets = [0, 256], sizes = [2, 128], strides = [1, 1]} : vector<2x512xf32> to vector<2x128xf32>
    %192 = math.tanh %191 : vector<2x128xf32>
    %193 = vector.extract_strided_slice %182 {offsets = [0, 384], sizes = [2, 128], strides = [1, 1]} : vector<2x512xf32> to vector<2x128xf32>
    %194 = arith.negf %193 : vector<2x128xf32>
    %195 = math.exp %194 : vector<2x128xf32>
    %cst_45 = arith.constant 1.000000e+00 : f32
    %196 = vector.broadcast %cst_45 : f32 to vector<2x128xf32>
    %197 = arith.addf %196, %195 : vector<2x128xf32>
    %198 = arith.divf %196, %197 : vector<2x128xf32>
    %199 = arith.mulf %190, %153 : vector<2x128xf32>
    %200 = arith.mulf %189, %192 : vector<2x128xf32>
    %201 = arith.addf %199, %200 : vector<2x128xf32>
    %202 = math.tanh %201 : vector<2x128xf32>
    %203 = arith.mulf %198, %202 : vector<2x128xf32>
    %204 = tpu.concatenate %203, %180 in 1 : vector<2x128xf32>, vector<2x128xf32> -> vector<2x256xf32>
    %cst_46 = arith.constant dense<0.000000e+00> : vector<2x512xf32>
    %205 = tpu.matmul %204, %6, %cst_46 {dimension_numbers = #tpu.dot_dimension_numbers<[1], [0], [0], [1], [0, 0, 1, 1], [], []>} : vector<2x256xf32>, vector<256x512xf32>, vector<2x512xf32> -> vector<2x512xf32>
    %206 = vector.broadcast %7 : vector<1x512xf32> to vector<2x512xf32>
    %207 = arith.addf %205, %206 : vector<2x512xf32>
    %208 = vector.extract_strided_slice %207 {offsets = [0, 0], sizes = [2, 256], strides = [1, 1]} : vector<2x512xf32> to vector<2x256xf32>
    %209 = arith.negf %208 : vector<2x256xf32>
    %210 = math.exp %209 : vector<2x256xf32>
    %cst_47 = arith.constant 1.000000e+00 : f32
    %211 = vector.broadcast %cst_47 : f32 to vector<2x256xf32>
    %212 = arith.addf %211, %210 : vector<2x256xf32>
    %213 = arith.divf %211, %212 : vector<2x256xf32>
    %214 = vector.extract_strided_slice %213 {offsets = [0, 0], sizes = [2, 128], strides = [1, 1]} : vector<2x256xf32> to vector<2x128xf32>
    %215 = vector.extract_strided_slice %213 {offsets = [0, 128], sizes = [2, 128], strides = [1, 1]} : vector<2x256xf32> to vector<2x128xf32>
    %216 = vector.extract_strided_slice %207 {offsets = [0, 256], sizes = [2, 128], strides = [1, 1]} : vector<2x512xf32> to vector<2x128xf32>
    %217 = math.tanh %216 : vector<2x128xf32>
    %218 = vector.extract_strided_slice %207 {offsets = [0, 384], sizes = [2, 128], strides = [1, 1]} : vector<2x512xf32> to vector<2x128xf32>
    %219 = arith.negf %218 : vector<2x128xf32>
    %220 = math.exp %219 : vector<2x128xf32>
    %cst_48 = arith.constant 1.000000e+00 : f32
    %221 = vector.broadcast %cst_48 : f32 to vector<2x128xf32>
    %222 = arith.addf %221, %220 : vector<2x128xf32>
    %223 = arith.divf %221, %222 : vector<2x128xf32>
    %224 = arith.mulf %215, %178 : vector<2x128xf32>
    %225 = arith.mulf %214, %217 : vector<2x128xf32>
    %226 = arith.addf %224, %225 : vector<2x128xf32>
    %227 = math.tanh %226 : vector<2x128xf32>
    %228 = arith.mulf %223, %227 : vector<2x128xf32>
    %cst_49 = arith.constant dense<0.000000e+00> : vector<2x512xf32>
    %229 = tpu.matmul %203, %4, %cst_49 {dimension_numbers = #tpu.dot_dimension_numbers<[1], [0], [0], [1], [0, 0, 1, 1], [], []>} : vector<2x128xf32>, vector<128x512xf32>, vector<2x512xf32> -> vector<2x512xf32>
    %230 = arith.addf %68, %229 : vector<2x512xf32>
    %231 = vector.extract_strided_slice %230 {offsets = [0, 0], sizes = [2, 256], strides = [1, 1]} : vector<2x512xf32> to vector<2x256xf32>
    %232 = arith.negf %231 : vector<2x256xf32>
    %233 = math.exp %232 : vector<2x256xf32>
    %cst_50 = arith.constant 1.000000e+00 : f32
    %234 = vector.broadcast %cst_50 : f32 to vector<2x256xf32>
    %235 = arith.addf %234, %233 : vector<2x256xf32>
    %236 = arith.divf %234, %235 : vector<2x256xf32>
    %237 = vector.extract_strided_slice %236 {offsets = [0, 0], sizes = [2, 128], strides = [1, 1]} : vector<2x256xf32> to vector<2x128xf32>
    %238 = vector.extract_strided_slice %236 {offsets = [0, 128], sizes = [2, 128], strides = [1, 1]} : vector<2x256xf32> to vector<2x128xf32>
    %239 = vector.extract_strided_slice %230 {offsets = [0, 256], sizes = [2, 128], strides = [1, 1]} : vector<2x512xf32> to vector<2x128xf32>
    %240 = math.tanh %239 : vector<2x128xf32>
    %241 = vector.extract_strided_slice %230 {offsets = [0, 384], sizes = [2, 128], strides = [1, 1]} : vector<2x512xf32> to vector<2x128xf32>
    %242 = arith.negf %241 : vector<2x128xf32>
    %243 = math.exp %242 : vector<2x128xf32>
    %cst_51 = arith.constant 1.000000e+00 : f32
    %244 = vector.broadcast %cst_51 : f32 to vector<2x128xf32>
    %245 = arith.addf %244, %243 : vector<2x128xf32>
    %246 = arith.divf %244, %245 : vector<2x128xf32>
    %247 = arith.mulf %238, %201 : vector<2x128xf32>
    %248 = arith.mulf %237, %240 : vector<2x128xf32>
    %249 = arith.addf %247, %248 : vector<2x128xf32>
    %250 = math.tanh %249 : vector<2x128xf32>
    %251 = arith.mulf %246, %250 : vector<2x128xf32>
    %252 = tpu.concatenate %251, %228 in 1 : vector<2x128xf32>, vector<2x128xf32> -> vector<2x256xf32>
    %cst_52 = arith.constant dense<0.000000e+00> : vector<2x512xf32>
    %253 = tpu.matmul %252, %6, %cst_52 {dimension_numbers = #tpu.dot_dimension_numbers<[1], [0], [0], [1], [0, 0, 1, 1], [], []>} : vector<2x256xf32>, vector<256x512xf32>, vector<2x512xf32> -> vector<2x512xf32>
    %254 = vector.broadcast %7 : vector<1x512xf32> to vector<2x512xf32>
    %255 = arith.addf %253, %254 : vector<2x512xf32>
    %256 = vector.extract_strided_slice %255 {offsets = [0, 0], sizes = [2, 256], strides = [1, 1]} : vector<2x512xf32> to vector<2x256xf32>
    %257 = arith.negf %256 : vector<2x256xf32>
    %258 = math.exp %257 : vector<2x256xf32>
    %cst_53 = arith.constant 1.000000e+00 : f32
    %259 = vector.broadcast %cst_53 : f32 to vector<2x256xf32>
    %260 = arith.addf %259, %258 : vector<2x256xf32>
    %261 = arith.divf %259, %260 : vector<2x256xf32>
    %262 = vector.extract_strided_slice %261 {offsets = [0, 0], sizes = [2, 128], strides = [1, 1]} : vector<2x256xf32> to vector<2x128xf32>
    %263 = vector.extract_strided_slice %261 {offsets = [0, 128], sizes = [2, 128], strides = [1, 1]} : vector<2x256xf32> to vector<2x128xf32>
    %264 = vector.extract_strided_slice %255 {offsets = [0, 256], sizes = [2, 128], strides = [1, 1]} : vector<2x512xf32> to vector<2x128xf32>
    %265 = math.tanh %264 : vector<2x128xf32>
    %266 = vector.extract_strided_slice %255 {offsets = [0, 384], sizes = [2, 128], strides = [1, 1]} : vector<2x512xf32> to vector<2x128xf32>
    %267 = arith.negf %266 : vector<2x128xf32>
    %268 = math.exp %267 : vector<2x128xf32>
    %cst_54 = arith.constant 1.000000e+00 : f32
    %269 = vector.broadcast %cst_54 : f32 to vector<2x128xf32>
    %270 = arith.addf %269, %268 : vector<2x128xf32>
    %271 = arith.divf %269, %270 : vector<2x128xf32>
    %272 = arith.mulf %263, %226 : vector<2x128xf32>
    %273 = arith.mulf %262, %265 : vector<2x128xf32>
    %274 = arith.addf %272, %273 : vector<2x128xf32>
    %275 = math.tanh %274 : vector<2x128xf32>
    %276 = arith.mulf %271, %275 : vector<2x128xf32>
    %cst_55 = arith.constant dense<0.000000e+00> : vector<2x512xf32>
    %277 = tpu.matmul %251, %4, %cst_55 {dimension_numbers = #tpu.dot_dimension_numbers<[1], [0], [0], [1], [0, 0, 1, 1], [], []>} : vector<2x128xf32>, vector<128x512xf32>, vector<2x512xf32> -> vector<2x512xf32>
    %278 = arith.addf %71, %277 : vector<2x512xf32>
    %279 = vector.extract_strided_slice %278 {offsets = [0, 0], sizes = [2, 256], strides = [1, 1]} : vector<2x512xf32> to vector<2x256xf32>
    %280 = arith.negf %279 : vector<2x256xf32>
    %281 = math.exp %280 : vector<2x256xf32>
    %cst_56 = arith.constant 1.000000e+00 : f32
    %282 = vector.broadcast %cst_56 : f32 to vector<2x256xf32>
    %283 = arith.addf %282, %281 : vector<2x256xf32>
    %284 = arith.divf %282, %283 : vector<2x256xf32>
    %285 = vector.extract_strided_slice %284 {offsets = [0, 0], sizes = [2, 128], strides = [1, 1]} : vector<2x256xf32> to vector<2x128xf32>
    %286 = vector.extract_strided_slice %284 {offsets = [0, 128], sizes = [2, 128], strides = [1, 1]} : vector<2x256xf32> to vector<2x128xf32>
    %287 = vector.extract_strided_slice %278 {offsets = [0, 256], sizes = [2, 128], strides = [1, 1]} : vector<2x512xf32> to vector<2x128xf32>
    %288 = math.tanh %287 : vector<2x128xf32>
    %289 = vector.extract_strided_slice %278 {offsets = [0, 384], sizes = [2, 128], strides = [1, 1]} : vector<2x512xf32> to vector<2x128xf32>
    %290 = arith.negf %289 : vector<2x128xf32>
    %291 = math.exp %290 : vector<2x128xf32>
    %cst_57 = arith.constant 1.000000e+00 : f32
    %292 = vector.broadcast %cst_57 : f32 to vector<2x128xf32>
    %293 = arith.addf %292, %291 : vector<2x128xf32>
    %294 = arith.divf %292, %293 : vector<2x128xf32>
    %295 = arith.mulf %286, %249 : vector<2x128xf32>
    %296 = arith.mulf %285, %288 : vector<2x128xf32>
    %297 = arith.addf %295, %296 : vector<2x128xf32>
    %298 = math.tanh %297 : vector<2x128xf32>
    %299 = arith.mulf %294, %298 : vector<2x128xf32>
    %300 = tpu.concatenate %299, %276 in 1 : vector<2x128xf32>, vector<2x128xf32> -> vector<2x256xf32>
    %cst_58 = arith.constant dense<0.000000e+00> : vector<2x512xf32>
    %301 = tpu.matmul %300, %6, %cst_58 {dimension_numbers = #tpu.dot_dimension_numbers<[1], [0], [0], [1], [0, 0, 1, 1], [], []>} : vector<2x256xf32>, vector<256x512xf32>, vector<2x512xf32> -> vector<2x512xf32>
    %302 = vector.broadcast %7 : vector<1x512xf32> to vector<2x512xf32>
    %303 = arith.addf %301, %302 : vector<2x512xf32>
    %304 = vector.extract_strided_slice %303 {offsets = [0, 0], sizes = [2, 256], strides = [1, 1]} : vector<2x512xf32> to vector<2x256xf32>
    %305 = arith.negf %304 : vector<2x256xf32>
    %306 = math.exp %305 : vector<2x256xf32>
    %cst_59 = arith.constant 1.000000e+00 : f32
    %307 = vector.broadcast %cst_59 : f32 to vector<2x256xf32>
    %308 = arith.addf %307, %306 : vector<2x256xf32>
    %309 = arith.divf %307, %308 : vector<2x256xf32>
    %310 = vector.extract_strided_slice %309 {offsets = [0, 0], sizes = [2, 128], strides = [1, 1]} : vector<2x256xf32> to vector<2x128xf32>
    %311 = vector.extract_strided_slice %309 {offsets = [0, 128], sizes = [2, 128], strides = [1, 1]} : vector<2x256xf32> to vector<2x128xf32>
    %312 = vector.extract_strided_slice %303 {offsets = [0, 256], sizes = [2, 128], strides = [1, 1]} : vector<2x512xf32> to vector<2x128xf32>
    %313 = math.tanh %312 : vector<2x128xf32>
    %314 = vector.extract_strided_slice %303 {offsets = [0, 384], sizes = [2, 128], strides = [1, 1]} : vector<2x512xf32> to vector<2x128xf32>
    %315 = arith.negf %314 : vector<2x128xf32>
    %316 = math.exp %315 : vector<2x128xf32>
    %cst_60 = arith.constant 1.000000e+00 : f32
    %317 = vector.broadcast %cst_60 : f32 to vector<2x128xf32>
    %318 = arith.addf %317, %316 : vector<2x128xf32>
    %319 = arith.divf %317, %318 : vector<2x128xf32>
    %320 = arith.mulf %311, %274 : vector<2x128xf32>
    %321 = arith.mulf %310, %313 : vector<2x128xf32>
    %322 = arith.addf %320, %321 : vector<2x128xf32>
    %323 = math.tanh %322 : vector<2x128xf32>
    %324 = arith.mulf %319, %323 : vector<2x128xf32>
    %cst_61 = arith.constant dense<0.000000e+00> : vector<2x512xf32>
    %325 = tpu.matmul %299, %4, %cst_61 {dimension_numbers = #tpu.dot_dimension_numbers<[1], [0], [0], [1], [0, 0, 1, 1], [], []>} : vector<2x128xf32>, vector<128x512xf32>, vector<2x512xf32> -> vector<2x512xf32>
    %326 = arith.addf %74, %325 : vector<2x512xf32>
    %327 = vector.extract_strided_slice %326 {offsets = [0, 0], sizes = [2, 256], strides = [1, 1]} : vector<2x512xf32> to vector<2x256xf32>
    %328 = arith.negf %327 : vector<2x256xf32>
    %329 = math.exp %328 : vector<2x256xf32>
    %cst_62 = arith.constant 1.000000e+00 : f32
    %330 = vector.broadcast %cst_62 : f32 to vector<2x256xf32>
    %331 = arith.addf %330, %329 : vector<2x256xf32>
    %332 = arith.divf %330, %331 : vector<2x256xf32>
    %333 = vector.extract_strided_slice %332 {offsets = [0, 0], sizes = [2, 128], strides = [1, 1]} : vector<2x256xf32> to vector<2x128xf32>
    %334 = vector.extract_strided_slice %332 {offsets = [0, 128], sizes = [2, 128], strides = [1, 1]} : vector<2x256xf32> to vector<2x128xf32>
    %335 = vector.extract_strided_slice %326 {offsets = [0, 256], sizes = [2, 128], strides = [1, 1]} : vector<2x512xf32> to vector<2x128xf32>
    %336 = math.tanh %335 : vector<2x128xf32>
    %337 = vector.extract_strided_slice %326 {offsets = [0, 384], sizes = [2, 128], strides = [1, 1]} : vector<2x512xf32> to vector<2x128xf32>
    %338 = arith.negf %337 : vector<2x128xf32>
    %339 = math.exp %338 : vector<2x128xf32>
    %cst_63 = arith.constant 1.000000e+00 : f32
    %340 = vector.broadcast %cst_63 : f32 to vector<2x128xf32>
    %341 = arith.addf %340, %339 : vector<2x128xf32>
    %342 = arith.divf %340, %341 : vector<2x128xf32>
    %343 = arith.mulf %334, %297 : vector<2x128xf32>
    %344 = arith.mulf %333, %336 : vector<2x128xf32>
    %345 = arith.addf %343, %344 : vector<2x128xf32>
    %346 = math.tanh %345 : vector<2x128xf32>
    %347 = arith.mulf %342, %346 : vector<2x128xf32>
    %348 = tpu.concatenate %347, %324 in 1 : vector<2x128xf32>, vector<2x128xf32> -> vector<2x256xf32>
    %cst_64 = arith.constant dense<0.000000e+00> : vector<2x512xf32>
    %349 = tpu.matmul %348, %6, %cst_64 {dimension_numbers = #tpu.dot_dimension_numbers<[1], [0], [0], [1], [0, 0, 1, 1], [], []>} : vector<2x256xf32>, vector<256x512xf32>, vector<2x512xf32> -> vector<2x512xf32>
    %350 = vector.broadcast %7 : vector<1x512xf32> to vector<2x512xf32>
    %351 = arith.addf %349, %350 : vector<2x512xf32>
    %352 = vector.extract_strided_slice %351 {offsets = [0, 0], sizes = [2, 256], strides = [1, 1]} : vector<2x512xf32> to vector<2x256xf32>
    %353 = arith.negf %352 : vector<2x256xf32>
    %354 = math.exp %353 : vector<2x256xf32>
    %cst_65 = arith.constant 1.000000e+00 : f32
    %355 = vector.broadcast %cst_65 : f32 to vector<2x256xf32>
    %356 = arith.addf %355, %354 : vector<2x256xf32>
    %357 = arith.divf %355, %356 : vector<2x256xf32>
    %358 = vector.extract_strided_slice %357 {offsets = [0, 0], sizes = [2, 128], strides = [1, 1]} : vector<2x256xf32> to vector<2x128xf32>
    %359 = vector.extract_strided_slice %357 {offsets = [0, 128], sizes = [2, 128], strides = [1, 1]} : vector<2x256xf32> to vector<2x128xf32>
    %360 = vector.extract_strided_slice %351 {offsets = [0, 256], sizes = [2, 128], strides = [1, 1]} : vector<2x512xf32> to vector<2x128xf32>
    %361 = math.tanh %360 : vector<2x128xf32>
    %362 = vector.extract_strided_slice %351 {offsets = [0, 384], sizes = [2, 128], strides = [1, 1]} : vector<2x512xf32> to vector<2x128xf32>
    %363 = arith.negf %362 : vector<2x128xf32>
    %364 = math.exp %363 : vector<2x128xf32>
    %cst_66 = arith.constant 1.000000e+00 : f32
    %365 = vector.broadcast %cst_66 : f32 to vector<2x128xf32>
    %366 = arith.addf %365, %364 : vector<2x128xf32>
    %367 = arith.divf %365, %366 : vector<2x128xf32>
    %368 = arith.mulf %359, %322 : vector<2x128xf32>
    %369 = arith.mulf %358, %361 : vector<2x128xf32>
    %370 = arith.addf %368, %369 : vector<2x128xf32>
    %371 = math.tanh %370 : vector<2x128xf32>
    %372 = arith.mulf %367, %371 : vector<2x128xf32>
    %cst_67 = arith.constant dense<0.000000e+00> : vector<2x512xf32>
    %373 = tpu.matmul %347, %4, %cst_67 {dimension_numbers = #tpu.dot_dimension_numbers<[1], [0], [0], [1], [0, 0, 1, 1], [], []>} : vector<2x128xf32>, vector<128x512xf32>, vector<2x512xf32> -> vector<2x512xf32>
    %374 = arith.addf %77, %373 : vector<2x512xf32>
    %375 = vector.extract_strided_slice %374 {offsets = [0, 0], sizes = [2, 256], strides = [1, 1]} : vector<2x512xf32> to vector<2x256xf32>
    %376 = arith.negf %375 : vector<2x256xf32>
    %377 = math.exp %376 : vector<2x256xf32>
    %cst_68 = arith.constant 1.000000e+00 : f32
    %378 = vector.broadcast %cst_68 : f32 to vector<2x256xf32>
    %379 = arith.addf %378, %377 : vector<2x256xf32>
    %380 = arith.divf %378, %379 : vector<2x256xf32>
    %381 = vector.extract_strided_slice %380 {offsets = [0, 0], sizes = [2, 128], strides = [1, 1]} : vector<2x256xf32> to vector<2x128xf32>
    %382 = vector.extract_strided_slice %380 {offsets = [0, 128], sizes = [2, 128], strides = [1, 1]} : vector<2x256xf32> to vector<2x128xf32>
    %383 = vector.extract_strided_slice %374 {offsets = [0, 256], sizes = [2, 128], strides = [1, 1]} : vector<2x512xf32> to vector<2x128xf32>
    %384 = math.tanh %383 : vector<2x128xf32>
    %385 = vector.extract_strided_slice %374 {offsets = [0, 384], sizes = [2, 128], strides = [1, 1]} : vector<2x512xf32> to vector<2x128xf32>
    %386 = arith.negf %385 : vector<2x128xf32>
    %387 = math.exp %386 : vector<2x128xf32>
    %cst_69 = arith.constant 1.000000e+00 : f32
    %388 = vector.broadcast %cst_69 : f32 to vector<2x128xf32>
    %389 = arith.addf %388, %387 : vector<2x128xf32>
    %390 = arith.divf %388, %389 : vector<2x128xf32>
    %391 = arith.mulf %382, %345 : vector<2x128xf32>
    %392 = arith.mulf %381, %384 : vector<2x128xf32>
    %393 = arith.addf %391, %392 : vector<2x128xf32>
    %394 = math.tanh %393 : vector<2x128xf32>
    %395 = arith.mulf %390, %394 : vector<2x128xf32>
    %396 = tpu.concatenate %395, %372 in 1 : vector<2x128xf32>, vector<2x128xf32> -> vector<2x256xf32>
    %cst_70 = arith.constant dense<0.000000e+00> : vector<2x512xf32>
    %397 = tpu.matmul %396, %6, %cst_70 {dimension_numbers = #tpu.dot_dimension_numbers<[1], [0], [0], [1], [0, 0, 1, 1], [], []>} : vector<2x256xf32>, vector<256x512xf32>, vector<2x512xf32> -> vector<2x512xf32>
    %398 = vector.broadcast %7 : vector<1x512xf32> to vector<2x512xf32>
    %399 = arith.addf %397, %398 : vector<2x512xf32>
    %400 = vector.extract_strided_slice %399 {offsets = [0, 0], sizes = [2, 256], strides = [1, 1]} : vector<2x512xf32> to vector<2x256xf32>
    %401 = arith.negf %400 : vector<2x256xf32>
    %402 = math.exp %401 : vector<2x256xf32>
    %cst_71 = arith.constant 1.000000e+00 : f32
    %403 = vector.broadcast %cst_71 : f32 to vector<2x256xf32>
    %404 = arith.addf %403, %402 : vector<2x256xf32>
    %405 = arith.divf %403, %404 : vector<2x256xf32>
    %406 = vector.extract_strided_slice %405 {offsets = [0, 0], sizes = [2, 128], strides = [1, 1]} : vector<2x256xf32> to vector<2x128xf32>
    %407 = vector.extract_strided_slice %405 {offsets = [0, 128], sizes = [2, 128], strides = [1, 1]} : vector<2x256xf32> to vector<2x128xf32>
    %408 = vector.extract_strided_slice %399 {offsets = [0, 256], sizes = [2, 128], strides = [1, 1]} : vector<2x512xf32> to vector<2x128xf32>
    %409 = math.tanh %408 : vector<2x128xf32>
    %410 = vector.extract_strided_slice %399 {offsets = [0, 384], sizes = [2, 128], strides = [1, 1]} : vector<2x512xf32> to vector<2x128xf32>
    %411 = arith.negf %410 : vector<2x128xf32>
    %412 = math.exp %411 : vector<2x128xf32>
    %cst_72 = arith.constant 1.000000e+00 : f32
    %413 = vector.broadcast %cst_72 : f32 to vector<2x128xf32>
    %414 = arith.addf %413, %412 : vector<2x128xf32>
    %415 = arith.divf %413, %414 : vector<2x128xf32>
    %416 = arith.mulf %407, %370 : vector<2x128xf32>
    %417 = arith.mulf %406, %409 : vector<2x128xf32>
    %418 = arith.addf %416, %417 : vector<2x128xf32>
    %419 = math.tanh %418 : vector<2x128xf32>
    %420 = arith.mulf %415, %419 : vector<2x128xf32>
    %cst_73 = arith.constant dense<0.000000e+00> : vector<2x512xf32>
    %421 = tpu.matmul %395, %4, %cst_73 {dimension_numbers = #tpu.dot_dimension_numbers<[1], [0], [0], [1], [0, 0, 1, 1], [], []>} : vector<2x128xf32>, vector<128x512xf32>, vector<2x512xf32> -> vector<2x512xf32>
    %422 = arith.addf %80, %421 : vector<2x512xf32>
    %423 = vector.extract_strided_slice %422 {offsets = [0, 0], sizes = [2, 256], strides = [1, 1]} : vector<2x512xf32> to vector<2x256xf32>
    %424 = arith.negf %423 : vector<2x256xf32>
    %425 = math.exp %424 : vector<2x256xf32>
    %cst_74 = arith.constant 1.000000e+00 : f32
    %426 = vector.broadcast %cst_74 : f32 to vector<2x256xf32>
    %427 = arith.addf %426, %425 : vector<2x256xf32>
    %428 = arith.divf %426, %427 : vector<2x256xf32>
    %429 = vector.extract_strided_slice %428 {offsets = [0, 0], sizes = [2, 128], strides = [1, 1]} : vector<2x256xf32> to vector<2x128xf32>
    %430 = vector.extract_strided_slice %428 {offsets = [0, 128], sizes = [2, 128], strides = [1, 1]} : vector<2x256xf32> to vector<2x128xf32>
    %431 = vector.extract_strided_slice %422 {offsets = [0, 256], sizes = [2, 128], strides = [1, 1]} : vector<2x512xf32> to vector<2x128xf32>
    %432 = math.tanh %431 : vector<2x128xf32>
    %433 = vector.extract_strided_slice %422 {offsets = [0, 384], sizes = [2, 128], strides = [1, 1]} : vector<2x512xf32> to vector<2x128xf32>
    %434 = arith.negf %433 : vector<2x128xf32>
    %435 = math.exp %434 : vector<2x128xf32>
    %cst_75 = arith.constant 1.000000e+00 : f32
    %436 = vector.broadcast %cst_75 : f32 to vector<2x128xf32>
    %437 = arith.addf %436, %435 : vector<2x128xf32>
    %438 = arith.divf %436, %437 : vector<2x128xf32>
    %439 = arith.mulf %430, %393 : vector<2x128xf32>
    %440 = arith.mulf %429, %432 : vector<2x128xf32>
    %441 = arith.addf %439, %440 : vector<2x128xf32>
    %442 = math.tanh %441 : vector<2x128xf32>
    %443 = arith.mulf %438, %442 : vector<2x128xf32>
    %444 = tpu.concatenate %443, %420 in 1 : vector<2x128xf32>, vector<2x128xf32> -> vector<2x256xf32>
    %cst_76 = arith.constant dense<0.000000e+00> : vector<2x512xf32>
    %445 = tpu.matmul %444, %6, %cst_76 {dimension_numbers = #tpu.dot_dimension_numbers<[1], [0], [0], [1], [0, 0, 1, 1], [], []>} : vector<2x256xf32>, vector<256x512xf32>, vector<2x512xf32> -> vector<2x512xf32>
    %446 = vector.broadcast %7 : vector<1x512xf32> to vector<2x512xf32>
    %447 = arith.addf %445, %446 : vector<2x512xf32>
    %448 = vector.extract_strided_slice %447 {offsets = [0, 0], sizes = [2, 256], strides = [1, 1]} : vector<2x512xf32> to vector<2x256xf32>
    %449 = arith.negf %448 : vector<2x256xf32>
    %450 = math.exp %449 : vector<2x256xf32>
    %cst_77 = arith.constant 1.000000e+00 : f32
    %451 = vector.broadcast %cst_77 : f32 to vector<2x256xf32>
    %452 = arith.addf %451, %450 : vector<2x256xf32>
    %453 = arith.divf %451, %452 : vector<2x256xf32>
    %454 = vector.extract_strided_slice %453 {offsets = [0, 0], sizes = [2, 128], strides = [1, 1]} : vector<2x256xf32> to vector<2x128xf32>
    %455 = vector.extract_strided_slice %453 {offsets = [0, 128], sizes = [2, 128], strides = [1, 1]} : vector<2x256xf32> to vector<2x128xf32>
    %456 = vector.extract_strided_slice %447 {offsets = [0, 256], sizes = [2, 128], strides = [1, 1]} : vector<2x512xf32> to vector<2x128xf32>
    %457 = math.tanh %456 : vector<2x128xf32>
    %458 = vector.extract_strided_slice %447 {offsets = [0, 384], sizes = [2, 128], strides = [1, 1]} : vector<2x512xf32> to vector<2x128xf32>
    %459 = arith.negf %458 : vector<2x128xf32>
    %460 = math.exp %459 : vector<2x128xf32>
    %cst_78 = arith.constant 1.000000e+00 : f32
    %461 = vector.broadcast %cst_78 : f32 to vector<2x128xf32>
    %462 = arith.addf %461, %460 : vector<2x128xf32>
    %463 = arith.divf %461, %462 : vector<2x128xf32>
    %464 = arith.mulf %455, %418 : vector<2x128xf32>
    %465 = arith.mulf %454, %457 : vector<2x128xf32>
    %466 = arith.addf %464, %465 : vector<2x128xf32>
    %467 = math.tanh %466 : vector<2x128xf32>
    %468 = arith.mulf %463, %467 : vector<2x128xf32>
    %c0_79 = arith.constant 0 : index
    %c0_80 = arith.constant 0 : index
    %469 = vector.load %arg8[%c0_79, %c0_80] : memref<128x4xf32, #tpu.memory_space<vmem>>, vector<128x4xf32>
    %cst_81 = arith.constant dense<0.000000e+00> : vector<2x4xf32>
    %470 = tpu.matmul %468, %469, %cst_81 {dimension_numbers = #tpu.dot_dimension_numbers<[1], [0], [0], [1], [0, 0, 1, 1], [], []>} : vector<2x128xf32>, vector<128x4xf32>, vector<2x4xf32> -> vector<2x4xf32>
    %c0_82 = arith.constant 0 : index
    %c0_83 = arith.constant 0 : index
    %471 = vector.load %arg9[%c0_82, %c0_83] : memref<1x4xf32, #tpu.memory_space<vmem>>, vector<1x4xf32>
    %472 = vector.broadcast %471 : vector<1x4xf32> to vector<2x4xf32>
    %473 = arith.addf %470, %472 : vector<2x4xf32>
    %c0_84 = arith.constant 0 : index
    %c0_85 = arith.constant 0 : index
    %474 = vector.load %arg10[%c0_84, %c0_85] : memref<2x4xf32, #tpu.memory_space<vmem>>, vector<2x4xf32>
    tpu.vector_store %arg10[%c0_84, %c0_85], %473 {strides = array<i32>} : memref<2x4xf32, #tpu.memory_space<vmem>>, vector<2x4xf32>,
    return
  }
}

</mosaic_0001>

<llo_original>
// kernel: tpu_custom_call.1
$region0: #{tpu_custom_call.1}
  #allocation0 [shape = 'u32[]', space=smem, size = 0x4, offset = 0x4, fixed_abs, tag = 'smem constant byte address 0x4 - core index']
  #allocation1 [shape = 'u32[144,128]{1,0:T(1,128)}', space=vmem, size = 0x12000, scoped, tag = 'internal scratch']
  %s0 = inlined_call_operand.vmem [shape: f32[2,8,4], index: 0, kind: input, shape index: {}]
  %s1 = inlined_call_operand.vmem [shape: f32[3,4,8], index: 1, kind: input, shape index: {}]
  %s2 = inlined_call_operand.vmem [shape: f32[1,8], index: 2, kind: input, shape index: {}]
  %s3 = inlined_call_operand.vmem [shape: f32[8,512], index: 3, kind: input, shape index: {}]
  %s4 = inlined_call_operand.hbm [shape: f32[128,512], index: 4, kind: input, shape index: {}]
  %s5 = inlined_call_operand.vmem [shape: f32[1,512], index: 5, kind: input, shape index: {}]
  %s6 = inlined_call_operand.hbm [shape: f32[256,512], index: 6, kind: input, shape index: {}]
  %s7 = inlined_call_operand.vmem [shape: f32[1,512], index: 7, kind: input, shape index: {}]
  %s8 = inlined_call_operand.vmem [shape: f32[128,4], index: 8, kind: input, shape index: {}]
  %s9 = inlined_call_operand.vmem [shape: f32[1,4], index: 9, kind: input, shape index: {}]
  %s10 = inlined_call_operand.hbm [shape: f32[2,4], index: 10, kind: output, shape index: {}]
  %s11 = sld [smem:[#allocation0]]
  $region58: #{tpu_custom_call.1} parent=0
    _
  %s13 = ssub.s32 1, %s11
  %s14 = scalar_select 0, %s13, %s11
  $region1: #{tpu_custom_call.1} parent=0
    #allocation2 [shape = 'u8[262144]{0}', space=vmem, size = 0x40000, scoped, tag = 'input window, operand 4, single buffered']
    #allocation3 [shape = 's32[1]{0}', space=sflag, size = 0x4, scoped, tag = 'scoped memory for tpu_custom_call.1']
    #allocation4 [shape = 's32[1]{0}', space=sflag, size = 0x4, scoped, tag = 'scoped memory for tpu_custom_call.1']
    #allocation5 [shape = 'u8[524288]{0}', space=vmem, size = 0x80000, scoped, tag = 'input window, operand 6, single buffered']
    #allocation6 [shape = 's32[1]{0}', space=sflag, size = 0x4, scoped, tag = 'scoped memory for tpu_custom_call.1']
    #allocation7 [shape = 'u8[1024]{0}', space=vmem, size = 0x400, scoped, tag = 'output window, operand 0, single buffered']
    %15 = vsyncpa [#allocation3], 0
    %16 = vsyncpa [#allocation6], 0
    %17 = vsyncpa [#allocation4], 0
    // Predicated region
    $region2: #{tpu_custom_call.1} parent=1 // pred_check
      _
    $region3: #{tpu_custom_call.1} parent=1 // pred_check_branch
      %19 = sbr.rel (0) target = $region5
    $region4: #{tpu_custom_call.1} parent=1 // pred_region
      _
    $region5: #{tpu_custom_call.1} parent=1 // pred_fallthru
      _
    // Predicated region
    $region6: #{tpu_custom_call.1} parent=1 // pred_check
      _
    $region7: #{tpu_custom_call.1} parent=1 // pred_check_branch
      %21 = sbr.rel (0) target = $region9
    $region8: #{tpu_custom_call.1} parent=1 // pred_region
      _
    $region9: #{tpu_custom_call.1} parent=1 // pred_fallthru
      _
    // Predicated region
    $region10: #{tpu_custom_call.1} parent=1 // pred_check
      _
    $region11: #{tpu_custom_call.1} parent=1 // pred_check_branch
      %23 = sbr.rel (0) target = $region13
    $region12: #{tpu_custom_call.1} parent=1 // pred_region
      _
    $region13: #{tpu_custom_call.1} parent=1 // pred_fallthru
      _
    // Predicated region
    $region14: #{tpu_custom_call.1} parent=1 // pred_check
      _
    $region15: #{tpu_custom_call.1} parent=1 // pred_check_branch
      %25 = sbr.rel (0) target = $region17
    $region16: #{tpu_custom_call.1} parent=1 // pred_region
      _
    $region17: #{tpu_custom_call.1} parent=1 // pred_fallthru
      _
    // Predicated region
    $region18: #{tpu_custom_call.1} parent=1 // pred_check
      _
    $region19: #{tpu_custom_call.1} parent=1 // pred_check_branch
      %27 = sbr.rel (0) target = $region21
    $region20: #{tpu_custom_call.1} parent=1 // pred_region
      %s29 = ssub.s32 8192, 8192
      %30 = vsyncadd [#allocation3], %s29
      %s31 = sshll.u32 [#allocation2], 4
      %s32 = int_to_ptr.vmem [resolvable:$true] %s31
      %37 = dma.hbm_to_vmem [thread:$0]  %s4, 8192, %s32, [#allocation3], 512, 512, 32
    $region21: #{tpu_custom_call.1} parent=1 // pred_fallthru
      _
    // Predicated region
    $region22: #{tpu_custom_call.1} parent=1 // pred_check
      _
    $region23: #{tpu_custom_call.1} parent=1 // pred_check_branch
      %39 = sbr.rel (0) target = $region25
    $region24: #{tpu_custom_call.1} parent=1 // pred_region
      _
    $region25: #{tpu_custom_call.1} parent=1 // pred_fallthru
      _
    // Predicated region
    $region26: #{tpu_custom_call.1} parent=1 // pred_check
      _
    $region27: #{tpu_custom_call.1} parent=1 // pred_check_branch
      %41 = sbr.rel (0) target = $region29
    $region28: #{tpu_custom_call.1} parent=1 // pred_region
      %s43 = ssub.s32 16384, 16384
      %44 = vsyncadd [#allocation6], %s43
      %s45 = sshll.u32 [#allocation5], 4
      %s46 = int_to_ptr.vmem [resolvable:$true] %s45
      %51 = dma.hbm_to_vmem [thread:$0]  %s6, 16384, %s46, [#allocation6], 512, 512, 32
    $region29: #{tpu_custom_call.1} parent=1 // pred_fallthru
      _
    // Predicated region
    $region30: #{tpu_custom_call.1} parent=1 // pred_check
      _
    $region31: #{tpu_custom_call.1} parent=1 // pred_check_branch
      %53 = sbr.rel (0) target = $region33
    $region32: #{tpu_custom_call.1} parent=1 // pred_region
      _
    $region33: #{tpu_custom_call.1} parent=1 // pred_fallthru
      _
    // Predicated region
    $region34: #{tpu_custom_call.1} parent=1 // pred_check
      _
    $region35: #{tpu_custom_call.1} parent=1 // pred_check_branch
      %55 = sbr.rel (0) target = $region37
    $region36: #{tpu_custom_call.1} parent=1 // pred_region
      _
    $region37: #{tpu_custom_call.1} parent=1 // pred_fallthru
      _
    // Predicated region
    $region38: #{tpu_custom_call.1} parent=1 // pred_check
      _
    $region39: #{tpu_custom_call.1} parent=1 // pred_check_branch
      %57 = sbr.rel (0) target = $region41
    $region40: #{tpu_custom_call.1} parent=1 // pred_region
      _
    $region41: #{tpu_custom_call.1} parent=1 // pred_fallthru
      _
    // Predicated region
    $region42: #{tpu_custom_call.1} parent=1 // pred_check
      _
    $region43: #{tpu_custom_call.1} parent=1 // pred_check_branch
      %59 = sbr.rel (0) target = $region45
    $region44: #{tpu_custom_call.1} parent=1 // pred_region
      %60 = dma.done [#allocation3], 8192
    $region45: #{tpu_custom_call.1} parent=1 // pred_fallthru
      _
    // Predicated region
    $region46: #{tpu_custom_call.1} parent=1 // pred_check
      _
    $region47: #{tpu_custom_call.1} parent=1 // pred_check_branch
      %62 = sbr.rel (0) target = $region49
    $region48: #{tpu_custom_call.1} parent=1 // pred_region
      %63 = dma.done [#allocation6], 16384
    $region49: #{tpu_custom_call.1} parent=1 // pred_fallthru
      _
    %v64 = vld [vmem:[%s0] sm:$0xff]
    %v65 = vld [vmem:[%s0 + $0x8] sm:$0xff]
    %v66 = vld [vmem:[%s1] sm:$0xf]
    %v67 = vld [vmem:[%s1 + $0x4] sm:$0xf]
    %v68 = vld [vmem:[%s1 + $0x8] sm:$0xf]
    %v69 = vld [vmem:[%s2] sm:$0x1]
    %v70 = vld [vmem:[%s3] sm:$0xff]
    %v71 = vld [vmem:[%s3 + $0x8] sm:$0xff]
    %v72 = vld [vmem:[%s3 + $0x10] sm:$0xff]
    %v73 = vld [vmem:[%s3 + $0x18] sm:$0xff]
    %v74 = vld [vmem:[#allocation2] sm:$0xff]
    %v75 = vld [vmem:[#allocation2 + $0x8] sm:$0xff]
    %v76 = vld [vmem:[#allocation2 + $0x10] sm:$0xff]
    %v77 = vld [vmem:[#allocation2 + $0x18] sm:$0xff]
    %v78 = vld [vmem:[#allocation2 + $0x20] sm:$0xff]
    %v79 = vld [vmem:[#allocation2 + $0x28] sm:$0xff]
    %v80 = vld [vmem:[#allocation2 + $0x30] sm:$0xff]
    %v81 = vld [vmem:[#allocation2 + $0x38] sm:$0xff]
    %v82 = vld [vmem:[#allocation2 + $0x40] sm:$0xff]
    %v83 = vld [vmem:[#allocation2 + $0x48] sm:$0xff]
    %v84 = vld [vmem:[#allocation2 + $0x50] sm:$0xff]
    %v85 = vld [vmem:[#allocation2 + $0x58] sm:$0xff]
    %v86 = vld [vmem:[#allocation2 + $0x60] sm:$0xff]
    %v87 = vld [vmem:[#allocation2 + $0x68] sm:$0xff]
    %v88 = vld [vmem:[#allocation2 + $0x70] sm:$0xff]
    %v89 = vld [vmem:[#allocation2 + $0x78] sm:$0xff]
    %v90 = vld [vmem:[#allocation2 + $0x80] sm:$0xff]
    %v91 = vld [vmem:[#allocation2 + $0x88] sm:$0xff]
    %v92 = vld [vmem:[#allocation2 + $0x90] sm:$0xff]
    %v93 = vld [vmem:[#allocation2 + $0x98] sm:$0xff]
    %v94 = vld [vmem:[#allocation2 + $0xa0] sm:$0xff]
    %v95 = vld [vmem:[#allocation2 + $0xa8] sm:$0xff]
    %v96 = vld [vmem:[#allocation2 + $0xb0] sm:$0xff]
    %v97 = vld [vmem:[#allocation2 + $0xb8] sm:$0xff]
    %v98 = vld [vmem:[#allocation2 + $0xc0] sm:$0xff]
    %v99 = vld [vmem:[#allocation2 + $0xc8] sm:$0xff]
    %v100 = vld [vmem:[#allocation2 + $0xd0] sm:$0xff]
    %v101 = vld [vmem:[#allocation2 + $0xd8] sm:$0xff]
    %v102 = vld [vmem:[#allocation2 + $0xe0] sm:$0xff]
    %v103 = vld [vmem:[#allocation2 + $0xe8] sm:$0xff]
    %v104 = vld [vmem:[#allocation2 + $0xf0] sm:$0xff]
    %v105 = vld [vmem:[#allocation2 + $0xf8] sm:$0xff]
    %v106 = vld [vmem:[#allocation2 + $0x100] sm:$0xff]
    %v107 = vld [vmem:[#allocation2 + $0x108] sm:$0xff]
    %v108 = vld [vmem:[#allocation2 + $0x110] sm:$0xff]
    %v109 = vld [vmem:[#allocation2 + $0x118] sm:$0xff]
    %v110 = vld [vmem:[#allocation2 + $0x120] sm:$0xff]
    %v111 = vld [vmem:[#allocation2 + $0x128] sm:$0xff]
    %v112 = vld [vmem:[#allocation2 + $0x130] sm:$0xff]
    %v113 = vld [vmem:[#allocation2 + $0x138] sm:$0xff]
    %v114 = vld [vmem:[#allocation2 + $0x140] sm:$0xff]
    %v115 = vld [vmem:[#allocation2 + $0x148] sm:$0xff]
    %v116 = vld [vmem:[#allocation2 + $0x150] sm:$0xff]
    %v117 = vld [vmem:[#allocation2 + $0x158] sm:$0xff]
    %v118 = vld [vmem:[#allocation2 + $0x160] sm:$0xff]
    %v119 = vld [vmem:[#allocation2 + $0x168] sm:$0xff]
    %v120 = vld [vmem:[#allocation2 + $0x170] sm:$0xff]
    %v121 = vld [vmem:[#allocation2 + $0x178] sm:$0xff]
    %v122 = vld [vmem:[#allocation2 + $0x180] sm:$0xff]
    %v123 = vld [vmem:[#allocation2 + $0x188] sm:$0xff]
    %v124 = vld [vmem:[#allocation2 + $0x190] sm:$0xff]
    %v125 = vld [vmem:[#allocation2 + $0x198] sm:$0xff]
    %v126 = vld [vmem:[#allocation2 + $0x1a0] sm:$0xff]
    %v127 = vld [vmem:[#allocation2 + $0x1a8] sm:$0xff]
    %v128 = vld [vmem:[#allocation2 + $0x1b0] sm:$0xff]
    %v129 = vld [vmem:[#allocation2 + $0x1b8] sm:$0xff]
    %v130 = vld [vmem:[#allocation2 + $0x1c0] sm:$0xff]
    %v131 = vld [vmem:[#allocation2 + $0x1c8] sm:$0xff]
    %v132 = vld [vmem:[#allocation2 + $0x1d0] sm:$0xff]
    %v133 = vld [vmem:[#allocation2 + $0x1d8] sm:$0xff]
    %v134 = vld [vmem:[#allocation2 + $0x1e0] sm:$0xff]
    %v135 = vld [vmem:[#allocation2 + $0x1e8] sm:$0xff]
    %v136 = vld [vmem:[#allocation2 + $0x1f0] sm:$0xff]
    %v137 = vld [vmem:[#allocation2 + $0x1f8] sm:$0xff]
    %v138 = vld [vmem:[%s5] sm:$0xf]
    %v139 = vld [vmem:[#allocation5] sm:$0xff]
    %v140 = vld [vmem:[#allocation5 + $0x8] sm:$0xff]
    %v141 = vld [vmem:[#allocation5 + $0x10] sm:$0xff]
    %v142 = vld [vmem:[#allocation5 + $0x18] sm:$0xff]
    %v143 = vld [vmem:[#allocation5 + $0x20] sm:$0xff]
    %v144 = vld [vmem:[#allocation5 + $0x28] sm:$0xff]
    %v145 = vld [vmem:[#allocation5 + $0x30] sm:$0xff]
    %v146 = vld [vmem:[#allocation5 + $0x38] sm:$0xff]
    %v147 = vld [vmem:[#allocation5 + $0x40] sm:$0xff]
    %v148 = vld [vmem:[#allocation5 + $0x48] sm:$0xff]
    %v149 = vld [vmem:[#allocation5 + $0x50] sm:$0xff]
    %v150 = vld [vmem:[#allocation5 + $0x58] sm:$0xff]
    %v151 = vld [vmem:[#allocation5 + $0x60] sm:$0xff]
    %v152 = vld [vmem:[#allocation5 + $0x68] sm:$0xff]
    %v153 = vld [vmem:[#allocation5 + $0x70] sm:$0xff]
    %v154 = vld [vmem:[#allocation5 + $0x78] sm:$0xff]
    %v155 = vld [vmem:[#allocation5 + $0x80] sm:$0xff]
    %v156 = vld [vmem:[#allocation5 + $0x88] sm:$0xff]
    %v157 = vld [vmem:[#allocation5 + $0x90] sm:$0xff]
    %v158 = vld [vmem:[#allocation5 + $0x98] sm:$0xff]
    %v159 = vld [vmem:[#allocation5 + $0xa0] sm:$0xff]
    %v160 = vld [vmem:[#allocation5 + $0xa8] sm:$0xff]
    %v161 = vld [vmem:[#allocation5 + $0xb0] sm:$0xff]
    %v162 = vld [vmem:[#allocation5 + $0xb8] sm:$0xff]
    %v163 = vld [vmem:[#allocation5 + $0xc0] sm:$0xff]
    %v164 = vld [vmem:[#allocation5 + $0xc8] sm:$0xff]
    %v165 = vld [vmem:[#allocation5 + $0xd0] sm:$0xff]
    %v166 = vld [vmem:[#allocation5 + $0xd8] sm:$0xff]
    %v167 = vld [vmem:[#allocation5 + $0xe0] sm:$0xff]
    %v168 = vld [vmem:[#allocation5 + $0xe8] sm:$0xff]
    %v169 = vld [vmem:[#allocation5 + $0xf0] sm:$0xff]
    %v170 = vld [vmem:[#allocation5 + $0xf8] sm:$0xff]
    %v171 = vld [vmem:[#allocation5 + $0x100] sm:$0xff]
    %v172 = vld [vmem:[#allocation5 + $0x108] sm:$0xff]
    %v173 = vld [vmem:[#allocation5 + $0x110] sm:$0xff]
    %v174 = vld [vmem:[#allocation5 + $0x118] sm:$0xff]
    %v175 = vld [vmem:[#allocation5 + $0x120] sm:$0xff]
    %v176 = vld [vmem:[#allocation5 + $0x128] sm:$0xff]
    %v177 = vld [vmem:[#allocation5 + $0x130] sm:$0xff]
    %v178 = vld [vmem:[#allocation5 + $0x138] sm:$0xff]
    %v179 = vld [vmem:[#allocation5 + $0x140] sm:$0xff]
    %v180 = vld [vmem:[#allocation5 + $0x148] sm:$0xff]
    %v181 = vld [vmem:[#allocation5 + $0x150] sm:$0xff]
    %v182 = vld [vmem:[#allocation5 + $0x158] sm:$0xff]
    %v183 = vld [vmem:[#allocation5 + $0x160] sm:$0xff]
    %v184 = vld [vmem:[#allocation5 + $0x168] sm:$0xff]
    %v185 = vld [vmem:[#allocation5 + $0x170] sm:$0xff]
    %v186 = vld [vmem:[#allocation5 + $0x178] sm:$0xff]
    %v187 = vld [vmem:[#allocation5 + $0x180] sm:$0xff]
    %v188 = vld [vmem:[#allocation5 + $0x188] sm:$0xff]
    %v189 = vld [vmem:[#allocation5 + $0x190] sm:$0xff]
    %v190 = vld [vmem:[#allocation5 + $0x198] sm:$0xff]
    %v191 = vld [vmem:[#allocation5 + $0x1a0] sm:$0xff]
    %v192 = vld [vmem:[#allocation5 + $0x1a8] sm:$0xff]
    %v193 = vld [vmem:[#allocation5 + $0x1b0] sm:$0xff]
    %v194 = vld [vmem:[#allocation5 + $0x1b8] sm:$0xff]
    %v195 = vld [vmem:[#allocation5 + $0x1c0] sm:$0xff]
    %v196 = vld [vmem:[#allocation5 + $0x1c8] sm:$0xff]
    %v197 = vld [vmem:[#allocation5 + $0x1d0] sm:$0xff]
    %v198 = vld [vmem:[#allocation5 + $0x1d8] sm:$0xff]
    %v199 = vld [vmem:[#allocation5 + $0x1e0] sm:$0xff]
    %v200 = vld [vmem:[#allocation5 + $0x1e8] sm:$0xff]
    %v201 = vld [vmem:[#allocation5 + $0x1f0] sm:$0xff]
    %v202 = vld [vmem:[#allocation5 + $0x1f8] sm:$0xff]
    %v203 = vld [vmem:[#allocation5 + $0x200] sm:$0xff]
    %v204 = vld [vmem:[#allocation5 + $0x208] sm:$0xff]
    %v205 = vld [vmem:[#allocation5 + $0x210] sm:$0xff]
    %v206 = vld [vmem:[#allocation5 + $0x218] sm:$0xff]
    %v207 = vld [vmem:[#allocation5 + $0x220] sm:$0xff]
    %v208 = vld [vmem:[#allocation5 + $0x228] sm:$0xff]
    %v209 = vld [vmem:[#allocation5 + $0x230] sm:$0xff]
    %v210 = vld [vmem:[#allocation5 + $0x238] sm:$0xff]
    %v211 = vld [vmem:[#allocation5 + $0x240] sm:$0xff]
    %v212 = vld [vmem:[#allocation5 + $0x248] sm:$0xff]
    %v213 = vld [vmem:[#allocation5 + $0x250] sm:$0xff]
    %v214 = vld [vmem:[#allocation5 + $0x258] sm:$0xff]
    %v215 = vld [vmem:[#allocation5 + $0x260] sm:$0xff]
    %v216 = vld [vmem:[#allocation5 + $0x268] sm:$0xff]
    %v217 = vld [vmem:[#allocation5 + $0x270] sm:$0xff]
    %v218 = vld [vmem:[#allocation5 + $0x278] sm:$0xff]
    %v219 = vld [vmem:[#allocation5 + $0x280] sm:$0xff]
    %v220 = vld [vmem:[#allocation5 + $0x288] sm:$0xff]
    %v221 = vld [vmem:[#allocation5 + $0x290] sm:$0xff]
    %v222 = vld [vmem:[#allocation5 + $0x298] sm:$0xff]
    %v223 = vld [vmem:[#allocation5 + $0x2a0] sm:$0xff]
    %v224 = vld [vmem:[#allocation5 + $0x2a8] sm:$0xff]
    %v225 = vld [vmem:[#allocation5 + $0x2b0] sm:$0xff]
    %v226 = vld [vmem:[#allocation5 + $0x2b8] sm:$0xff]
    %v227 = vld [vmem:[#allocation5 + $0x2c0] sm:$0xff]
    %v228 = vld [vmem:[#allocation5 + $0x2c8] sm:$0xff]
    %v229 = vld [vmem:[#allocation5 + $0x2d0] sm:$0xff]
    %v230 = vld [vmem:[#allocation5 + $0x2d8] sm:$0xff]
    %v231 = vld [vmem:[#allocation5 + $0x2e0] sm:$0xff]
    %v232 = vld [vmem:[#allocation5 + $0x2e8] sm:$0xff]
    %v233 = vld [vmem:[#allocation5 + $0x2f0] sm:$0xff]
    %v234 = vld [vmem:[#allocation5 + $0x2f8] sm:$0xff]
    %v235 = vld [vmem:[#allocation5 + $0x300] sm:$0xff]
    %v236 = vld [vmem:[#allocation5 + $0x308] sm:$0xff]
    %v237 = vld [vmem:[#allocation5 + $0x310] sm:$0xff]
    %v238 = vld [vmem:[#allocation5 + $0x318] sm:$0xff]
    %v239 = vld [vmem:[#allocation5 + $0x320] sm:$0xff]
    %v240 = vld [vmem:[#allocation5 + $0x328] sm:$0xff]
    %v241 = vld [vmem:[#allocation5 + $0x330] sm:$0xff]
    %v242 = vld [vmem:[#allocation5 + $0x338] sm:$0xff]
    %v243 = vld [vmem:[#allocation5 + $0x340] sm:$0xff]
    %v244 = vld [vmem:[#allocation5 + $0x348] sm:$0xff]
    %v245 = vld [vmem:[#allocation5 + $0x350] sm:$0xff]
    %v246 = vld [vmem:[#allocation5 + $0x358] sm:$0xff]
    %v247 = vld [vmem:[#allocation5 + $0x360] sm:$0xff]
    %v248 = vld [vmem:[#allocation5 + $0x368] sm:$0xff]
    %v249 = vld [vmem:[#allocation5 + $0x370] sm:$0xff]
    %v250 = vld [vmem:[#allocation5 + $0x378] sm:$0xff]
    %v251 = vld [vmem:[#allocation5 + $0x380] sm:$0xff]
    %v252 = vld [vmem:[#allocation5 + $0x388] sm:$0xff]
    %v253 = vld [vmem:[#allocation5 + $0x390] sm:$0xff]
    %v254 = vld [vmem:[#allocation5 + $0x398] sm:$0xff]
    %v255 = vld [vmem:[#allocation5 + $0x3a0] sm:$0xff]
    %v256 = vld [vmem:[#allocation5 + $0x3a8] sm:$0xff]
    %v257 = vld [vmem:[#allocation5 + $0x3b0] sm:$0xff]
    %v258 = vld [vmem:[#allocation5 + $0x3b8] sm:$0xff]
    %v259 = vld [vmem:[#allocation5 + $0x3c0] sm:$0xff]
    %v260 = vld [vmem:[#allocation5 + $0x3c8] sm:$0xff]
    %v261 = vld [vmem:[#allocation5 + $0x3d0] sm:$0xff]
    %v262 = vld [vmem:[#allocation5 + $0x3d8] sm:$0xff]
    %v263 = vld [vmem:[#allocation5 + $0x3e0] sm:$0xff]
    %v264 = vld [vmem:[#allocation5 + $0x3e8] sm:$0xff]
    %v265 = vld [vmem:[#allocation5 + $0x3f0] sm:$0xff]
    %v266 = vld [vmem:[#allocation5 + $0x3f8] sm:$0xff]
    %v267 = vld [vmem:[%s7] sm:$0xf]
    %v269 = vrot.slane %v64, 7
    %vm271 = vcmask 1040384
    %v272 = vsel %vm271, 0.0, %v269
    %v273 = vrot.slane %v64, 1
    %vm275 = vcmask 1046528
    %v276 = vsel %vm275, %v273, 0.0
    %vm277 = vcmask 31744
    %v278 = vsel %vm277, %v64, 0
    %vm280 = vcmask 1043456
    %v282 = vsel %vm280, %v67, 0
    %284 = vmatprep.subr.mxu0 0.0
    %285 = vmatpush1.msra.mxu0 %v282
    %286 = vmatprep.subr.mxu0 0.0
    %287 = vmatpush1.msra.mxu0 0.0
    %288 = vmatprep.subr.mxu0 0.0
    %289 = vmatpush1.msra.mxu0 0.0
    %290 = vmatprep.subr.mxu0 0.0
    %291 = vmatpush1.msra.mxu0 0.0
    %292 = vmatprep.subr.mxu0 0.0
    %293 = vmatpush1.msra.mxu0 0.0
    %294 = vmatprep.subr.mxu0 0.0
    %295 = vmatpush1.msra.mxu0 0.0
    %296 = vmatprep.subr.mxu0 0.0
    %297 = vmatpush1.msra.mxu0 0.0
    %298 = vmatprep.subr.mxu0 0.0
    %299 = vmatpush1.msra.mxu0 0.0
    %300 = vmatprep.subr.mxu0 0.0
    %301 = vmatpush1.msra.mxu0 0.0
    %302 = vmatprep.subr.mxu0 0.0
    %303 = vmatpush1.msra.mxu0 0.0
    %304 = vmatprep.subr.mxu0 0.0
    %305 = vmatpush1.msra.mxu0 0.0
    %306 = vmatprep.subr.mxu0 0.0
    %307 = vmatpush1.msra.mxu0 0.0
    %308 = vmatprep.subr.mxu0 0.0
    %309 = vmatpush1.msra.mxu0 0.0
    %310 = vmatprep.subr.mxu0 0.0
    %311 = vmatpush1.msra.mxu0 0.0
    %312 = vmatprep.subr.mxu0 0.0
    %313 = vmatpush1.msra.mxu0 0.0
    %314 = vmatprep.subr.mxu0 0.0
    %315 = vmatpush1.msra.mxu0 0.0
    %316 = vmatprep.subr.mxu0 0.0
    %317 = vmatpush1.msra.mxu0 0.0
    %318 = vmatprep.subr.mxu0 0.0
    %319 = vmatpush1.msra.mxu0 0.0
    %320 = vmatprep.subr.mxu0 0.0
    %321 = vmatpush1.msra.mxu0 0.0
    %322 = vmatprep.subr.mxu0 0.0
    %323 = vmatpush1.msra.mxu0 0.0
    %324 = vmatprep.subr.mxu0 0.0
    %325 = vmatpush1.msra.mxu0 0.0
    %326 = vmatprep.subr.mxu0 0.0
    %327 = vmatpush1.msra.mxu0 0.0
    %328 = vmatprep.subr.mxu0 0.0
    %329 = vmatpush1.msra.mxu0 0.0
    %330 = vmatprep.subr.mxu0 0.0
    %331 = vmatpush1.msra.mxu0 0.0
    %332 = vmatprep.subr.mxu0 0.0
    %333 = vmatpush1.msra.mxu0 0.0
    %334 = vmatprep.subr.mxu0 0.0
    %335 = vmatpush1.msra.mxu0 0.0
    %336 = vmatprep.subr.mxu0 0.0
    %337 = vmatpush1.msra.mxu0 0.0
    %338 = vmatprep.subr.mxu0 0.0
    %339 = vmatpush1.msra.mxu0 0.0
    %340 = vmatprep.subr.mxu0 0.0
    %341 = vmatpush1.msra.mxu0 0.0
    %342 = vmatprep.subr.mxu0 0.0
    %343 = vmatpush1.msra.mxu0 0.0
    %344 = vmatprep.subr.mxu0 0.0
    %345 = vmatpush1.msra.mxu0 0.0
    %346 = vmatprep.subr.mxu0 0.0
    %347 = vmatpush1.msra.mxu0 0.0
    %348 = vmatprep.mubr.f32.mxu0 0.0
    %349 = vmatmul.mubr.f32.gmra.mrb[0].mxu0 %v278
    %v350 = vpop.f32.mrb[0].mxu0
    %v351 = vadd.f32 0.0, %v350
    %v352 = vpop.f32.mrb[0].mxu0
    %353 = vdwg.mxu0
    %v355 = vsel %vm277, %v272, 0
    %v358 = vsel %vm280, %v66, 0
    %360 = vmatprep.subr.mxu0 0.0
    %361 = vmatpush1.msra.mxu0 %v358
    %362 = vmatprep.subr.mxu0 0.0
    %363 = vmatpush1.msra.mxu0 0.0
    %364 = vmatprep.subr.mxu0 0.0
    %365 = vmatpush1.msra.mxu0 0.0
    %366 = vmatprep.subr.mxu0 0.0
    %367 = vmatpush1.msra.mxu0 0.0
    %368 = vmatprep.subr.mxu0 0.0
    %369 = vmatpush1.msra.mxu0 0.0
    %370 = vmatprep.subr.mxu0 0.0
    %371 = vmatpush1.msra.mxu0 0.0
    %372 = vmatprep.subr.mxu0 0.0
    %373 = vmatpush1.msra.mxu0 0.0
    %374 = vmatprep.subr.mxu0 0.0
    %375 = vmatpush1.msra.mxu0 0.0
    %376 = vmatprep.subr.mxu0 0.0
    %377 = vmatpush1.msra.mxu0 0.0
    %378 = vmatprep.subr.mxu0 0.0
    %379 = vmatpush1.msra.mxu0 0.0
    %380 = vmatprep.subr.mxu0 0.0
    %381 = vmatpush1.msra.mxu0 0.0
    %382 = vmatprep.subr.mxu0 0.0
    %383 = vmatpush1.msra.mxu0 0.0
    %384 = vmatprep.subr.mxu0 0.0
    %385 = vmatpush1.msra.mxu0 0.0
    %386 = vmatprep.subr.mxu0 0.0
    %387 = vmatpush1.msra.mxu0 0.0
    %388 = vmatprep.subr.mxu0 0.0
    %389 = vmatpush1.msra.mxu0 0.0
    %390 = vmatprep.subr.mxu0 0.0
    %391 = vmatpush1.msra.mxu0 0.0
    %392 = vmatprep.subr.mxu0 0.0
    %393 = vmatpush1.msra.mxu0 0.0
    %394 = vmatprep.subr.mxu0 0.0
    %395 = vmatpush1.msra.mxu0 0.0
    %396 = vmatprep.subr.mxu0 0.0
    %397 = vmatpush1.msra.mxu0 0.0
    %398 = vmatprep.subr.mxu0 0.0
    %399 = vmatpush1.msra.mxu0 0.0
    %400 = vmatprep.subr.mxu0 0.0
    %401 = vmatpush1.msra.mxu0 0.0
    %402 = vmatprep.subr.mxu0 0.0
    %403 = vmatpush1.msra.mxu0 0.0
    %404 = vmatprep.subr.mxu0 0.0
    %405 = vmatpush1.msra.mxu0 0.0
    %406 = vmatprep.subr.mxu0 0.0
    %407 = vmatpush1.msra.mxu0 0.0
    %408 = vmatprep.subr.mxu0 0.0
    %409 = vmatpush1.msra.mxu0 0.0
    %410 = vmatprep.subr.mxu0 0.0
    %411 = vmatpush1.msra.mxu0 0.0
    %412 = vmatprep.subr.mxu0 0.0
    %413 = vmatpush1.msra.mxu0 0.0
    %414 = vmatprep.subr.mxu0 0.0
    %415 = vmatpush1.msra.mxu0 0.0
    %416 = vmatprep.subr.mxu0 0.0
    %417 = vmatpush1.msra.mxu0 0.0
    %418 = vmatprep.subr.mxu0 0.0
    %419 = vmatpush1.msra.mxu0 0.0
    %420 = vmatprep.subr.mxu0 0.0
    %421 = vmatpush1.msra.mxu0 0.0
    %422 = vmatprep.subr.mxu0 0.0
    %423 = vmatpush1.msra.mxu0 0.0
    %424 = vmatprep.mubr.f32.mxu0 0.0
    %425 = vmatmul.mubr.f32.gmra.mrb[0].mxu0 %v355
    %v426 = vpop.f32.mrb[0].mxu0
    %v427 = vadd.f32 %v351, %v426
    %v428 = vpop.f32.mrb[0].mxu0
    %429 = vdwg.mxu0
    %v431 = vsel %vm277, %v276, 0
    %v434 = vsel %vm280, %v68, 0
    %436 = vmatprep.subr.mxu0 0.0
    %437 = vmatpush1.msra.mxu0 %v434
    %438 = vmatprep.subr.mxu0 0.0
    %439 = vmatpush1.msra.mxu0 0.0
    %440 = vmatprep.subr.mxu0 0.0
    %441 = vmatpush1.msra.mxu0 0.0
    %442 = vmatprep.subr.mxu0 0.0
    %443 = vmatpush1.msra.mxu0 0.0
    %444 = vmatprep.subr.mxu0 0.0
    %445 = vmatpush1.msra.mxu0 0.0
    %446 = vmatprep.subr.mxu0 0.0
    %447 = vmatpush1.msra.mxu0 0.0
    %448 = vmatprep.subr.mxu0 0.0
    %449 = vmatpush1.msra.mxu0 0.0
    %450 = vmatprep.subr.mxu0 0.0
    %451 = vmatpush1.msra.mxu0 0.0
    %452 = vmatprep.subr.mxu0 0.0
    %453 = vmatpush1.msra.mxu0 0.0
    %454 = vmatprep.subr.mxu0 0.0
    %455 = vmatpush1.msra.mxu0 0.0
    %456 = vmatprep.subr.mxu0 0.0
    %457 = vmatpush1.msra.mxu0 0.0
    %458 = vmatprep.subr.mxu0 0.0
    %459 = vmatpush1.msra.mxu0 0.0
    %460 = vmatprep.subr.mxu0 0.0
    %461 = vmatpush1.msra.mxu0 0.0
    %462 = vmatprep.subr.mxu0 0.0
    %463 = vmatpush1.msra.mxu0 0.0
    %464 = vmatprep.subr.mxu0 0.0
    %465 = vmatpush1.msra.mxu0 0.0
    %466 = vmatprep.subr.mxu0 0.0
    %467 = vmatpush1.msra.mxu0 0.0
    %468 = vmatprep.subr.mxu0 0.0
    %469 = vmatpush1.msra.mxu0 0.0
    %470 = vmatprep.subr.mxu0 0.0
    %471 = vmatpush1.msra.mxu0 0.0
    %472 = vmatprep.subr.mxu0 0.0
    %473 = vmatpush1.msra.mxu0 0.0
    %474 = vmatprep.subr.mxu0 0.0
    %475 = vmatpush1.msra.mxu0 0.0
    %476 = vmatprep.subr.mxu0 0.0
    %477 = vmatpush1.msra.mxu0 0.0
    %478 = vmatprep.subr.mxu0 0.0
    %479 = vmatpush1.msra.mxu0 0.0
    %480 = vmatprep.subr.mxu0 0.0
    %481 = vmatpush1.msra.mxu0 0.0
    %482 = vmatprep.subr.mxu0 0.0
    %483 = vmatpush1.msra.mxu0 0.0
    %484 = vmatprep.subr.mxu0 0.0
    %485 = vmatpush1.msra.mxu0 0.0
    %486 = vmatprep.subr.mxu0 0.0
    %487 = vmatpush1.msra.mxu0 0.0
    %488 = vmatprep.subr.mxu0 0.0
    %489 = vmatpush1.msra.mxu0 0.0
    %490 = vmatprep.subr.mxu0 0.0
    %491 = vmatpush1.msra.mxu0 0.0
    %492 = vmatprep.subr.mxu0 0.0
    %493 = vmatpush1.msra.mxu0 0.0
    %494 = vmatprep.subr.mxu0 0.0
    %495 = vmatpush1.msra.mxu0 0.0
    %496 = vmatprep.subr.mxu0 0.0
    %497 = vmatpush1.msra.mxu0 0.0
    %498 = vmatprep.subr.mxu0 0.0
    %499 = vmatpush1.msra.mxu0 0.0
    %500 = vmatprep.mubr.f32.mxu0 0.0
    %501 = vmatmul.mubr.f32.gmra.mrb[0].mxu0 %v431
    %v502 = vpop.f32.mrb[0].mxu0
    %v503 = vadd.f32 0.0, %v502
    %v504 = vpop.f32.mrb[0].mxu0
    %505 = vdwg.mxu0
    %v506 = vadd.f32 %v427, %v503
    %v508 = vlaneseq
    %v509 = vshrl.u32 %v508, 7
    %v510 = vsub.s32 0, %v509
    %v511 = vrot.slane %v69, %v510
    %v513 = vadd.f32 %v506, %v511
    %v514 = vmax.f32 %v513, 0.0
    %v516 = vlaneseq
    %v517 = vshrl.u32 %v516, 7
    %v518 = vsub.s32 0, %v517
    %v519 = vrot.slane %v138, %v518
    %v520 = vlaneseq
    %v521 = vshrl.u32 %v520, 7
    %v522 = vsub.s32 1, %v521
    %v523 = vrot.slane %v138, %v522
    %v524 = vlaneseq
    %v525 = vshrl.u32 %v524, 7
    %v526 = vsub.s32 2, %v525
    %v527 = vrot.slane %v138, %v526
    %v528 = vlaneseq
    %v529 = vshrl.u32 %v528, 7
    %v530 = vsub.s32 3, %v529
    %v531 = vrot.slane %v138, %v530
    %vm536 = vcmask 64512
    %v538 = vsel %vm536, %v514, 0
    %540 = vmatprep.subr.mxu0 %v71
    %541 = vmatpush1.msra.mxu0 %v70
    %542 = vmatprep.subr.mxu0 0.0
    %543 = vmatpush1.msra.mxu0 0.0
    %544 = vmatprep.subr.mxu0 0.0
    %545 = vmatpush1.msra.mxu0 0.0
    %546 = vmatprep.subr.mxu0 0.0
    %547 = vmatpush1.msra.mxu0 0.0
    %548 = vmatprep.subr.mxu0 0.0
    %549 = vmatpush1.msra.mxu0 0.0
    %550 = vmatprep.subr.mxu0 0.0
    %551 = vmatpush1.msra.mxu0 0.0
    %552 = vmatprep.subr.mxu0 0.0
    %553 = vmatpush1.msra.mxu0 0.0
    %554 = vmatprep.subr.mxu0 0.0
    %555 = vmatpush1.msra.mxu0 0.0
    %556 = vmatprep.subr.mxu0 0.0
    %557 = vmatpush1.msra.mxu0 0.0
    %558 = vmatprep.subr.mxu0 0.0
    %559 = vmatpush1.msra.mxu0 0.0
    %560 = vmatprep.subr.mxu0 0.0
    %561 = vmatpush1.msra.mxu0 0.0
    %562 = vmatprep.subr.mxu0 0.0
    %563 = vmatpush1.msra.mxu0 0.0
    %564 = vmatprep.subr.mxu0 0.0
    %565 = vmatpush1.msra.mxu0 0.0
    %566 = vmatprep.subr.mxu0 0.0
    %567 = vmatpush1.msra.mxu0 0.0
    %568 = vmatprep.subr.mxu0 0.0
    %569 = vmatpush1.msra.mxu0 0.0
    %570 = vmatprep.subr.mxu0 0.0
    %571 = vmatpush1.msra.mxu0 0.0
    %572 = vmatprep.subr.mxu0 0.0
    %573 = vmatpush1.msra.mxu0 0.0
    %574 = vmatprep.subr.mxu0 0.0
    %575 = vmatpush1.msra.mxu0 0.0
    %576 = vmatprep.subr.mxu0 0.0
    %577 = vmatpush1.msra.mxu0 0.0
    %578 = vmatprep.subr.mxu0 0.0
    %579 = vmatpush1.msra.mxu0 0.0
    %580 = vmatprep.subr.mxu0 0.0
    %581 = vmatpush1.msra.mxu0 0.0
    %582 = vmatprep.subr.mxu0 0.0
    %583 = vmatpush1.msra.mxu0 0.0
    %584 = vmatprep.subr.mxu0 0.0
    %585 = vmatpush1.msra.mxu0 0.0
    %586 = vmatprep.subr.mxu0 0.0
    %587 = vmatpush1.msra.mxu0 0.0
    %588 = vmatprep.subr.mxu0 0.0
    %589 = vmatpush1.msra.mxu0 0.0
    %590 = vmatprep.subr.mxu0 0.0
    %591 = vmatpush1.msra.mxu0 0.0
    %592 = vmatprep.subr.mxu0 0.0
    %593 = vmatpush1.msra.mxu0 0.0
    %594 = vmatprep.subr.mxu0 0.0
    %595 = vmatpush1.msra.mxu0 0.0
    %596 = vmatprep.subr.mxu0 0.0
    %597 = vmatpush1.msra.mxu0 0.0
    %598 = vmatprep.subr.mxu0 0.0
    %599 = vmatpush1.msra.mxu0 0.0
    %600 = vmatprep.subr.mxu0 0.0
    %601 = vmatpush1.msra.mxu0 0.0
    %602 = vmatprep.subr.mxu0 0.0
    %603 = vmatpush1.msra.mxu0 0.0
    %604 = vmatprep.mubr.f32.mxu0 0.0
    %605 = vmatmul.mubr.f32.gmra.mrb[0].mxu0 %v538
    %v606 = vpop.f32.mrb[0].mxu0
    %v607 = vadd.f32 %v519, %v606
    %v608 = vpop.f32.mrb[0].mxu0
    %v609 = vadd.f32 %v523, %v608
    %610 = vdwg.mxu0
    %611 = vmatprep.subr.mxu0 %v73
    %612 = vmatpush1.msra.mxu0 %v72
    %613 = vmatprep.subr.mxu0 0.0
    %614 = vmatpush1.msra.mxu0 0.0
    %615 = vmatprep.subr.mxu0 0.0
    %616 = vmatpush1.msra.mxu0 0.0
    %617 = vmatprep.subr.mxu0 0.0
    %618 = vmatpush1.msra.mxu0 0.0
    %619 = vmatprep.subr.mxu0 0.0
    %620 = vmatpush1.msra.mxu0 0.0
    %621 = vmatprep.subr.mxu0 0.0
    %622 = vmatpush1.msra.mxu0 0.0
    %623 = vmatprep.subr.mxu0 0.0
    %624 = vmatpush1.msra.mxu0 0.0
    %625 = vmatprep.subr.mxu0 0.0
    %626 = vmatpush1.msra.mxu0 0.0
    %627 = vmatprep.subr.mxu0 0.0
    %628 = vmatpush1.msra.mxu0 0.0
    %629 = vmatprep.subr.mxu0 0.0
    %630 = vmatpush1.msra.mxu0 0.0
    %631 = vmatprep.subr.mxu0 0.0
    %632 = vmatpush1.msra.mxu0 0.0
    %633 = vmatprep.subr.mxu0 0.0
    %634 = vmatpush1.msra.mxu0 0.0
    %635 = vmatprep.subr.mxu0 0.0
    %636 = vmatpush1.msra.mxu0 0.0
    %637 = vmatprep.subr.mxu0 0.0
    %638 = vmatpush1.msra.mxu0 0.0
    %639 = vmatprep.subr.mxu0 0.0
    %640 = vmatpush1.msra.mxu0 0.0
    %641 = vmatprep.subr.mxu0 0.0
    %642 = vmatpush1.msra.mxu0 0.0
    %643 = vmatprep.subr.mxu0 0.0
    %644 = vmatpush1.msra.mxu0 0.0
    %645 = vmatprep.subr.mxu0 0.0
    %646 = vmatpush1.msra.mxu0 0.0
    %647 = vmatprep.subr.mxu0 0.0
    %648 = vmatpush1.msra.mxu0 0.0
    %649 = vmatprep.subr.mxu0 0.0
    %650 = vmatpush1.msra.mxu0 0.0
    %651 = vmatprep.subr.mxu0 0.0
    %652 = vmatpush1.msra.mxu0 0.0
    %653 = vmatprep.subr.mxu0 0.0
    %654 = vmatpush1.msra.mxu0 0.0
    %655 = vmatprep.subr.mxu0 0.0
    %656 = vmatpush1.msra.mxu0 0.0
    %657 = vmatprep.subr.mxu0 0.0
    %658 = vmatpush1.msra.mxu0 0.0
    %659 = vmatprep.subr.mxu0 0.0
    %660 = vmatpush1.msra.mxu0 0.0
    %661 = vmatprep.subr.mxu0 0.0
    %662 = vmatpush1.msra.mxu0 0.0
    %663 = vmatprep.subr.mxu0 0.0
    %664 = vmatpush1.msra.mxu0 0.0
    %665 = vmatprep.subr.mxu0 0.0
    %666 = vmatpush1.msra.mxu0 0.0
    %667 = vmatprep.subr.mxu0 0.0
    %668 = vmatpush1.msra.mxu0 0.0
    %669 = vmatprep.subr.mxu0 0.0
    %670 = vmatpush1.msra.mxu0 0.0
    %671 = vmatprep.subr.mxu0 0.0
    %672 = vmatpush1.msra.mxu0 0.0
    %673 = vmatprep.subr.mxu0 0.0
    %674 = vmatpush1.msra.mxu0 0.0
    %675 = vmatprep.mubr.f32.mxu0 0.0
    %676 = vmatmul.mubr.f32.gmra.mrb[0].mxu0 %v538
    %v677 = vpop.f32.mrb[0].mxu0
    %v678 = vadd.f32 %v527, %v677
    %v679 = vpop.f32.mrb[0].mxu0
    %v680 = vadd.f32 %v531, %v679
    %681 = vdwg.mxu0
    %v683 = vrot.slane %v65, 7
    %v685 = vsel %vm271, 0.0, %v683
    %v686 = vrot.slane %v65, 1
    %v688 = vsel %vm275, %v686, 0.0
    %v689 = vsel %vm277, %v65, 0
    %691 = vmatprep.subr.mxu0 0.0
    %692 = vmatpush1.msra.mxu0 %v282
    %693 = vmatprep.subr.mxu0 0.0
    %694 = vmatpush1.msra.mxu0 0.0
    %695 = vmatprep.subr.mxu0 0.0
    %696 = vmatpush1.msra.mxu0 0.0
    %697 = vmatprep.subr.mxu0 0.0
    %698 = vmatpush1.msra.mxu0 0.0
    %699 = vmatprep.subr.mxu0 0.0
    %700 = vmatpush1.msra.mxu0 0.0
    %701 = vmatprep.subr.mxu0 0.0
    %702 = vmatpush1.msra.mxu0 0.0
    %703 = vmatprep.subr.mxu0 0.0
    %704 = vmatpush1.msra.mxu0 0.0
    %705 = vmatprep.subr.mxu0 0.0
    %706 = vmatpush1.msra.mxu0 0.0
    %707 = vmatprep.subr.mxu0 0.0
    %708 = vmatpush1.msra.mxu0 0.0
    %709 = vmatprep.subr.mxu0 0.0
    %710 = vmatpush1.msra.mxu0 0.0
    %711 = vmatprep.subr.mxu0 0.0
    %712 = vmatpush1.msra.mxu0 0.0
    %713 = vmatprep.subr.mxu0 0.0
    %714 = vmatpush1.msra.mxu0 0.0
    %715 = vmatprep.subr.mxu0 0.0
    %716 = vmatpush1.msra.mxu0 0.0
    %717 = vmatprep.subr.mxu0 0.0
    %718 = vmatpush1.msra.mxu0 0.0
    %719 = vmatprep.subr.mxu0 0.0
    %720 = vmatpush1.msra.mxu0 0.0
    %721 = vmatprep.subr.mxu0 0.0
    %722 = vmatpush1.msra.mxu0 0.0
    %723 = vmatprep.subr.mxu0 0.0
    %724 = vmatpush1.msra.mxu0 0.0
    %725 = vmatprep.subr.mxu0 0.0
    %726 = vmatpush1.msra.mxu0 0.0
    %727 = vmatprep.subr.mxu0 0.0
    %728 = vmatpush1.msra.mxu0 0.0
    %729 = vmatprep.subr.mxu0 0.0
    %730 = vmatpush1.msra.mxu0 0.0
    %731 = vmatprep.subr.mxu0 0.0
    %732 = vmatpush1.msra.mxu0 0.0
    %733 = vmatprep.subr.mxu0 0.0
    %734 = vmatpush1.msra.mxu0 0.0
    %735 = vmatprep.subr.mxu0 0.0
    %736 = vmatpush1.msra.mxu0 0.0
    %737 = vmatprep.subr.mxu0 0.0
    %738 = vmatpush1.msra.mxu0 0.0
    %739 = vmatprep.subr.mxu0 0.0
    %740 = vmatpush1.msra.mxu0 0.0
    %741 = vmatprep.subr.mxu0 0.0
    %742 = vmatpush1.msra.mxu0 0.0
    %743 = vmatprep.subr.mxu0 0.0
    %744 = vmatpush1.msra.mxu0 0.0
    %745 = vmatprep.subr.mxu0 0.0
    %746 = vmatpush1.msra.mxu0 0.0
    %747 = vmatprep.subr.mxu0 0.0
    %748 = vmatpush1.msra.mxu0 0.0
    %749 = vmatprep.subr.mxu0 0.0
    %750 = vmatpush1.msra.mxu0 0.0
    %751 = vmatprep.subr.mxu0 0.0
    %752 = vmatpush1.msra.mxu0 0.0
    %753 = vmatprep.subr.mxu0 0.0
    %754 = vmatpush1.msra.mxu0 0.0
    %755 = vmatprep.mubr.f32.mxu0 0.0
    %756 = vmatmul.mubr.f32.gmra.mrb[0].mxu0 %v689
    %v757 = vpop.f32.mrb[0].mxu0
    %v758 = vadd.f32 0.0, %v757
    %v759 = vpop.f32.mrb[0].mxu0
    %760 = vdwg.mxu0
    %v762 = vsel %vm277, %v685, 0
    %764 = vmatprep.subr.mxu0 0.0
    %765 = vmatpush1.msra.mxu0 %v358
    %766 = vmatprep.subr.mxu0 0.0
    %767 = vmatpush1.msra.mxu0 0.0
    %768 = vmatprep.subr.mxu0 0.0
    %769 = vmatpush1.msra.mxu0 0.0
    %770 = vmatprep.subr.mxu0 0.0
    %771 = vmatpush1.msra.mxu0 0.0
    %772 = vmatprep.subr.mxu0 0.0
    %773 = vmatpush1.msra.mxu0 0.0
    %774 = vmatprep.subr.mxu0 0.0
    %775 = vmatpush1.msra.mxu0 0.0
    %776 = vmatprep.subr.mxu0 0.0
    %777 = vmatpush1.msra.mxu0 0.0
    %778 = vmatprep.subr.mxu0 0.0
    %779 = vmatpush1.msra.mxu0 0.0
    %780 = vmatprep.subr.mxu0 0.0
    %781 = vmatpush1.msra.mxu0 0.0
    %782 = vmatprep.subr.mxu0 0.0
    %783 = vmatpush1.msra.mxu0 0.0
    %784 = vmatprep.subr.mxu0 0.0
    %785 = vmatpush1.msra.mxu0 0.0
    %786 = vmatprep.subr.mxu0 0.0
    %787 = vmatpush1.msra.mxu0 0.0
    %788 = vmatprep.subr.mxu0 0.0
    %789 = vmatpush1.msra.mxu0 0.0
    %790 = vmatprep.subr.mxu0 0.0
    %791 = vmatpush1.msra.mxu0 0.0
    %792 = vmatprep.subr.mxu0 0.0
    %793 = vmatpush1.msra.mxu0 0.0
    %794 = vmatprep.subr.mxu0 0.0
    %795 = vmatpush1.msra.mxu0 0.0
    %796 = vmatprep.subr.mxu0 0.0
    %797 = vmatpush1.msra.mxu0 0.0
    %798 = vmatprep.subr.mxu0 0.0
    %799 = vmatpush1.msra.mxu0 0.0
    %800 = vmatprep.subr.mxu0 0.0
    %801 = vmatpush1.msra.mxu0 0.0
    %802 = vmatprep.subr.mxu0 0.0
    %803 = vmatpush1.msra.mxu0 0.0
    %804 = vmatprep.subr.mxu0 0.0
    %805 = vmatpush1.msra.mxu0 0.0
    %806 = vmatprep.subr.mxu0 0.0
    %807 = vmatpush1.msra.mxu0 0.0
    %808 = vmatprep.subr.mxu0 0.0
    %809 = vmatpush1.msra.mxu0 0.0
    %810 = vmatprep.subr.mxu0 0.0
    %811 = vmatpush1.msra.mxu0 0.0
    %812 = vmatprep.subr.mxu0 0.0
    %813 = vmatpush1.msra.mxu0 0.0
    %814 = vmatprep.subr.mxu0 0.0
    %815 = vmatpush1.msra.mxu0 0.0
    %816 = vmatprep.subr.mxu0 0.0
    %817 = vmatpush1.msra.mxu0 0.0
    %818 = vmatprep.subr.mxu0 0.0
    %819 = vmatpush1.msra.mxu0 0.0
    %820 = vmatprep.subr.mxu0 0.0
    %821 = vmatpush1.msra.mxu0 0.0
    %822 = vmatprep.subr.mxu0 0.0
    %823 = vmatpush1.msra.mxu0 0.0
    %824 = vmatprep.subr.mxu0 0.0
    %825 = vmatpush1.msra.mxu0 0.0
    %826 = vmatprep.subr.mxu0 0.0
    %827 = vmatpush1.msra.mxu0 0.0
    %828 = vmatprep.mubr.f32.mxu0 0.0
    %829 = vmatmul.mubr.f32.gmra.mrb[0].mxu0 %v762
    %v830 = vpop.f32.mrb[0].mxu0
    %v831 = vadd.f32 %v758, %v830
    %v832 = vpop.f32.mrb[0].mxu0
    %833 = vdwg.mxu0
    %v835 = vsel %vm277, %v688, 0
    %837 = vmatprep.subr.mxu0 0.0
    %838 = vmatpush1.msra.mxu0 %v434
    %839 = vmatprep.subr.mxu0 0.0
    %840 = vmatpush1.msra.mxu0 0.0
    %841 = vmatprep.subr.mxu0 0.0
    %842 = vmatpush1.msra.mxu0 0.0
    %843 = vmatprep.subr.mxu0 0.0
    %844 = vmatpush1.msra.mxu0 0.0
    %845 = vmatprep.subr.mxu0 0.0
    %846 = vmatpush1.msra.mxu0 0.0
    %847 = vmatprep.subr.mxu0 0.0
    %848 = vmatpush1.msra.mxu0 0.0
    %849 = vmatprep.subr.mxu0 0.0
    %850 = vmatpush1.msra.mxu0 0.0
    %851 = vmatprep.subr.mxu0 0.0
    %852 = vmatpush1.msra.mxu0 0.0
    %853 = vmatprep.subr.mxu0 0.0
    %854 = vmatpush1.msra.mxu0 0.0
    %855 = vmatprep.subr.mxu0 0.0
    %856 = vmatpush1.msra.mxu0 0.0
    %857 = vmatprep.subr.mxu0 0.0
    %858 = vmatpush1.msra.mxu0 0.0
    %859 = vmatprep.subr.mxu0 0.0
    %860 = vmatpush1.msra.mxu0 0.0
    %861 = vmatprep.subr.mxu0 0.0
    %862 = vmatpush1.msra.mxu0 0.0
    %863 = vmatprep.subr.mxu0 0.0
    %864 = vmatpush1.msra.mxu0 0.0
    %865 = vmatprep.subr.mxu0 0.0
    %866 = vmatpush1.msra.mxu0 0.0
    %867 = vmatprep.subr.mxu0 0.0
    %868 = vmatpush1.msra.mxu0 0.0
    %869 = vmatprep.subr.mxu0 0.0
    %870 = vmatpush1.msra.mxu0 0.0
    %871 = vmatprep.subr.mxu0 0.0
    %872 = vmatpush1.msra.mxu0 0.0
    %873 = vmatprep.subr.mxu0 0.0
    %874 = vmatpush1.msra.mxu0 0.0
    %875 = vmatprep.subr.mxu0 0.0
    %876 = vmatpush1.msra.mxu0 0.0
    %877 = vmatprep.subr.mxu0 0.0
    %878 = vmatpush1.msra.mxu0 0.0
    %879 = vmatprep.subr.mxu0 0.0
    %880 = vmatpush1.msra.mxu0 0.0
    %881 = vmatprep.subr.mxu0 0.0
    %882 = vmatpush1.msra.mxu0 0.0
    %883 = vmatprep.subr.mxu0 0.0
    %884 = vmatpush1.msra.mxu0 0.0
    %885 = vmatprep.subr.mxu0 0.0
    %886 = vmatpush1.msra.mxu0 0.0
    %887 = vmatprep.subr.mxu0 0.0
    %888 = vmatpush1.msra.mxu0 0.0
    %889 = vmatprep.subr.mxu0 0.0
    %890 = vmatpush1.msra.mxu0 0.0
    %891 = vmatprep.subr.mxu0 0.0
    %892 = vmatpush1.msra.mxu0 0.0
    %893 = vmatprep.subr.mxu0 0.0
    %894 = vmatpush1.msra.mxu0 0.0
    %895 = vmatprep.subr.mxu0 0.0
    %896 = vmatpush1.msra.mxu0 0.0
    %897 = vmatprep.subr.mxu0 0.0
    %898 = vmatpush1.msra.mxu0 0.0
    %899 = vmatprep.subr.mxu0 0.0
    %900 = vmatpush1.msra.mxu0 0.0
    %901 = vmatprep.mubr.f32.mxu0 0.0
    %902 = vmatmul.mubr.f32.gmra.mrb[0].mxu0 %v835
    %v903 = vpop.f32.mrb[0].mxu0
    %v904 = vadd.f32 0.0, %v903
    %v905 = vpop.f32.mrb[0].mxu0
    %906 = vdwg.mxu0
    %v907 = vadd.f32 %v831, %v904
    %v908 = vadd.f32 %v907, %v511
    %v909 = vmax.f32 %v908, 0.0
    %v911 = vsel %vm536, %v909, 0
    %913 = vmatprep.subr.mxu0 %v71
    %914 = vmatpush1.msra.mxu0 %v70
    %915 = vmatprep.subr.mxu0 0.0
    %916 = vmatpush1.msra.mxu0 0.0
    %917 = vmatprep.subr.mxu0 0.0
    %918 = vmatpush1.msra.mxu0 0.0
    %919 = vmatprep.subr.mxu0 0.0
    %920 = vmatpush1.msra.mxu0 0.0
    %921 = vmatprep.subr.mxu0 0.0
    %922 = vmatpush1.msra.mxu0 0.0
    %923 = vmatprep.subr.mxu0 0.0
    %924 = vmatpush1.msra.mxu0 0.0
    %925 = vmatprep.subr.mxu0 0.0
    %926 = vmatpush1.msra.mxu0 0.0
    %927 = vmatprep.subr.mxu0 0.0
    %928 = vmatpush1.msra.mxu0 0.0
    %929 = vmatprep.subr.mxu0 0.0
    %930 = vmatpush1.msra.mxu0 0.0
    %931 = vmatprep.subr.mxu0 0.0
    %932 = vmatpush1.msra.mxu0 0.0
    %933 = vmatprep.subr.mxu0 0.0
    %934 = vmatpush1.msra.mxu0 0.0
    %935 = vmatprep.subr.mxu0 0.0
    %936 = vmatpush1.msra.mxu0 0.0
    %937 = vmatprep.subr.mxu0 0.0
    %938 = vmatpush1.msra.mxu0 0.0
    %939 = vmatprep.subr.mxu0 0.0
    %940 = vmatpush1.msra.mxu0 0.0
    %941 = vmatprep.subr.mxu0 0.0
    %942 = vmatpush1.msra.mxu0 0.0
    %943 = vmatprep.subr.mxu0 0.0
    %944 = vmatpush1.msra.mxu0 0.0
    %945 = vmatprep.subr.mxu0 0.0
    %946 = vmatpush1.msra.mxu0 0.0
    %947 = vmatprep.subr.mxu0 0.0
    %948 = vmatpush1.msra.mxu0 0.0
    %949 = vmatprep.subr.mxu0 0.0
    %950 = vmatpush1.msra.mxu0 0.0
    %951 = vmatprep.subr.mxu0 0.0
    %952 = vmatpush1.msra.mxu0 0.0
    %953 = vmatprep.subr.mxu0 0.0
    %954 = vmatpush1.msra.mxu0 0.0
    %955 = vmatprep.subr.mxu0 0.0
    %956 = vmatpush1.msra.mxu0 0.0
    %957 = vmatprep.subr.mxu0 0.0
    %958 = vmatpush1.msra.mxu0 0.0
    %959 = vmatprep.subr.mxu0 0.0
    %960 = vmatpush1.msra.mxu0 0.0
    %961 = vmatprep.subr.mxu0 0.0
    %962 = vmatpush1.msra.mxu0 0.0
    %963 = vmatprep.subr.mxu0 0.0
    %964 = vmatpush1.msra.mxu0 0.0
    %965 = vmatprep.subr.mxu0 0.0
    %966 = vmatpush1.msra.mxu0 0.0
    %967 = vmatprep.subr.mxu0 0.0
    %968 = vmatpush1.msra.mxu0 0.0
    %969 = vmatprep.subr.mxu0 0.0
    %970 = vmatpush1.msra.mxu0 0.0
    %971 = vmatprep.subr.mxu0 0.0
    %972 = vmatpush1.msra.mxu0 0.0
    %973 = vmatprep.subr.mxu0 0.0
    %974 = vmatpush1.msra.mxu0 0.0
    %975 = vmatprep.subr.mxu0 0.0
    %976 = vmatpush1.msra.mxu0 0.0
    %977 = vmatprep.mubr.f32.mxu0 0.0
    %978 = vmatmul.mubr.f32.gmra.mrb[0].mxu0 %v911
    %v979 = vpop.f32.mrb[0].mxu0
    %v980 = vadd.f32 %v519, %v979
    %v981 = vpop.f32.mrb[0].mxu0
    %v982 = vadd.f32 %v523, %v981
    %983 = vdwg.mxu0
    %984 = vmatprep.subr.mxu0 %v73
    %985 = vmatpush1.msra.mxu0 %v72
    %986 = vmatprep.subr.mxu0 0.0
    %987 = vmatpush1.msra.mxu0 0.0
    %988 = vmatprep.subr.mxu0 0.0
    %989 = vmatpush1.msra.mxu0 0.0
    %990 = vmatprep.subr.mxu0 0.0
    %991 = vmatpush1.msra.mxu0 0.0
    %992 = vmatprep.subr.mxu0 0.0
    %993 = vmatpush1.msra.mxu0 0.0
    %994 = vmatprep.subr.mxu0 0.0
    %995 = vmatpush1.msra.mxu0 0.0
    %996 = vmatprep.subr.mxu0 0.0
    %997 = vmatpush1.msra.mxu0 0.0
    %998 = vmatprep.subr.mxu0 0.0
    %999 = vmatpush1.msra.mxu0 0.0
    %1000 = vmatprep.subr.mxu0 0.0
    %1001 = vmatpush1.msra.mxu0 0.0
    %1002 = vmatprep.subr.mxu0 0.0
    %1003 = vmatpush1.msra.mxu0 0.0
    %1004 = vmatprep.subr.mxu0 0.0
    %1005 = vmatpush1.msra.mxu0 0.0
    %1006 = vmatprep.subr.mxu0 0.0
    %1007 = vmatpush1.msra.mxu0 0.0
    %1008 = vmatprep.subr.mxu0 0.0
    %1009 = vmatpush1.msra.mxu0 0.0
    %1010 = vmatprep.subr.mxu0 0.0
    %1011 = vmatpush1.msra.mxu0 0.0
    %1012 = vmatprep.subr.mxu0 0.0
    %1013 = vmatpush1.msra.mxu0 0.0
    %1014 = vmatprep.subr.mxu0 0.0
    %1015 = vmatpush1.msra.mxu0 0.0
    %1016 = vmatprep.subr.mxu0 0.0
    %1017 = vmatpush1.msra.mxu0 0.0
    %1018 = vmatprep.subr.mxu0 0.0
    %1019 = vmatpush1.msra.mxu0 0.0
    %1020 = vmatprep.subr.mxu0 0.0
    %1021 = vmatpush1.msra.mxu0 0.0
    %1022 = vmatprep.subr.mxu0 0.0
    %1023 = vmatpush1.msra.mxu0 0.0
    %1024 = vmatprep.subr.mxu0 0.0
    %1025 = vmatpush1.msra.mxu0 0.0
    %1026 = vmatprep.subr.mxu0 0.0
    %1027 = vmatpush1.msra.mxu0 0.0
    %1028 = vmatprep.subr.mxu0 0.0
    %1029 = vmatpush1.msra.mxu0 0.0
    %1030 = vmatprep.subr.mxu0 0.0
    %1031 = vmatpush1.msra.mxu0 0.0
    %1032 = vmatprep.subr.mxu0 0.0
    %1033 = vmatpush1.msra.mxu0 0.0
    %1034 = vmatprep.subr.mxu0 0.0
    %1035 = vmatpush1.msra.mxu0 0.0
    %1036 = vmatprep.subr.mxu0 0.0
    %1037 = vmatpush1.msra.mxu0 0.0
    %1038 = vmatprep.subr.mxu0 0.0
    %1039 = vmatpush1.msra.mxu0 0.0
    %1040 = vmatprep.subr.mxu0 0.0
    %1041 = vmatpush1.msra.mxu0 0.0
    %1042 = vmatprep.subr.mxu0 0.0
    %1043 = vmatpush1.msra.mxu0 0.0
    %1044 = vmatprep.subr.mxu0 0.0
    %1045 = vmatpush1.msra.mxu0 0.0
    %1046 = vmatprep.subr.mxu0 0.0
    %1047 = vmatpush1.msra.mxu0 0.0
    %1048 = vmatprep.mubr.f32.mxu0 0.0
    %1049 = vmatmul.mubr.f32.gmra.mrb[0].mxu0 %v911
    %v1050 = vpop.f32.mrb[0].mxu0
    %v1051 = vadd.f32 %v527, %v1050
    %v1052 = vpop.f32.mrb[0].mxu0
    %v1053 = vadd.f32 %v531, %v1052
    %1054 = vdwg.mxu0
    %v1059 = vrot.slane %v980, 7
    %v1060 = vrot.slane %v982, 7
    %v1061 = vrot.slane %v1051, 7
    %v1062 = vrot.slane %v1053, 7
    %v1067 = vsel %vm271, %v607, %v1059
    %v1068 = vsel %vm271, %v609, %v1060
    %v1069 = vsel %vm271, %v678, %v1061
    %v1070 = vsel %vm271, %v680, %v1062
    %v1075 = vrot.slane %v607, 1
    %v1076 = vrot.slane %v609, 1
    %v1077 = vrot.slane %v678, 1
    %v1078 = vrot.slane %v680, 1
    %v1083 = vsel %vm271, %v1075, %v980
    %v1084 = vsel %vm271, %v1076, %v982
    %v1085 = vsel %vm271, %v1077, %v1051
    %v1086 = vsel %vm271, %v1078, %v1053
    %v1087 = vrot.slane %v607, 2
    %v1088 = vrot.slane %v609, 2
    %v1089 = vrot.slane %v678, 2
    %v1090 = vrot.slane %v680, 2
    %v1095 = vrot.slane %v980, 1
    %v1096 = vrot.slane %v982, 1
    %v1097 = vrot.slane %v1051, 1
    %v1098 = vrot.slane %v1053, 1
    %v1103 = vsel %vm271, %v1087, %v1095
    %v1104 = vsel %vm271, %v1088, %v1096
    %v1105 = vsel %vm271, %v1089, %v1097
    %v1106 = vsel %vm271, %v1090, %v1098
    %v1107 = vrot.slane %v607, 3
    %v1108 = vrot.slane %v609, 3
    %v1109 = vrot.slane %v678, 3
    %v1110 = vrot.slane %v680, 3
    %v1115 = vrot.slane %v980, 2
    %v1116 = vrot.slane %v982, 2
    %v1117 = vrot.slane %v1051, 2
    %v1118 = vrot.slane %v1053, 2
    %v1123 = vsel %vm271, %v1107, %v1115
    %v1124 = vsel %vm271, %v1108, %v1116
    %v1125 = vsel %vm271, %v1109, %v1117
    %v1126 = vsel %vm271, %v1110, %v1118
    %v1127 = vrot.slane %v607, 4
    %v1128 = vrot.slane %v609, 4
    %v1129 = vrot.slane %v678, 4
    %v1130 = vrot.slane %v680, 4
    %v1135 = vrot.slane %v980, 3
    %v1136 = vrot.slane %v982, 3
    %v1137 = vrot.slane %v1051, 3
    %v1138 = vrot.slane %v1053, 3
    %v1143 = vsel %vm271, %v1127, %v1135
    %v1144 = vsel %vm271, %v1128, %v1136
    %v1145 = vsel %vm271, %v1129, %v1137
    %v1146 = vsel %vm271, %v1130, %v1138
    %v1147 = vrot.slane %v607, 5
    %v1148 = vrot.slane %v609, 5
    %v1149 = vrot.slane %v678, 5
    %v1150 = vrot.slane %v680, 5
    %v1155 = vrot.slane %v980, 4
    %v1156 = vrot.slane %v982, 4
    %v1157 = vrot.slane %v1051, 4
    %v1158 = vrot.slane %v1053, 4
    %v1163 = vsel %vm271, %v1147, %v1155
    %v1164 = vsel %vm271, %v1148, %v1156
    %v1165 = vsel %vm271, %v1149, %v1157
    %v1166 = vsel %vm271, %v1150, %v1158
    %v1167 = vrot.slane %v607, 6
    %v1168 = vrot.slane %v609, 6
    %v1169 = vrot.slane %v678, 6
    %v1170 = vrot.slane %v680, 6
    %v1175 = vrot.slane %v980, 5
    %v1176 = vrot.slane %v982, 5
    %v1177 = vrot.slane %v1051, 5
    %v1178 = vrot.slane %v1053, 5
    %v1183 = vsel %vm271, %v1167, %v1175
    %v1184 = vsel %vm271, %v1168, %v1176
    %v1185 = vsel %vm271, %v1169, %v1177
    %v1186 = vsel %vm271, %v1170, %v1178
    %v1187 = vrot.slane %v607, 7
    %v1188 = vrot.slane %v609, 7
    %v1189 = vrot.slane %v678, 7
    %v1190 = vrot.slane %v680, 7
    %v1195 = vrot.slane %v980, 6
    %v1196 = vrot.slane %v982, 6
    %v1197 = vrot.slane %v1051, 6
    %v1198 = vrot.slane %v1053, 6
    %v1203 = vsel %vm271, %v1187, %v1195
    %v1204 = vsel %vm271, %v1188, %v1196
    %v1205 = vsel %vm271, %v1189, %v1197
    %v1206 = vsel %vm271, %v1190, %v1198
    %1207 = vmatprep.subr.mxu0 %v75
    %1208 = vmatpush1.msra.mxu0 %v74
    %1209 = vmatprep.subr.mxu0 %v79
    %1210 = vmatpush1.msra.mxu0 %v78
    %1211 = vmatprep.subr.mxu0 %v83
    %1212 = vmatpush1.msra.mxu0 %v82
    %1213 = vmatprep.subr.mxu0 %v87
    %1214 = vmatpush1.msra.mxu0 %v86
    %1215 = vmatprep.subr.mxu0 %v91
    %1216 = vmatpush1.msra.mxu0 %v90
    %1217 = vmatprep.subr.mxu0 %v95
    %1218 = vmatpush1.msra.mxu0 %v94
    %1219 = vmatprep.subr.mxu0 %v99
    %1220 = vmatpush1.msra.mxu0 %v98
    %1221 = vmatprep.subr.mxu0 %v103
    %1222 = vmatpush1.msra.mxu0 %v102
    %1223 = vmatprep.subr.mxu0 %v107
    %1224 = vmatpush1.msra.mxu0 %v106
    %1225 = vmatprep.subr.mxu0 %v111
    %1226 = vmatpush1.msra.mxu0 %v110
    %1227 = vmatprep.subr.mxu0 %v115
    %1228 = vmatpush1.msra.mxu0 %v114
    %1229 = vmatprep.subr.mxu0 %v119
    %1230 = vmatpush1.msra.mxu0 %v118
    %1231 = vmatprep.subr.mxu0 %v123
    %1232 = vmatpush1.msra.mxu0 %v122
    %1233 = vmatprep.subr.mxu0 %v127
    %1234 = vmatpush1.msra.mxu0 %v126
    %1235 = vmatprep.subr.mxu0 %v131
    %1236 = vmatpush1.msra.mxu0 %v130
    %1237 = vmatprep.subr.mxu0 %v135
    %1238 = vmatpush1.msra.mxu0 %v134
    %1239 = vmatprep.subr.mxu0 0.0
    %1240 = vmatpush1.msra.mxu0 0.0
    %1241 = vmatprep.subr.mxu0 0.0
    %1242 = vmatpush1.msra.mxu0 0.0
    %1243 = vmatprep.subr.mxu0 0.0
    %1244 = vmatpush1.msra.mxu0 0.0
    %1245 = vmatprep.subr.mxu0 0.0
    %1246 = vmatpush1.msra.mxu0 0.0
    %1247 = vmatprep.subr.mxu0 0.0
    %1248 = vmatpush1.msra.mxu0 0.0
    %1249 = vmatprep.subr.mxu0 0.0
    %1250 = vmatpush1.msra.mxu0 0.0
    %1251 = vmatprep.subr.mxu0 0.0
    %1252 = vmatpush1.msra.mxu0 0.0
    %1253 = vmatprep.subr.mxu0 0.0
    %1254 = vmatpush1.msra.mxu0 0.0
    %1255 = vmatprep.subr.mxu0 0.0
    %1256 = vmatpush1.msra.mxu0 0.0
    %1257 = vmatprep.subr.mxu0 0.0
    %1258 = vmatpush1.msra.mxu0 0.0
    %1259 = vmatprep.subr.mxu0 0.0
    %1260 = vmatpush1.msra.mxu0 0.0
    %1261 = vmatprep.subr.mxu0 0.0
    %1262 = vmatpush1.msra.mxu0 0.0
    %1263 = vmatprep.subr.mxu0 0.0
    %1264 = vmatpush1.msra.mxu0 0.0
    %1265 = vmatprep.subr.mxu0 0.0
    %1266 = vmatpush1.msra.mxu0 0.0
    %1267 = vmatprep.subr.mxu0 0.0
    %1268 = vmatpush1.msra.mxu0 0.0
    %1269 = vmatprep.subr.mxu0 0.0
    %1270 = vmatpush1.msra.mxu0 0.0
    %1271 = vmatprep.mubr.f32.mxu0 0.0
    %1272 = vmatmul.mubr.f32.gmra.mrb[0].mxu0 0.0
    %v1273 = vpop.f32.mrb[0].mxu0
    %v1274 = vadd.f32 0.0, %v1273
    %v1275 = vpop.f32.mrb[0].mxu0
    %v1276 = vadd.f32 0.0, %v1275
    %1277 = vdwg.mxu0
    %1278 = vmatprep.subr.mxu0 %v77
    %1279 = vmatpush1.msra.mxu0 %v76
    %1280 = vmatprep.subr.mxu0 %v81
    %1281 = vmatpush1.msra.mxu0 %v80
    %1282 = vmatprep.subr.mxu0 %v85
    %1283 = vmatpush1.msra.mxu0 %v84
    %1284 = vmatprep.subr.mxu0 %v89
    %1285 = vmatpush1.msra.mxu0 %v88
    %1286 = vmatprep.subr.mxu0 %v93
    %1287 = vmatpush1.msra.mxu0 %v92
    %1288 = vmatprep.subr.mxu0 %v97
    %1289 = vmatpush1.msra.mxu0 %v96
    %1290 = vmatprep.subr.mxu0 %v101
    %1291 = vmatpush1.msra.mxu0 %v100
    %1292 = vmatprep.subr.mxu0 %v105
    %1293 = vmatpush1.msra.mxu0 %v104
    %1294 = vmatprep.subr.mxu0 %v109
    %1295 = vmatpush1.msra.mxu0 %v108
    %1296 = vmatprep.subr.mxu0 %v113
    %1297 = vmatpush1.msra.mxu0 %v112
    %1298 = vmatprep.subr.mxu0 %v117
    %1299 = vmatpush1.msra.mxu0 %v116
    %1300 = vmatprep.subr.mxu0 %v121
    %1301 = vmatpush1.msra.mxu0 %v120
    %1302 = vmatprep.subr.mxu0 %v125
    %1303 = vmatpush1.msra.mxu0 %v124
    %1304 = vmatprep.subr.mxu0 %v129
    %1305 = vmatpush1.msra.mxu0 %v128
    %1306 = vmatprep.subr.mxu0 %v133
    %1307 = vmatpush1.msra.mxu0 %v132
    %1308 = vmatprep.subr.mxu0 %v137
    %1309 = vmatpush1.msra.mxu0 %v136
    %1310 = vmatprep.subr.mxu0 0.0
    %1311 = vmatpush1.msra.mxu0 0.0
    %1312 = vmatprep.subr.mxu0 0.0
    %1313 = vmatpush1.msra.mxu0 0.0
    %1314 = vmatprep.subr.mxu0 0.0
    %1315 = vmatpush1.msra.mxu0 0.0
    %1316 = vmatprep.subr.mxu0 0.0
    %1317 = vmatpush1.msra.mxu0 0.0
    %1318 = vmatprep.subr.mxu0 0.0
    %1319 = vmatpush1.msra.mxu0 0.0
    %1320 = vmatprep.subr.mxu0 0.0
    %1321 = vmatpush1.msra.mxu0 0.0
    %1322 = vmatprep.subr.mxu0 0.0
    %1323 = vmatpush1.msra.mxu0 0.0
    %1324 = vmatprep.subr.mxu0 0.0
    %1325 = vmatpush1.msra.mxu0 0.0
    %1326 = vmatprep.subr.mxu0 0.0
    %1327 = vmatpush1.msra.mxu0 0.0
    %1328 = vmatprep.subr.mxu0 0.0
    %1329 = vmatpush1.msra.mxu0 0.0
    %1330 = vmatprep.subr.mxu0 0.0
    %1331 = vmatpush1.msra.mxu0 0.0
    %1332 = vmatprep.subr.mxu0 0.0
    %1333 = vmatpush1.msra.mxu0 0.0
    %1334 = vmatprep.subr.mxu0 0.0
    %1335 = vmatpush1.msra.mxu0 0.0
    %1336 = vmatprep.subr.mxu0 0.0
    %1337 = vmatpush1.msra.mxu0 0.0
    %1338 = vmatprep.subr.mxu0 0.0
    %1339 = vmatpush1.msra.mxu0 0.0
    %1340 = vmatprep.subr.mxu0 0.0
    %1341 = vmatpush1.msra.mxu0 0.0
    %1342 = vmatprep.mubr.f32.mxu0 0.0
    %1343 = vmatmul.mubr.f32.gmra.mrb[0].mxu0 0.0
    %v1344 = vpop.f32.mrb[0].mxu0
    %v1345 = vadd.f32 0.0, %v1344
    %v1346 = vpop.f32.mrb[0].mxu0
    %v1347 = vadd.f32 0.0, %v1346
    %1348 = vdwg.mxu0
    %v1349 = vadd.f32 %v1067, %v1274
    %v1350 = vadd.f32 %v1068, %v1276
    %v1351 = vadd.f32 %v1069, %v1345
    %v1352 = vadd.f32 %v1070, %v1347
    %v1353 = vxor.u32 %v1349, 2147483648
    %v1354 = vxor.u32 %v1350, 2147483648
    %v1355 = vmul.f32 %v1353, 1.442695
    %v1356 = vpow.pop %v1355
    %v1357 = vmul.f32 %v1354, 1.442695
    %v1358 = vpow.pop %v1357
    %v1359 = vadd.f32 %v1356, 1.0
    %v1360 = vadd.f32 %v1358, 1.0
    %v1361 = vrcp.pop %v1359
    %v1362 = vmul.f32 1.0, %v1361
    %v1363 = vrcp.pop %v1360
    %v1364 = vmul.f32 1.0, %v1363
    %v1365 = vtanh.pop %v1351
    %v1366 = vxor.u32 %v1352, 2147483648
    %v1367 = vmul.f32 %v1366, 1.442695
    %v1368 = vpow.pop %v1367
    %v1369 = vadd.f32 %v1368, 1.0
    %v1370 = vrcp.pop %v1369
    %v1371 = vmul.f32 1.0, %v1370
    %v1372 = vmul.f32 %v1364, 0.0
    %v1373 = vmul.f32 %v1362, %v1365
    %v1374 = vadd.f32 %v1372, %v1373
    %v1375 = vtanh.pop %v1374
    %v1376 = vmul.f32 %v1371, %v1375
    %v1378 = vlaneseq
    %v1379 = vshrl.u32 %v1378, 7
    %v1380 = vsub.s32 0, %v1379
    %v1381 = vrot.slane %v267, %v1380
    %v1382 = vlaneseq
    %v1383 = vshrl.u32 %v1382, 7
    %v1384 = vsub.s32 1, %v1383
    %v1385 = vrot.slane %v267, %v1384
    %v1386 = vlaneseq
    %v1387 = vshrl.u32 %v1386, 7
    %v1388 = vsub.s32 2, %v1387
    %v1389 = vrot.slane %v267, %v1388
    %v1390 = vlaneseq
    %v1391 = vshrl.u32 %v1390, 7
    %v1392 = vsub.s32 3, %v1391
    %v1393 = vrot.slane %v267, %v1392
    %1398 = vmatprep.subr.mxu0 %v140
    %1399 = vmatpush1.msra.mxu0 %v139
    %1400 = vmatprep.subr.mxu0 %v144
    %1401 = vmatpush1.msra.mxu0 %v143
    %1402 = vmatprep.subr.mxu0 %v148
    %1403 = vmatpush1.msra.mxu0 %v147
    %1404 = vmatprep.subr.mxu0 %v152
    %1405 = vmatpush1.msra.mxu0 %v151
    %1406 = vmatprep.subr.mxu0 %v156
    %1407 = vmatpush1.msra.mxu0 %v155
    %1408 = vmatprep.subr.mxu0 %v160
    %1409 = vmatpush1.msra.mxu0 %v159
    %1410 = vmatprep.subr.mxu0 %v164
    %1411 = vmatpush1.msra.mxu0 %v163
    %1412 = vmatprep.subr.mxu0 %v168
    %1413 = vmatpush1.msra.mxu0 %v167
    %1414 = vmatprep.subr.mxu0 %v172
    %1415 = vmatpush1.msra.mxu0 %v171
    %1416 = vmatprep.subr.mxu0 %v176
    %1417 = vmatpush1.msra.mxu0 %v175
    %1418 = vmatprep.subr.mxu0 %v180
    %1419 = vmatpush1.msra.mxu0 %v179
    %1420 = vmatprep.subr.mxu0 %v184
    %1421 = vmatpush1.msra.mxu0 %v183
    %1422 = vmatprep.subr.mxu0 %v188
    %1423 = vmatpush1.msra.mxu0 %v187
    %1424 = vmatprep.subr.mxu0 %v192
    %1425 = vmatpush1.msra.mxu0 %v191
    %1426 = vmatprep.subr.mxu0 %v196
    %1427 = vmatpush1.msra.mxu0 %v195
    %1428 = vmatprep.subr.mxu0 %v200
    %1429 = vmatpush1.msra.mxu0 %v199
    %1430 = vmatprep.subr.mxu0 %v204
    %1431 = vmatpush1.msra.mxu0 %v203
    %1432 = vmatprep.subr.mxu0 %v208
    %1433 = vmatpush1.msra.mxu0 %v207
    %1434 = vmatprep.subr.mxu0 %v212
    %1435 = vmatpush1.msra.mxu0 %v211
    %1436 = vmatprep.subr.mxu0 %v216
    %1437 = vmatpush1.msra.mxu0 %v215
    %1438 = vmatprep.subr.mxu0 %v220
    %1439 = vmatpush1.msra.mxu0 %v219
    %1440 = vmatprep.subr.mxu0 %v224
    %1441 = vmatpush1.msra.mxu0 %v223
    %1442 = vmatprep.subr.mxu0 %v228
    %1443 = vmatpush1.msra.mxu0 %v227
    %1444 = vmatprep.subr.mxu0 %v232
    %1445 = vmatpush1.msra.mxu0 %v231
    %1446 = vmatprep.subr.mxu0 %v236
    %1447 = vmatpush1.msra.mxu0 %v235
    %1448 = vmatprep.subr.mxu0 %v240
    %1449 = vmatpush1.msra.mxu0 %v239
    %1450 = vmatprep.subr.mxu0 %v244
    %1451 = vmatpush1.msra.mxu0 %v243
    %1452 = vmatprep.subr.mxu0 %v248
    %1453 = vmatpush1.msra.mxu0 %v247
    %1454 = vmatprep.subr.mxu0 %v252
    %1455 = vmatpush1.msra.mxu0 %v251
    %1456 = vmatprep.subr.mxu0 %v256
    %1457 = vmatpush1.msra.mxu0 %v255
    %1458 = vmatprep.subr.mxu0 %v260
    %1459 = vmatpush1.msra.mxu0 %v259
    %1460 = vmatprep.subr.mxu0 %v264
    %1461 = vmatpush1.msra.mxu0 %v263
    %1462 = vmatprep.mubr.f32.mxu0 0.0
    %1463 = vmatmul.mubr.f32.gmra.mrb[0].mxu0 %v1376
    %v1464 = vpop.f32.mrb[0].mxu0
    %v1465 = vadd.f32 %v1381, %v1464
    %v1466 = vpop.f32.mrb[0].mxu0
    %v1467 = vadd.f32 %v1385, %v1466
    %1468 = vdwg.mxu0
    %1469 = vmatprep.subr.mxu0 %v142
    %1470 = vmatpush1.msra.mxu0 %v141
    %1471 = vmatprep.subr.mxu0 %v146
    %1472 = vmatpush1.msra.mxu0 %v145
    %1473 = vmatprep.subr.mxu0 %v150
    %1474 = vmatpush1.msra.mxu0 %v149
    %1475 = vmatprep.subr.mxu0 %v154
    %1476 = vmatpush1.msra.mxu0 %v153
    %1477 = vmatprep.subr.mxu0 %v158
    %1478 = vmatpush1.msra.mxu0 %v157
    %1479 = vmatprep.subr.mxu0 %v162
    %1480 = vmatpush1.msra.mxu0 %v161
    %1481 = vmatprep.subr.mxu0 %v166
    %1482 = vmatpush1.msra.mxu0 %v165
    %1483 = vmatprep.subr.mxu0 %v170
    %1484 = vmatpush1.msra.mxu0 %v169
    %1485 = vmatprep.subr.mxu0 %v174
    %1486 = vmatpush1.msra.mxu0 %v173
    %1487 = vmatprep.subr.mxu0 %v178
    %1488 = vmatpush1.msra.mxu0 %v177
    %1489 = vmatprep.subr.mxu0 %v182
    %1490 = vmatpush1.msra.mxu0 %v181
    %1491 = vmatprep.subr.mxu0 %v186
    %1492 = vmatpush1.msra.mxu0 %v185
    %1493 = vmatprep.subr.mxu0 %v190
    %1494 = vmatpush1.msra.mxu0 %v189
    %1495 = vmatprep.subr.mxu0 %v194
    %1496 = vmatpush1.msra.mxu0 %v193
    %1497 = vmatprep.subr.mxu0 %v198
    %1498 = vmatpush1.msra.mxu0 %v197
    %1499 = vmatprep.subr.mxu0 %v202
    %1500 = vmatpush1.msra.mxu0 %v201
    %1501 = vmatprep.subr.mxu0 %v206
    %1502 = vmatpush1.msra.mxu0 %v205
    %1503 = vmatprep.subr.mxu0 %v210
    %1504 = vmatpush1.msra.mxu0 %v209
    %1505 = vmatprep.subr.mxu0 %v214
    %1506 = vmatpush1.msra.mxu0 %v213
    %1507 = vmatprep.subr.mxu0 %v218
    %1508 = vmatpush1.msra.mxu0 %v217
    %1509 = vmatprep.subr.mxu0 %v222
    %1510 = vmatpush1.msra.mxu0 %v221
    %1511 = vmatprep.subr.mxu0 %v226
    %1512 = vmatpush1.msra.mxu0 %v225
    %1513 = vmatprep.subr.mxu0 %v230
    %1514 = vmatpush1.msra.mxu0 %v229
    %1515 = vmatprep.subr.mxu0 %v234
    %1516 = vmatpush1.msra.mxu0 %v233
    %1517 = vmatprep.subr.mxu0 %v238
    %1518 = vmatpush1.msra.mxu0 %v237
    %1519 = vmatprep.subr.mxu0 %v242
    %1520 = vmatpush1.msra.mxu0 %v241
    %1521 = vmatprep.subr.mxu0 %v246
    %1522 = vmatpush1.msra.mxu0 %v245
    %1523 = vmatprep.subr.mxu0 %v250
    %1524 = vmatpush1.msra.mxu0 %v249
    %1525 = vmatprep.subr.mxu0 %v254
    %1526 = vmatpush1.msra.mxu0 %v253
    %1527 = vmatprep.subr.mxu0 %v258
    %1528 = vmatpush1.msra.mxu0 %v257
    %1529 = vmatprep.subr.mxu0 %v262
    %1530 = vmatpush1.msra.mxu0 %v261
    %1531 = vmatprep.subr.mxu0 %v266
    %1532 = vmatpush1.msra.mxu0 %v265
    %1533 = vmatprep.mubr.f32.mxu0 0.0
    %1534 = vmatmul.mubr.f32.gmra.mrb[0].mxu0 %v1376
    %v1535 = vpop.f32.mrb[0].mxu0
    %v1536 = vadd.f32 %v1389, %v1535
    %v1537 = vpop.f32.mrb[0].mxu0
    %v1538 = vadd.f32 %v1393, %v1537
    %1539 = vdwg.mxu0
    %v1540 = vxor.u32 %v1465, 2147483648
    %v1541 = vxor.u32 %v1467, 2147483648
    %v1542 = vmul.f32 %v1540, 1.442695
    %v1543 = vpow.pop %v1542
    %v1544 = vmul.f32 %v1541, 1.442695
    %v1545 = vpow.pop %v1544
    %v1546 = vadd.f32 %v1543, 1.0
    %v1547 = vadd.f32 %v1545, 1.0
    %v1548 = vrcp.pop %v1546
    %v1549 = vmul.f32 1.0, %v1548
    %v1550 = vrcp.pop %v1547
    %v1551 = vmul.f32 1.0, %v1550
    %v1552 = vtanh.pop %v1536
    %v1553 = vxor.u32 %v1538, 2147483648
    %v1554 = vmul.f32 %v1553, 1.442695
    %v1555 = vpow.pop %v1554
    %v1556 = vadd.f32 %v1555, 1.0
    %v1557 = vrcp.pop %v1556
    %v1558 = vmul.f32 1.0, %v1557
    %v1559 = vmul.f32 %v1551, 0.0
    %v1560 = vmul.f32 %v1549, %v1552
    %v1561 = vadd.f32 %v1559, %v1560
    %v1562 = vtanh.pop %v1561
    %v1563 = vmul.f32 %v1558, %v1562
    %1564 = vmatprep.subr.mxu0 %v75
    %1565 = vmatpush1.msra.mxu0 %v74
    %1566 = vmatprep.subr.mxu0 %v79
    %1567 = vmatpush1.msra.mxu0 %v78
    %1568 = vmatprep.subr.mxu0 %v83
    %1569 = vmatpush1.msra.mxu0 %v82
    %1570 = vmatprep.subr.mxu0 %v87
    %1571 = vmatpush1.msra.mxu0 %v86
    %1572 = vmatprep.subr.mxu0 %v91
    %1573 = vmatpush1.msra.mxu0 %v90
    %1574 = vmatprep.subr.mxu0 %v95
    %1575 = vmatpush1.msra.mxu0 %v94
    %1576 = vmatprep.subr.mxu0 %v99
    %1577 = vmatpush1.msra.mxu0 %v98
    %1578 = vmatprep.subr.mxu0 %v103
    %1579 = vmatpush1.msra.mxu0 %v102
    %1580 = vmatprep.subr.mxu0 %v107
    %1581 = vmatpush1.msra.mxu0 %v106
    %1582 = vmatprep.subr.mxu0 %v111
    %1583 = vmatpush1.msra.mxu0 %v110
    %1584 = vmatprep.subr.mxu0 %v115
    %1585 = vmatpush1.msra.mxu0 %v114
    %1586 = vmatprep.subr.mxu0 %v119
    %1587 = vmatpush1.msra.mxu0 %v118
    %1588 = vmatprep.subr.mxu0 %v123
    %1589 = vmatpush1.msra.mxu0 %v122
    %1590 = vmatprep.subr.mxu0 %v127
    %1591 = vmatpush1.msra.mxu0 %v126
    %1592 = vmatprep.subr.mxu0 %v131
    %1593 = vmatpush1.msra.mxu0 %v130
    %1594 = vmatprep.subr.mxu0 %v135
    %1595 = vmatpush1.msra.mxu0 %v134
    %1596 = vmatprep.subr.mxu0 0.0
    %1597 = vmatpush1.msra.mxu0 0.0
    %1598 = vmatprep.subr.mxu0 0.0
    %1599 = vmatpush1.msra.mxu0 0.0
    %1600 = vmatprep.subr.mxu0 0.0
    %1601 = vmatpush1.msra.mxu0 0.0
    %1602 = vmatprep.subr.mxu0 0.0
    %1603 = vmatpush1.msra.mxu0 0.0
    %1604 = vmatprep.subr.mxu0 0.0
    %1605 = vmatpush1.msra.mxu0 0.0
    %1606 = vmatprep.subr.mxu0 0.0
    %1607 = vmatpush1.msra.mxu0 0.0
    %1608 = vmatprep.subr.mxu0 0.0
    %1609 = vmatpush1.msra.mxu0 0.0
    %1610 = vmatprep.subr.mxu0 0.0
    %1611 = vmatpush1.msra.mxu0 0.0
    %1612 = vmatprep.subr.mxu0 0.0
    %1613 = vmatpush1.msra.mxu0 0.0
    %1614 = vmatprep.subr.mxu0 0.0
    %1615 = vmatpush1.msra.mxu0 0.0
    %1616 = vmatprep.subr.mxu0 0.0
    %1617 = vmatpush1.msra.mxu0 0.0
    %1618 = vmatprep.subr.mxu0 0.0
    %1619 = vmatpush1.msra.mxu0 0.0
    %1620 = vmatprep.subr.mxu0 0.0
    %1621 = vmatpush1.msra.mxu0 0.0
    %1622 = vmatprep.subr.mxu0 0.0
    %1623 = vmatpush1.msra.mxu0 0.0
    %1624 = vmatprep.subr.mxu0 0.0
    %1625 = vmatpush1.msra.mxu0 0.0
    %1626 = vmatprep.subr.mxu0 0.0
    %1627 = vmatpush1.msra.mxu0 0.0
    %1628 = vmatprep.mubr.f32.mxu0 0.0
    %1629 = vmatmul.mubr.f32.gmra.mrb[0].mxu0 %v1376
    %v1630 = vpop.f32.mrb[0].mxu0
    %v1631 = vadd.f32 0.0, %v1630
    %v1632 = vpop.f32.mrb[0].mxu0
    %v1633 = vadd.f32 0.0, %v1632
    %1634 = vdwg.mxu0
    %1635 = vmatprep.subr.mxu0 %v77
    %1636 = vmatpush1.msra.mxu0 %v76
    %1637 = vmatprep.subr.mxu0 %v81
    %1638 = vmatpush1.msra.mxu0 %v80
    %1639 = vmatprep.subr.mxu0 %v85
    %1640 = vmatpush1.msra.mxu0 %v84
    %1641 = vmatprep.subr.mxu0 %v89
    %1642 = vmatpush1.msra.mxu0 %v88
    %1643 = vmatprep.subr.mxu0 %v93
    %1644 = vmatpush1.msra.mxu0 %v92
    %1645 = vmatprep.subr.mxu0 %v97
    %1646 = vmatpush1.msra.mxu0 %v96
    %1647 = vmatprep.subr.mxu0 %v101
    %1648 = vmatpush1.msra.mxu0 %v100
    %1649 = vmatprep.subr.mxu0 %v105
    %1650 = vmatpush1.msra.mxu0 %v104
    %1651 = vmatprep.subr.mxu0 %v109
    %1652 = vmatpush1.msra.mxu0 %v108
    %1653 = vmatprep.subr.mxu0 %v113
    %1654 = vmatpush1.msra.mxu0 %v112
    %1655 = vmatprep.subr.mxu0 %v117
    %1656 = vmatpush1.msra.mxu0 %v116
    %1657 = vmatprep.subr.mxu0 %v121
    %1658 = vmatpush1.msra.mxu0 %v120
    %1659 = vmatprep.subr.mxu0 %v125
    %1660 = vmatpush1.msra.mxu0 %v124
    %1661 = vmatprep.subr.mxu0 %v129
    %1662 = vmatpush1.msra.mxu0 %v128
    %1663 = vmatprep.subr.mxu0 %v133
    %1664 = vmatpush1.msra.mxu0 %v132
    %1665 = vmatprep.subr.mxu0 %v137
    %1666 = vmatpush1.msra.mxu0 %v136
    %1667 = vmatprep.subr.mxu0 0.0
    %1668 = vmatpush1.msra.mxu0 0.0
    %1669 = vmatprep.subr.mxu0 0.0
    %1670 = vmatpush1.msra.mxu0 0.0
    %1671 = vmatprep.subr.mxu0 0.0
    %1672 = vmatpush1.msra.mxu0 0.0
    %1673 = vmatprep.subr.mxu0 0.0
    %1674 = vmatpush1.msra.mxu0 0.0
    %1675 = vmatprep.subr.mxu0 0.0
    %1676 = vmatpush1.msra.mxu0 0.0
    %1677 = vmatprep.subr.mxu0 0.0
    %1678 = vmatpush1.msra.mxu0 0.0
    %1679 = vmatprep.subr.mxu0 0.0
    %1680 = vmatpush1.msra.mxu0 0.0
    %1681 = vmatprep.subr.mxu0 0.0
    %1682 = vmatpush1.msra.mxu0 0.0
    %1683 = vmatprep.subr.mxu0 0.0
    %1684 = vmatpush1.msra.mxu0 0.0
    %1685 = vmatprep.subr.mxu0 0.0
    %1686 = vmatpush1.msra.mxu0 0.0
    %1687 = vmatprep.subr.mxu0 0.0
    %1688 = vmatpush1.msra.mxu0 0.0
    %1689 = vmatprep.subr.mxu0 0.0
    %1690 = vmatpush1.msra.mxu0 0.0
    %1691 = vmatprep.subr.mxu0 0.0
    %1692 = vmatpush1.msra.mxu0 0.0
    %1693 = vmatprep.subr.mxu0 0.0
    %1694 = vmatpush1.msra.mxu0 0.0
    %1695 = vmatprep.subr.mxu0 0.0
    %1696 = vmatpush1.msra.mxu0 0.0
    %1697 = vmatprep.subr.mxu0 0.0
    %1698 = vmatpush1.msra.mxu0 0.0
    %1699 = vmatprep.mubr.f32.mxu0 0.0
    %1700 = vmatmul.mubr.f32.gmra.mrb[0].mxu0 %v1376
    %v1701 = vpop.f32.mrb[0].mxu0
    %v1702 = vadd.f32 0.0, %v1701
    %v1703 = vpop.f32.mrb[0].mxu0
    %v1704 = vadd.f32 0.0, %v1703
    %1705 = vdwg.mxu0
    %v1706 = vadd.f32 %v1083, %v1631
    %v1707 = vadd.f32 %v1084, %v1633
    %v1708 = vadd.f32 %v1085, %v1702
    %v1709 = vadd.f32 %v1086, %v1704
    %v1710 = vxor.u32 %v1706, 2147483648
    %v1711 = vxor.u32 %v1707, 2147483648
    %v1712 = vmul.f32 %v1710, 1.442695
    %v1713 = vpow.pop %v1712
    %v1714 = vmul.f32 %v1711, 1.442695
    %v1715 = vpow.pop %v1714
    %v1716 = vadd.f32 %v1713, 1.0
    %v1717 = vadd.f32 %v1715, 1.0
    %v1718 = vrcp.pop %v1716
    %v1719 = vmul.f32 1.0, %v1718
    %v1720 = vrcp.pop %v1717
    %v1721 = vmul.f32 1.0, %v1720
    %v1722 = vtanh.pop %v1708
    %v1723 = vxor.u32 %v1709, 2147483648
    %v1724 = vmul.f32 %v1723, 1.442695
    %v1725 = vpow.pop %v1724
    %v1726 = vadd.f32 %v1725, 1.0
    %v1727 = vrcp.pop %v1726
    %v1728 = vmul.f32 1.0, %v1727
    %v1729 = vmul.f32 %v1721, %v1374
    %v1730 = vmul.f32 %v1719, %v1722
    %v1731 = vadd.f32 %v1729, %v1730
    %v1732 = vtanh.pop %v1731
    %v1733 = vmul.f32 %v1728, %v1732
    %1734 = vmatprep.subr.mxu0 %v140
    %1735 = vmatpush1.msra.mxu0 %v139
    %1736 = vmatprep.subr.mxu0 %v144
    %1737 = vmatpush1.msra.mxu0 %v143
    %1738 = vmatprep.subr.mxu0 %v148
    %1739 = vmatpush1.msra.mxu0 %v147
    %1740 = vmatprep.subr.mxu0 %v152
    %1741 = vmatpush1.msra.mxu0 %v151
    %1742 = vmatprep.subr.mxu0 %v156
    %1743 = vmatpush1.msra.mxu0 %v155
    %1744 = vmatprep.subr.mxu0 %v160
    %1745 = vmatpush1.msra.mxu0 %v159
    %1746 = vmatprep.subr.mxu0 %v164
    %1747 = vmatpush1.msra.mxu0 %v163
    %1748 = vmatprep.subr.mxu0 %v168
    %1749 = vmatpush1.msra.mxu0 %v167
    %1750 = vmatprep.subr.mxu0 %v172
    %1751 = vmatpush1.msra.mxu0 %v171
    %1752 = vmatprep.subr.mxu0 %v176
    %1753 = vmatpush1.msra.mxu0 %v175
    %1754 = vmatprep.subr.mxu0 %v180
    %1755 = vmatpush1.msra.mxu0 %v179
    %1756 = vmatprep.subr.mxu0 %v184
    %1757 = vmatpush1.msra.mxu0 %v183
    %1758 = vmatprep.subr.mxu0 %v188
    %1759 = vmatpush1.msra.mxu0 %v187
    %1760 = vmatprep.subr.mxu0 %v192
    %1761 = vmatpush1.msra.mxu0 %v191
    %1762 = vmatprep.subr.mxu0 %v196
    %1763 = vmatpush1.msra.mxu0 %v195
    %1764 = vmatprep.subr.mxu0 %v200
    %1765 = vmatpush1.msra.mxu0 %v199
    %1766 = vmatprep.subr.mxu0 %v204
    %1767 = vmatpush1.msra.mxu0 %v203
    %1768 = vmatprep.subr.mxu0 %v208
    %1769 = vmatpush1.msra.mxu0 %v207
    %1770 = vmatprep.subr.mxu0 %v212
    %1771 = vmatpush1.msra.mxu0 %v211
    %1772 = vmatprep.subr.mxu0 %v216
    %1773 = vmatpush1.msra.mxu0 %v215
    %1774 = vmatprep.subr.mxu0 %v220
    %1775 = vmatpush1.msra.mxu0 %v219
    %1776 = vmatprep.subr.mxu0 %v224
    %1777 = vmatpush1.msra.mxu0 %v223
    %1778 = vmatprep.subr.mxu0 %v228
    %1779 = vmatpush1.msra.mxu0 %v227
    %1780 = vmatprep.subr.mxu0 %v232
    %1781 = vmatpush1.msra.mxu0 %v231
    %1782 = vmatprep.subr.mxu0 %v236
    %1783 = vmatpush1.msra.mxu0 %v235
    %1784 = vmatprep.subr.mxu0 %v240
    %1785 = vmatpush1.msra.mxu0 %v239
    %1786 = vmatprep.subr.mxu0 %v244
    %1787 = vmatpush1.msra.mxu0 %v243
    %1788 = vmatprep.subr.mxu0 %v248
    %1789 = vmatpush1.msra.mxu0 %v247
    %1790 = vmatprep.subr.mxu0 %v252
    %1791 = vmatpush1.msra.mxu0 %v251
    %1792 = vmatprep.subr.mxu0 %v256
    %1793 = vmatpush1.msra.mxu0 %v255
    %1794 = vmatprep.subr.mxu0 %v260
    %1795 = vmatpush1.msra.mxu0 %v259
    %1796 = vmatprep.subr.mxu0 %v264
    %1797 = vmatpush1.msra.mxu0 %v263
    %1798 = vmatprep.mubr.f32.mxu0 %v1563
    %1799 = vmatmul.mubr.f32.gmra.mrb[0].mxu0 %v1733
    %v1800 = vpop.f32.mrb[0].mxu0
    %v1801 = vadd.f32 %v1381, %v1800
    %v1802 = vpop.f32.mrb[0].mxu0
    %v1803 = vadd.f32 %v1385, %v1802
    %1804 = vdwg.mxu0
    %1805 = vmatprep.subr.mxu0 %v142
    %1806 = vmatpush1.msra.mxu0 %v141
    %1807 = vmatprep.subr.mxu0 %v146
    %1808 = vmatpush1.msra.mxu0 %v145
    %1809 = vmatprep.subr.mxu0 %v150
    %1810 = vmatpush1.msra.mxu0 %v149
    %1811 = vmatprep.subr.mxu0 %v154
    %1812 = vmatpush1.msra.mxu0 %v153
    %1813 = vmatprep.subr.mxu0 %v158
    %1814 = vmatpush1.msra.mxu0 %v157
    %1815 = vmatprep.subr.mxu0 %v162
    %1816 = vmatpush1.msra.mxu0 %v161
    %1817 = vmatprep.subr.mxu0 %v166
    %1818 = vmatpush1.msra.mxu0 %v165
    %1819 = vmatprep.subr.mxu0 %v170
    %1820 = vmatpush1.msra.mxu0 %v169
    %1821 = vmatprep.subr.mxu0 %v174
    %1822 = vmatpush1.msra.mxu0 %v173
    %1823 = vmatprep.subr.mxu0 %v178
    %1824 = vmatpush1.msra.mxu0 %v177
    %1825 = vmatprep.subr.mxu0 %v182
    %1826 = vmatpush1.msra.mxu0 %v181
    %1827 = vmatprep.subr.mxu0 %v186
    %1828 = vmatpush1.msra.mxu0 %v185
    %1829 = vmatprep.subr.mxu0 %v190
    %1830 = vmatpush1.msra.mxu0 %v189
    %1831 = vmatprep.subr.mxu0 %v194
    %1832 = vmatpush1.msra.mxu0 %v193
    %1833 = vmatprep.subr.mxu0 %v198
    %1834 = vmatpush1.msra.mxu0 %v197
    %1835 = vmatprep.subr.mxu0 %v202
    %1836 = vmatpush1.msra.mxu0 %v201
    %1837 = vmatprep.subr.mxu0 %v206
    %1838 = vmatpush1.msra.mxu0 %v205
    %1839 = vmatprep.subr.mxu0 %v210
    %1840 = vmatpush1.msra.mxu0 %v209
    %1841 = vmatprep.subr.mxu0 %v214
    %1842 = vmatpush1.msra.mxu0 %v213
    %1843 = vmatprep.subr.mxu0 %v218
    %1844 = vmatpush1.msra.mxu0 %v217
    %1845 = vmatprep.subr.mxu0 %v222
    %1846 = vmatpush1.msra.mxu0 %v221
    %1847 = vmatprep.subr.mxu0 %v226
    %1848 = vmatpush1.msra.mxu0 %v225
    %1849 = vmatprep.subr.mxu0 %v230
    %1850 = vmatpush1.msra.mxu0 %v229
    %1851 = vmatprep.subr.mxu0 %v234
    %1852 = vmatpush1.msra.mxu0 %v233
    %1853 = vmatprep.subr.mxu0 %v238
    %1854 = vmatpush1.msra.mxu0 %v237
    %1855 = vmatprep.subr.mxu0 %v242
    %1856 = vmatpush1.msra.mxu0 %v241
    %1857 = vmatprep.subr.mxu0 %v246
    %1858 = vmatpush1.msra.mxu0 %v245
    %1859 = vmatprep.subr.mxu0 %v250
    %1860 = vmatpush1.msra.mxu0 %v249
    %1861 = vmatprep.subr.mxu0 %v254
    %1862 = vmatpush1.msra.mxu0 %v253
    %1863 = vmatprep.subr.mxu0 %v258
    %1864 = vmatpush1.msra.mxu0 %v257
    %1865 = vmatprep.subr.mxu0 %v262
    %1866 = vmatpush1.msra.mxu0 %v261
    %1867 = vmatprep.subr.mxu0 %v266
    %1868 = vmatpush1.msra.mxu0 %v265
    %1869 = vmatprep.mubr.f32.mxu0 %v1563
    %1870 = vmatmul.mubr.f32.gmra.mrb[0].mxu0 %v1733
    %v1871 = vpop.f32.mrb[0].mxu0
    %v1872 = vadd.f32 %v1389, %v1871
    %v1873 = vpop.f32.mrb[0].mxu0
    %v1874 = vadd.f32 %v1393, %v1873
    %1875 = vdwg.mxu0
    %v1876 = vxor.u32 %v1801, 2147483648
    %v1877 = vxor.u32 %v1803, 2147483648
    %v1878 = vmul.f32 %v1876, 1.442695
    %v1879 = vpow.pop %v1878
    %v1880 = vmul.f32 %v1877, 1.442695
    %v1881 = vpow.pop %v1880
    %v1882 = vadd.f32 %v1879, 1.0
    %v1883 = vadd.f32 %v1881, 1.0
    %v1884 = vrcp.pop %v1882
    %v1885 = vmul.f32 1.0, %v1884
    %v1886 = vrcp.pop %v1883
    %v1887 = vmul.f32 1.0, %v1886
    %v1888 = vtanh.pop %v1872
    %v1889 = vxor.u32 %v1874, 2147483648
    %v1890 = vmul.f32 %v1889, 1.442695
    %v1891 = vpow.pop %v1890
    %v1892 = vadd.f32 %v1891, 1.0
    %v1893 = vrcp.pop %v1892
    %v1894 = vmul.f32 1.0, %v1893
    %v1895 = vmul.f32 %v1887, %v1561
    %v1896 = vmul.f32 %v1885, %v1888
    %v1897 = vadd.f32 %v1895, %v1896
    %v1898 = vtanh.pop %v1897
    %v1899 = vmul.f32 %v1894, %v1898
    %1900 = vmatprep.subr.mxu0 %v75
    %1901 = vmatpush1.msra.mxu0 %v74
    %1902 = vmatprep.subr.mxu0 %v79
    %1903 = vmatpush1.msra.mxu0 %v78
    %1904 = vmatprep.subr.mxu0 %v83
    %1905 = vmatpush1.msra.mxu0 %v82
    %1906 = vmatprep.subr.mxu0 %v87
    %1907 = vmatpush1.msra.mxu0 %v86
    %1908 = vmatprep.subr.mxu0 %v91
    %1909 = vmatpush1.msra.mxu0 %v90
    %1910 = vmatprep.subr.mxu0 %v95
    %1911 = vmatpush1.msra.mxu0 %v94
    %1912 = vmatprep.subr.mxu0 %v99
    %1913 = vmatpush1.msra.mxu0 %v98
    %1914 = vmatprep.subr.mxu0 %v103
    %1915 = vmatpush1.msra.mxu0 %v102
    %1916 = vmatprep.subr.mxu0 %v107
    %1917 = vmatpush1.msra.mxu0 %v106
    %1918 = vmatprep.subr.mxu0 %v111
    %1919 = vmatpush1.msra.mxu0 %v110
    %1920 = vmatprep.subr.mxu0 %v115
    %1921 = vmatpush1.msra.mxu0 %v114
    %1922 = vmatprep.subr.mxu0 %v119
    %1923 = vmatpush1.msra.mxu0 %v118
    %1924 = vmatprep.subr.mxu0 %v123
    %1925 = vmatpush1.msra.mxu0 %v122
    %1926 = vmatprep.subr.mxu0 %v127
    %1927 = vmatpush1.msra.mxu0 %v126
    %1928 = vmatprep.subr.mxu0 %v131
    %1929 = vmatpush1.msra.mxu0 %v130
    %1930 = vmatprep.subr.mxu0 %v135
    %1931 = vmatpush1.msra.mxu0 %v134
    %1932 = vmatprep.subr.mxu0 0.0
    %1933 = vmatpush1.msra.mxu0 0.0
    %1934 = vmatprep.subr.mxu0 0.0
    %1935 = vmatpush1.msra.mxu0 0.0
    %1936 = vmatprep.subr.mxu0 0.0
    %1937 = vmatpush1.msra.mxu0 0.0
    %1938 = vmatprep.subr.mxu0 0.0
    %1939 = vmatpush1.msra.mxu0 0.0
    %1940 = vmatprep.subr.mxu0 0.0
    %1941 = vmatpush1.msra.mxu0 0.0
    %1942 = vmatprep.subr.mxu0 0.0
    %1943 = vmatpush1.msra.mxu0 0.0
    %1944 = vmatprep.subr.mxu0 0.0
    %1945 = vmatpush1.msra.mxu0 0.0
    %1946 = vmatprep.subr.mxu0 0.0
    %1947 = vmatpush1.msra.mxu0 0.0
    %1948 = vmatprep.subr.mxu0 0.0
    %1949 = vmatpush1.msra.mxu0 0.0
    %1950 = vmatprep.subr.mxu0 0.0
    %1951 = vmatpush1.msra.mxu0 0.0
    %1952 = vmatprep.subr.mxu0 0.0
    %1953 = vmatpush1.msra.mxu0 0.0
    %1954 = vmatprep.subr.mxu0 0.0
    %1955 = vmatpush1.msra.mxu0 0.0
    %1956 = vmatprep.subr.mxu0 0.0
    %1957 = vmatpush1.msra.mxu0 0.0
    %1958 = vmatprep.subr.mxu0 0.0
    %1959 = vmatpush1.msra.mxu0 0.0
    %1960 = vmatprep.subr.mxu0 0.0
    %1961 = vmatpush1.msra.mxu0 0.0
    %1962 = vmatprep.subr.mxu0 0.0
    %1963 = vmatpush1.msra.mxu0 0.0
    %1964 = vmatprep.mubr.f32.mxu0 0.0
    %1965 = vmatmul.mubr.f32.gmra.mrb[0].mxu0 %v1733
    %v1966 = vpop.f32.mrb[0].mxu0
    %v1967 = vadd.f32 0.0, %v1966
    %v1968 = vpop.f32.mrb[0].mxu0
    %v1969 = vadd.f32 0.0, %v1968
    %1970 = vdwg.mxu0
    %1971 = vmatprep.subr.mxu0 %v77
    %1972 = vmatpush1.msra.mxu0 %v76
    %1973 = vmatprep.subr.mxu0 %v81
    %1974 = vmatpush1.msra.mxu0 %v80
    %1975 = vmatprep.subr.mxu0 %v85
    %1976 = vmatpush1.msra.mxu0 %v84
    %1977 = vmatprep.subr.mxu0 %v89
    %1978 = vmatpush1.msra.mxu0 %v88
    %1979 = vmatprep.subr.mxu0 %v93
    %1980 = vmatpush1.msra.mxu0 %v92
    %1981 = vmatprep.subr.mxu0 %v97
    %1982 = vmatpush1.msra.mxu0 %v96
    %1983 = vmatprep.subr.mxu0 %v101
    %1984 = vmatpush1.msra.mxu0 %v100
    %1985 = vmatprep.subr.mxu0 %v105
    %1986 = vmatpush1.msra.mxu0 %v104
    %1987 = vmatprep.subr.mxu0 %v109
    %1988 = vmatpush1.msra.mxu0 %v108
    %1989 = vmatprep.subr.mxu0 %v113
    %1990 = vmatpush1.msra.mxu0 %v112
    %1991 = vmatprep.subr.mxu0 %v117
    %1992 = vmatpush1.msra.mxu0 %v116
    %1993 = vmatprep.subr.mxu0 %v121
    %1994 = vmatpush1.msra.mxu0 %v120
    %1995 = vmatprep.subr.mxu0 %v125
    %1996 = vmatpush1.msra.mxu0 %v124
    %1997 = vmatprep.subr.mxu0 %v129
    %1998 = vmatpush1.msra.mxu0 %v128
    %1999 = vmatprep.subr.mxu0 %v133
    %2000 = vmatpush1.msra.mxu0 %v132
    %2001 = vmatprep.subr.mxu0 %v137
    %2002 = vmatpush1.msra.mxu0 %v136
    %2003 = vmatprep.subr.mxu0 0.0
    %2004 = vmatpush1.msra.mxu0 0.0
    %2005 = vmatprep.subr.mxu0 0.0
    %2006 = vmatpush1.msra.mxu0 0.0
    %2007 = vmatprep.subr.mxu0 0.0
    %2008 = vmatpush1.msra.mxu0 0.0
    %2009 = vmatprep.subr.mxu0 0.0
    %2010 = vmatpush1.msra.mxu0 0.0
    %2011 = vmatprep.subr.mxu0 0.0
    %2012 = vmatpush1.msra.mxu0 0.0
    %2013 = vmatprep.subr.mxu0 0.0
    %2014 = vmatpush1.msra.mxu0 0.0
    %2015 = vmatprep.subr.mxu0 0.0
    %2016 = vmatpush1.msra.mxu0 0.0
    %2017 = vmatprep.subr.mxu0 0.0
    %2018 = vmatpush1.msra.mxu0 0.0
    %2019 = vmatprep.subr.mxu0 0.0
    %2020 = vmatpush1.msra.mxu0 0.0
    %2021 = vmatprep.subr.mxu0 0.0
    %2022 = vmatpush1.msra.mxu0 0.0
    %2023 = vmatprep.subr.mxu0 0.0
    %2024 = vmatpush1.msra.mxu0 0.0
    %2025 = vmatprep.subr.mxu0 0.0
    %2026 = vmatpush1.msra.mxu0 0.0
    %2027 = vmatprep.subr.mxu0 0.0
    %2028 = vmatpush1.msra.mxu0 0.0
    %2029 = vmatprep.subr.mxu0 0.0
    %2030 = vmatpush1.msra.mxu0 0.0
    %2031 = vmatprep.subr.mxu0 0.0
    %2032 = vmatpush1.msra.mxu0 0.0
    %2033 = vmatprep.subr.mxu0 0.0
    %2034 = vmatpush1.msra.mxu0 0.0
    %2035 = vmatprep.mubr.f32.mxu0 0.0
    %2036 = vmatmul.mubr.f32.gmra.mrb[0].mxu0 %v1733
    %v2037 = vpop.f32.mrb[0].mxu0
    %v2038 = vadd.f32 0.0, %v2037
    %v2039 = vpop.f32.mrb[0].mxu0
    %v2040 = vadd.f32 0.0, %v2039
    %2041 = vdwg.mxu0
    %v2042 = vadd.f32 %v1103, %v1967
    %v2043 = vadd.f32 %v1104, %v1969
    %v2044 = vadd.f32 %v1105, %v2038
    %v2045 = vadd.f32 %v1106, %v2040
    %v2046 = vxor.u32 %v2042, 2147483648
    %v2047 = vxor.u32 %v2043, 2147483648
    %v2048 = vmul.f32 %v2046, 1.442695
    %v2049 = vpow.pop %v2048
    %v2050 = vmul.f32 %v2047, 1.442695
    %v2051 = vpow.pop %v2050
    %v2052 = vadd.f32 %v2049, 1.0
    %v2053 = vadd.f32 %v2051, 1.0
    %v2054 = vrcp.pop %v2052
    %v2055 = vmul.f32 1.0, %v2054
    %v2056 = vrcp.pop %v2053
    %v2057 = vmul.f32 1.0, %v2056
    %v2058 = vtanh.pop %v2044
    %v2059 = vxor.u32 %v2045, 2147483648
    %v2060 = vmul.f32 %v2059, 1.442695
    %v2061 = vpow.pop %v2060
    %v2062 = vadd.f32 %v2061, 1.0
    %v2063 = vrcp.pop %v2062
    %v2064 = vmul.f32 1.0, %v2063
    %v2065 = vmul.f32 %v2057, %v1731
    %v2066 = vmul.f32 %v2055, %v2058
    %v2067 = vadd.f32 %v2065, %v2066
    %v2068 = vtanh.pop %v2067
    %v2069 = vmul.f32 %v2064, %v2068
    %2070 = vmatprep.subr.mxu0 %v140
    %2071 = vmatpush1.msra.mxu0 %v139
    %2072 = vmatprep.subr.mxu0 %v144
    %2073 = vmatpush1.msra.mxu0 %v143
    %2074 = vmatprep.subr.mxu0 %v148
    %2075 = vmatpush1.msra.mxu0 %v147
    %2076 = vmatprep.subr.mxu0 %v152
    %2077 = vmatpush1.msra.mxu0 %v151
    %2078 = vmatprep.subr.mxu0 %v156
    %2079 = vmatpush1.msra.mxu0 %v155
    %2080 = vmatprep.subr.mxu0 %v160
    %2081 = vmatpush1.msra.mxu0 %v159
    %2082 = vmatprep.subr.mxu0 %v164
    %2083 = vmatpush1.msra.mxu0 %v163
    %2084 = vmatprep.subr.mxu0 %v168
    %2085 = vmatpush1.msra.mxu0 %v167
    %2086 = vmatprep.subr.mxu0 %v172
    %2087 = vmatpush1.msra.mxu0 %v171
    %2088 = vmatprep.subr.mxu0 %v176
    %2089 = vmatpush1.msra.mxu0 %v175
    %2090 = vmatprep.subr.mxu0 %v180
    %2091 = vmatpush1.msra.mxu0 %v179
    %2092 = vmatprep.subr.mxu0 %v184
    %2093 = vmatpush1.msra.mxu0 %v183
    %2094 = vmatprep.subr.mxu0 %v188
    %2095 = vmatpush1.msra.mxu0 %v187
    %2096 = vmatprep.subr.mxu0 %v192
    %2097 = vmatpush1.msra.mxu0 %v191
    %2098 = vmatprep.subr.mxu0 %v196
    %2099 = vmatpush1.msra.mxu0 %v195
    %2100 = vmatprep.subr.mxu0 %v200
    %2101 = vmatpush1.msra.mxu0 %v199
    %2102 = vmatprep.subr.mxu0 %v204
    %2103 = vmatpush1.msra.mxu0 %v203
    %2104 = vmatprep.subr.mxu0 %v208
    %2105 = vmatpush1.msra.mxu0 %v207
    %2106 = vmatprep.subr.mxu0 %v212
    %2107 = vmatpush1.msra.mxu0 %v211
    %2108 = vmatprep.subr.mxu0 %v216
    %2109 = vmatpush1.msra.mxu0 %v215
    %2110 = vmatprep.subr.mxu0 %v220
    %2111 = vmatpush1.msra.mxu0 %v219
    %2112 = vmatprep.subr.mxu0 %v224
    %2113 = vmatpush1.msra.mxu0 %v223
    %2114 = vmatprep.subr.mxu0 %v228
    %2115 = vmatpush1.msra.mxu0 %v227
    %2116 = vmatprep.subr.mxu0 %v232
    %2117 = vmatpush1.msra.mxu0 %v231
    %2118 = vmatprep.subr.mxu0 %v236
    %2119 = vmatpush1.msra.mxu0 %v235
    %2120 = vmatprep.subr.mxu0 %v240
    %2121 = vmatpush1.msra.mxu0 %v239
    %2122 = vmatprep.subr.mxu0 %v244
    %2123 = vmatpush1.msra.mxu0 %v243
    %2124 = vmatprep.subr.mxu0 %v248
    %2125 = vmatpush1.msra.mxu0 %v247
    %2126 = vmatprep.subr.mxu0 %v252
    %2127 = vmatpush1.msra.mxu0 %v251
    %2128 = vmatprep.subr.mxu0 %v256
    %2129 = vmatpush1.msra.mxu0 %v255
    %2130 = vmatprep.subr.mxu0 %v260
    %2131 = vmatpush1.msra.mxu0 %v259
    %2132 = vmatprep.subr.mxu0 %v264
    %2133 = vmatpush1.msra.mxu0 %v263
    %2134 = vmatprep.mubr.f32.mxu0 %v1899
    %2135 = vmatmul.mubr.f32.gmra.mrb[0].mxu0 %v2069
    %v2136 = vpop.f32.mrb[0].mxu0
    %v2137 = vadd.f32 %v1381, %v2136
    %v2138 = vpop.f32.mrb[0].mxu0
    %v2139 = vadd.f32 %v1385, %v2138
    %2140 = vdwg.mxu0
    %2141 = vmatprep.subr.mxu0 %v142
    %2142 = vmatpush1.msra.mxu0 %v141
    %2143 = vmatprep.subr.mxu0 %v146
    %2144 = vmatpush1.msra.mxu0 %v145
    %2145 = vmatprep.subr.mxu0 %v150
    %2146 = vmatpush1.msra.mxu0 %v149
    %2147 = vmatprep.subr.mxu0 %v154
    %2148 = vmatpush1.msra.mxu0 %v153
    %2149 = vmatprep.subr.mxu0 %v158
    %2150 = vmatpush1.msra.mxu0 %v157
    %2151 = vmatprep.subr.mxu0 %v162
    %2152 = vmatpush1.msra.mxu0 %v161
    %2153 = vmatprep.subr.mxu0 %v166
    %2154 = vmatpush1.msra.mxu0 %v165
    %2155 = vmatprep.subr.mxu0 %v170
    %2156 = vmatpush1.msra.mxu0 %v169
    %2157 = vmatprep.subr.mxu0 %v174
    %2158 = vmatpush1.msra.mxu0 %v173
    %2159 = vmatprep.subr.mxu0 %v178
    %2160 = vmatpush1.msra.mxu0 %v177
    %2161 = vmatprep.subr.mxu0 %v182
    %2162 = vmatpush1.msra.mxu0 %v181
    %2163 = vmatprep.subr.mxu0 %v186
    %2164 = vmatpush1.msra.mxu0 %v185
    %2165 = vmatprep.subr.mxu0 %v190
    %2166 = vmatpush1.msra.mxu0 %v189
    %2167 = vmatprep.subr.mxu0 %v194
    %2168 = vmatpush1.msra.mxu0 %v193
    %2169 = vmatprep.subr.mxu0 %v198
    %2170 = vmatpush1.msra.mxu0 %v197
    %2171 = vmatprep.subr.mxu0 %v202
    %2172 = vmatpush1.msra.mxu0 %v201
    %2173 = vmatprep.subr.mxu0 %v206
    %2174 = vmatpush1.msra.mxu0 %v205
    %2175 = vmatprep.subr.mxu0 %v210
    %2176 = vmatpush1.msra.mxu0 %v209
    %2177 = vmatprep.subr.mxu0 %v214
    %2178 = vmatpush1.msra.mxu0 %v213
    %2179 = vmatprep.subr.mxu0 %v218
    %2180 = vmatpush1.msra.mxu0 %v217
    %2181 = vmatprep.subr.mxu0 %v222
    %2182 = vmatpush1.msra.mxu0 %v221
    %2183 = vmatprep.subr.mxu0 %v226
    %2184 = vmatpush1.msra.mxu0 %v225
    %2185 = vmatprep.subr.mxu0 %v230
    %2186 = vmatpush1.msra.mxu0 %v229
    %2187 = vmatprep.subr.mxu0 %v234
    %2188 = vmatpush1.msra.mxu0 %v233
    %2189 = vmatprep.subr.mxu0 %v238
    %2190 = vmatpush1.msra.mxu0 %v237
    %2191 = vmatprep.subr.mxu0 %v242
    %2192 = vmatpush1.msra.mxu0 %v241
    %2193 = vmatprep.subr.mxu0 %v246
    %2194 = vmatpush1.msra.mxu0 %v245
    %2195 = vmatprep.subr.mxu0 %v250
    %2196 = vmatpush1.msra.mxu0 %v249
    %2197 = vmatprep.subr.mxu0 %v254
    %2198 = vmatpush1.msra.mxu0 %v253
    %2199 = vmatprep.subr.mxu0 %v258
    %2200 = vmatpush1.msra.mxu0 %v257
    %2201 = vmatprep.subr.mxu0 %v262
    %2202 = vmatpush1.msra.mxu0 %v261
    %2203 = vmatprep.subr.mxu0 %v266
    %2204 = vmatpush1.msra.mxu0 %v265
    %2205 = vmatprep.mubr.f32.mxu0 %v1899
    %2206 = vmatmul.mubr.f32.gmra.mrb[0].mxu0 %v2069
    %v2207 = vpop.f32.mrb[0].mxu0
    %v2208 = vadd.f32 %v1389, %v2207
    %v2209 = vpop.f32.mrb[0].mxu0
    %v2210 = vadd.f32 %v1393, %v2209
    %2211 = vdwg.mxu0
    %v2212 = vxor.u32 %v2137, 2147483648
    %v2213 = vxor.u32 %v2139, 2147483648
    %v2214 = vmul.f32 %v2212, 1.442695
    %v2215 = vpow.pop %v2214
    %v2216 = vmul.f32 %v2213, 1.442695
    %v2217 = vpow.pop %v2216
    %v2218 = vadd.f32 %v2215, 1.0
    %v2219 = vadd.f32 %v2217, 1.0
    %v2220 = vrcp.pop %v2218
    %v2221 = vmul.f32 1.0, %v2220
    %v2222 = vrcp.pop %v2219
    %v2223 = vmul.f32 1.0, %v2222
    %v2224 = vtanh.pop %v2208
    %v2225 = vxor.u32 %v2210, 2147483648
    %v2226 = vmul.f32 %v2225, 1.442695
    %v2227 = vpow.pop %v2226
    %v2228 = vadd.f32 %v2227, 1.0
    %v2229 = vrcp.pop %v2228
    %v2230 = vmul.f32 1.0, %v2229
    %v2231 = vmul.f32 %v2223, %v1897
    %v2232 = vmul.f32 %v2221, %v2224
    %v2233 = vadd.f32 %v2231, %v2232
    %v2234 = vtanh.pop %v2233
    %v2235 = vmul.f32 %v2230, %v2234
    %2236 = vmatprep.subr.mxu0 %v75
    %2237 = vmatpush1.msra.mxu0 %v74
    %2238 = vmatprep.subr.mxu0 %v79
    %2239 = vmatpush1.msra.mxu0 %v78
    %2240 = vmatprep.subr.mxu0 %v83
    %2241 = vmatpush1.msra.mxu0 %v82
    %2242 = vmatprep.subr.mxu0 %v87
    %2243 = vmatpush1.msra.mxu0 %v86
    %2244 = vmatprep.subr.mxu0 %v91
    %2245 = vmatpush1.msra.mxu0 %v90
    %2246 = vmatprep.subr.mxu0 %v95
    %2247 = vmatpush1.msra.mxu0 %v94
    %2248 = vmatprep.subr.mxu0 %v99
    %2249 = vmatpush1.msra.mxu0 %v98
    %2250 = vmatprep.subr.mxu0 %v103
    %2251 = vmatpush1.msra.mxu0 %v102
    %2252 = vmatprep.subr.mxu0 %v107
    %2253 = vmatpush1.msra.mxu0 %v106
    %2254 = vmatprep.subr.mxu0 %v111
    %2255 = vmatpush1.msra.mxu0 %v110
    %2256 = vmatprep.subr.mxu0 %v115
    %2257 = vmatpush1.msra.mxu0 %v114
    %2258 = vmatprep.subr.mxu0 %v119
    %2259 = vmatpush1.msra.mxu0 %v118
    %2260 = vmatprep.subr.mxu0 %v123
    %2261 = vmatpush1.msra.mxu0 %v122
    %2262 = vmatprep.subr.mxu0 %v127
    %2263 = vmatpush1.msra.mxu0 %v126
    %2264 = vmatprep.subr.mxu0 %v131
    %2265 = vmatpush1.msra.mxu0 %v130
    %2266 = vmatprep.subr.mxu0 %v135
    %2267 = vmatpush1.msra.mxu0 %v134
    %2268 = vmatprep.subr.mxu0 0.0
    %2269 = vmatpush1.msra.mxu0 0.0
    %2270 = vmatprep.subr.mxu0 0.0
    %2271 = vmatpush1.msra.mxu0 0.0
    %2272 = vmatprep.subr.mxu0 0.0
    %2273 = vmatpush1.msra.mxu0 0.0
    %2274 = vmatprep.subr.mxu0 0.0
    %2275 = vmatpush1.msra.mxu0 0.0
    %2276 = vmatprep.subr.mxu0 0.0
    %2277 = vmatpush1.msra.mxu0 0.0
    %2278 = vmatprep.subr.mxu0 0.0
    %2279 = vmatpush1.msra.mxu0 0.0
    %2280 = vmatprep.subr.mxu0 0.0
    %2281 = vmatpush1.msra.mxu0 0.0
    %2282 = vmatprep.subr.mxu0 0.0
    %2283 = vmatpush1.msra.mxu0 0.0
    %2284 = vmatprep.subr.mxu0 0.0
    %2285 = vmatpush1.msra.mxu0 0.0
    %2286 = vmatprep.subr.mxu0 0.0
    %2287 = vmatpush1.msra.mxu0 0.0
    %2288 = vmatprep.subr.mxu0 0.0
    %2289 = vmatpush1.msra.mxu0 0.0
    %2290 = vmatprep.subr.mxu0 0.0
    %2291 = vmatpush1.msra.mxu0 0.0
    %2292 = vmatprep.subr.mxu0 0.0
    %2293 = vmatpush1.msra.mxu0 0.0
    %2294 = vmatprep.subr.mxu0 0.0
    %2295 = vmatpush1.msra.mxu0 0.0
    %2296 = vmatprep.subr.mxu0 0.0
    %2297 = vmatpush1.msra.mxu0 0.0
    %2298 = vmatprep.subr.mxu0 0.0
    %2299 = vmatpush1.msra.mxu0 0.0
    %2300 = vmatprep.mubr.f32.mxu0 0.0
    %2301 = vmatmul.mubr.f32.gmra.mrb[0].mxu0 %v2069
    %v2302 = vpop.f32.mrb[0].mxu0
    %v2303 = vadd.f32 0.0, %v2302
    %v2304 = vpop.f32.mrb[0].mxu0
    %v2305 = vadd.f32 0.0, %v2304
    %2306 = vdwg.mxu0
    %2307 = vmatprep.subr.mxu0 %v77
    %2308 = vmatpush1.msra.mxu0 %v76
    %2309 = vmatprep.subr.mxu0 %v81
    %2310 = vmatpush1.msra.mxu0 %v80
    %2311 = vmatprep.subr.mxu0 %v85
    %2312 = vmatpush1.msra.mxu0 %v84
    %2313 = vmatprep.subr.mxu0 %v89
    %2314 = vmatpush1.msra.mxu0 %v88
    %2315 = vmatprep.subr.mxu0 %v93
    %2316 = vmatpush1.msra.mxu0 %v92
    %2317 = vmatprep.subr.mxu0 %v97
    %2318 = vmatpush1.msra.mxu0 %v96
    %2319 = vmatprep.subr.mxu0 %v101
    %2320 = vmatpush1.msra.mxu0 %v100
    %2321 = vmatprep.subr.mxu0 %v105
    %2322 = vmatpush1.msra.mxu0 %v104
    %2323 = vmatprep.subr.mxu0 %v109
    %2324 = vmatpush1.msra.mxu0 %v108
    %2325 = vmatprep.subr.mxu0 %v113
    %2326 = vmatpush1.msra.mxu0 %v112
    %2327 = vmatprep.subr.mxu0 %v117
    %2328 = vmatpush1.msra.mxu0 %v116
    %2329 = vmatprep.subr.mxu0 %v121
    %2330 = vmatpush1.msra.mxu0 %v120
    %2331 = vmatprep.subr.mxu0 %v125
    %2332 = vmatpush1.msra.mxu0 %v124
    %2333 = vmatprep.subr.mxu0 %v129
    %2334 = vmatpush1.msra.mxu0 %v128
    %2335 = vmatprep.subr.mxu0 %v133
    %2336 = vmatpush1.msra.mxu0 %v132
    %2337 = vmatprep.subr.mxu0 %v137
    %2338 = vmatpush1.msra.mxu0 %v136
    %2339 = vmatprep.subr.mxu0 0.0
    %2340 = vmatpush1.msra.mxu0 0.0
    %2341 = vmatprep.subr.mxu0 0.0
    %2342 = vmatpush1.msra.mxu0 0.0
    %2343 = vmatprep.subr.mxu0 0.0
    %2344 = vmatpush1.msra.mxu0 0.0
    %2345 = vmatprep.subr.mxu0 0.0
    %2346 = vmatpush1.msra.mxu0 0.0
    %2347 = vmatprep.subr.mxu0 0.0
    %2348 = vmatpush1.msra.mxu0 0.0
    %2349 = vmatprep.subr.mxu0 0.0
    %2350 = vmatpush1.msra.mxu0 0.0
    %2351 = vmatprep.subr.mxu0 0.0
    %2352 = vmatpush1.msra.mxu0 0.0
    %2353 = vmatprep.subr.mxu0 0.0
    %2354 = vmatpush1.msra.mxu0 0.0
    %2355 = vmatprep.subr.mxu0 0.0
    %2356 = vmatpush1.msra.mxu0 0.0
    %2357 = vmatprep.subr.mxu0 0.0
    %2358 = vmatpush1.msra.mxu0 0.0
    %2359 = vmatprep.subr.mxu0 0.0
    %2360 = vmatpush1.msra.mxu0 0.0
    %2361 = vmatprep.subr.mxu0 0.0
    %2362 = vmatpush1.msra.mxu0 0.0
    %2363 = vmatprep.subr.mxu0 0.0
    %2364 = vmatpush1.msra.mxu0 0.0
    %2365 = vmatprep.subr.mxu0 0.0
    %2366 = vmatpush1.msra.mxu0 0.0
    %2367 = vmatprep.subr.mxu0 0.0
    %2368 = vmatpush1.msra.mxu0 0.0
    %2369 = vmatprep.subr.mxu0 0.0
    %2370 = vmatpush1.msra.mxu0 0.0
    %2371 = vmatprep.mubr.f32.mxu0 0.0
    %2372 = vmatmul.mubr.f32.gmra.mrb[0].mxu0 %v2069
    %v2373 = vpop.f32.mrb[0].mxu0
    %v2374 = vadd.f32 0.0, %v2373
    %v2375 = vpop.f32.mrb[0].mxu0
    %v2376 = vadd.f32 0.0, %v2375
    %2377 = vdwg.mxu0
    %v2378 = vadd.f32 %v1123, %v2303
    %v2379 = vadd.f32 %v1124, %v2305
    %v2380 = vadd.f32 %v1125, %v2374
    %v2381 = vadd.f32 %v1126, %v2376
    %v2382 = vxor.u32 %v2378, 2147483648
    %v2383 = vxor.u32 %v2379, 2147483648
    %v2384 = vmul.f32 %v2382, 1.442695
    %v2385 = vpow.pop %v2384
    %v2386 = vmul.f32 %v2383, 1.442695
    %v2387 = vpow.pop %v2386
    %v2388 = vadd.f32 %v2385, 1.0
    %v2389 = vadd.f32 %v2387, 1.0
    %v2390 = vrcp.pop %v2388
    %v2391 = vmul.f32 1.0, %v2390
    %v2392 = vrcp.pop %v2389
    %v2393 = vmul.f32 1.0, %v2392
    %v2394 = vtanh.pop %v2380
    %v2395 = vxor.u32 %v2381, 2147483648
    %v2396 = vmul.f32 %v2395, 1.442695
    %v2397 = vpow.pop %v2396
    %v2398 = vadd.f32 %v2397, 1.0
    %v2399 = vrcp.pop %v2398
    %v2400 = vmul.f32 1.0, %v2399
    %v2401 = vmul.f32 %v2393, %v2067
    %v2402 = vmul.f32 %v2391, %v2394
    %v2403 = vadd.f32 %v2401, %v2402
    %v2404 = vtanh.pop %v2403
    %v2405 = vmul.f32 %v2400, %v2404
    %2406 = vmatprep.subr.mxu0 %v140
    %2407 = vmatpush1.msra.mxu0 %v139
    %2408 = vmatprep.subr.mxu0 %v144
    %2409 = vmatpush1.msra.mxu0 %v143
    %2410 = vmatprep.subr.mxu0 %v148
    %2411 = vmatpush1.msra.mxu0 %v147
    %2412 = vmatprep.subr.mxu0 %v152
    %2413 = vmatpush1.msra.mxu0 %v151
    %2414 = vmatprep.subr.mxu0 %v156
    %2415 = vmatpush1.msra.mxu0 %v155
    %2416 = vmatprep.subr.mxu0 %v160
    %2417 = vmatpush1.msra.mxu0 %v159
    %2418 = vmatprep.subr.mxu0 %v164
    %2419 = vmatpush1.msra.mxu0 %v163
    %2420 = vmatprep.subr.mxu0 %v168
    %2421 = vmatpush1.msra.mxu0 %v167
    %2422 = vmatprep.subr.mxu0 %v172
    %2423 = vmatpush1.msra.mxu0 %v171
    %2424 = vmatprep.subr.mxu0 %v176
    %2425 = vmatpush1.msra.mxu0 %v175
    %2426 = vmatprep.subr.mxu0 %v180
    %2427 = vmatpush1.msra.mxu0 %v179
    %2428 = vmatprep.subr.mxu0 %v184
    %2429 = vmatpush1.msra.mxu0 %v183
    %2430 = vmatprep.subr.mxu0 %v188
    %2431 = vmatpush1.msra.mxu0 %v187
    %2432 = vmatprep.subr.mxu0 %v192
    %2433 = vmatpush1.msra.mxu0 %v191
    %2434 = vmatprep.subr.mxu0 %v196
    %2435 = vmatpush1.msra.mxu0 %v195
    %2436 = vmatprep.subr.mxu0 %v200
    %2437 = vmatpush1.msra.mxu0 %v199
    %2438 = vmatprep.subr.mxu0 %v204
    %2439 = vmatpush1.msra.mxu0 %v203
    %2440 = vmatprep.subr.mxu0 %v208
    %2441 = vmatpush1.msra.mxu0 %v207
    %2442 = vmatprep.subr.mxu0 %v212
    %2443 = vmatpush1.msra.mxu0 %v211
    %2444 = vmatprep.subr.mxu0 %v216
    %2445 = vmatpush1.msra.mxu0 %v215
    %2446 = vmatprep.subr.mxu0 %v220
    %2447 = vmatpush1.msra.mxu0 %v219
    %2448 = vmatprep.subr.mxu0 %v224
    %2449 = vmatpush1.msra.mxu0 %v223
    %2450 = vmatprep.subr.mxu0 %v228
    %2451 = vmatpush1.msra.mxu0 %v227
    %2452 = vmatprep.subr.mxu0 %v232
    %2453 = vmatpush1.msra.mxu0 %v231
    %2454 = vmatprep.subr.mxu0 %v236
    %2455 = vmatpush1.msra.mxu0 %v235
    %2456 = vmatprep.subr.mxu0 %v240
    %2457 = vmatpush1.msra.mxu0 %v239
    %2458 = vmatprep.subr.mxu0 %v244
    %2459 = vmatpush1.msra.mxu0 %v243
    %2460 = vmatprep.subr.mxu0 %v248
    %2461 = vmatpush1.msra.mxu0 %v247
    %2462 = vmatprep.subr.mxu0 %v252
    %2463 = vmatpush1.msra.mxu0 %v251
    %2464 = vmatprep.subr.mxu0 %v256
    %2465 = vmatpush1.msra.mxu0 %v255
    %2466 = vmatprep.subr.mxu0 %v260
    %2467 = vmatpush1.msra.mxu0 %v259
    %2468 = vmatprep.subr.mxu0 %v264
    %2469 = vmatpush1.msra.mxu0 %v263
    %2470 = vmatprep.mubr.f32.mxu0 %v2235
    %2471 = vmatmul.mubr.f32.gmra.mrb[0].mxu0 %v2405
    %v2472 = vpop.f32.mrb[0].mxu0
    %v2473 = vadd.f32 %v1381, %v2472
    %v2474 = vpop.f32.mrb[0].mxu0
    %v2475 = vadd.f32 %v1385, %v2474
    %2476 = vdwg.mxu0
    %2477 = vmatprep.subr.mxu0 %v142
    %2478 = vmatpush1.msra.mxu0 %v141
    %2479 = vmatprep.subr.mxu0 %v146
    %2480 = vmatpush1.msra.mxu0 %v145
    %2481 = vmatprep.subr.mxu0 %v150
    %2482 = vmatpush1.msra.mxu0 %v149
    %2483 = vmatprep.subr.mxu0 %v154
    %2484 = vmatpush1.msra.mxu0 %v153
    %2485 = vmatprep.subr.mxu0 %v158
    %2486 = vmatpush1.msra.mxu0 %v157
    %2487 = vmatprep.subr.mxu0 %v162
    %2488 = vmatpush1.msra.mxu0 %v161
    %2489 = vmatprep.subr.mxu0 %v166
    %2490 = vmatpush1.msra.mxu0 %v165
    %2491 = vmatprep.subr.mxu0 %v170
    %2492 = vmatpush1.msra.mxu0 %v169
    %2493 = vmatprep.subr.mxu0 %v174
    %2494 = vmatpush1.msra.mxu0 %v173
    %2495 = vmatprep.subr.mxu0 %v178
    %2496 = vmatpush1.msra.mxu0 %v177
    %2497 = vmatprep.subr.mxu0 %v182
    %2498 = vmatpush1.msra.mxu0 %v181
    %2499 = vmatprep.subr.mxu0 %v186
    %2500 = vmatpush1.msra.mxu0 %v185
    %2501 = vmatprep.subr.mxu0 %v190
    %2502 = vmatpush1.msra.mxu0 %v189
    %2503 = vmatprep.subr.mxu0 %v194
    %2504 = vmatpush1.msra.mxu0 %v193
    %2505 = vmatprep.subr.mxu0 %v198
    %2506 = vmatpush1.msra.mxu0 %v197
    %2507 = vmatprep.subr.mxu0 %v202
    %2508 = vmatpush1.msra.mxu0 %v201
    %2509 = vmatprep.subr.mxu0 %v206
    %2510 = vmatpush1.msra.mxu0 %v205
    %2511 = vmatprep.subr.mxu0 %v210
    %2512 = vmatpush1.msra.mxu0 %v209
    %2513 = vmatprep.subr.mxu0 %v214
    %2514 = vmatpush1.msra.mxu0 %v213
    %2515 = vmatprep.subr.mxu0 %v218
    %2516 = vmatpush1.msra.mxu0 %v217
    %2517 = vmatprep.subr.mxu0 %v222
    %2518 = vmatpush1.msra.mxu0 %v221
    %2519 = vmatprep.subr.mxu0 %v226
    %2520 = vmatpush1.msra.mxu0 %v225
    %2521 = vmatprep.subr.mxu0 %v230
    %2522 = vmatpush1.msra.mxu0 %v229
    %2523 = vmatprep.subr.mxu0 %v234
    %2524 = vmatpush1.msra.mxu0 %v233
    %2525 = vmatprep.subr.mxu0 %v238
    %2526 = vmatpush1.msra.mxu0 %v237
    %2527 = vmatprep.subr.mxu0 %v242
    %2528 = vmatpush1.msra.mxu0 %v241
    %2529 = vmatprep.subr.mxu0 %v246
    %2530 = vmatpush1.msra.mxu0 %v245
    %2531 = vmatprep.subr.mxu0 %v250
    %2532 = vmatpush1.msra.mxu0 %v249
    %2533 = vmatprep.subr.mxu0 %v254
    %2534 = vmatpush1.msra.mxu0 %v253
    %2535 = vmatprep.subr.mxu0 %v258
    %2536 = vmatpush1.msra.mxu0 %v257
    %2537 = vmatprep.subr.mxu0 %v262
    %2538 = vmatpush1.msra.mxu0 %v261
    %2539 = vmatprep.subr.mxu0 %v266
    %2540 = vmatpush1.msra.mxu0 %v265
    %2541 = vmatprep.mubr.f32.mxu0 %v2235
    %2542 = vmatmul.mubr.f32.gmra.mrb[0].mxu0 %v2405
    %v2543 = vpop.f32.mrb[0].mxu0
    %v2544 = vadd.f32 %v1389, %v2543
    %v2545 = vpop.f32.mrb[0].mxu0
    %v2546 = vadd.f32 %v1393, %v2545
    %2547 = vdwg.mxu0
    %v2548 = vxor.u32 %v2473, 2147483648
    %v2549 = vxor.u32 %v2475, 2147483648
    %v2550 = vmul.f32 %v2548, 1.442695
    %v2551 = vpow.pop %v2550
    %v2552 = vmul.f32 %v2549, 1.442695
    %v2553 = vpow.pop %v2552
    %v2554 = vadd.f32 %v2551, 1.0
    %v2555 = vadd.f32 %v2553, 1.0
    %v2556 = vrcp.pop %v2554
    %v2557 = vmul.f32 1.0, %v2556
    %v2558 = vrcp.pop %v2555
    %v2559 = vmul.f32 1.0, %v2558
    %v2560 = vtanh.pop %v2544
    %v2561 = vxor.u32 %v2546, 2147483648
    %v2562 = vmul.f32 %v2561, 1.442695
    %v2563 = vpow.pop %v2562
    %v2564 = vadd.f32 %v2563, 1.0
    %v2565 = vrcp.pop %v2564
    %v2566 = vmul.f32 1.0, %v2565
    %v2567 = vmul.f32 %v2559, %v2233
    %v2568 = vmul.f32 %v2557, %v2560
    %v2569 = vadd.f32 %v2567, %v2568
    %v2570 = vtanh.pop %v2569
    %v2571 = vmul.f32 %v2566, %v2570
    %2572 = vmatprep.subr.mxu0 %v75
    %2573 = vmatpush1.msra.mxu0 %v74
    %2574 = vmatprep.subr.mxu0 %v79
    %2575 = vmatpush1.msra.mxu0 %v78
    %2576 = vmatprep.subr.mxu0 %v83
    %2577 = vmatpush1.msra.mxu0 %v82
    %2578 = vmatprep.subr.mxu0 %v87
    %2579 = vmatpush1.msra.mxu0 %v86
    %2580 = vmatprep.subr.mxu0 %v91
    %2581 = vmatpush1.msra.mxu0 %v90
    %2582 = vmatprep.subr.mxu0 %v95
    %2583 = vmatpush1.msra.mxu0 %v94
    %2584 = vmatprep.subr.mxu0 %v99
    %2585 = vmatpush1.msra.mxu0 %v98
    %2586 = vmatprep.subr.mxu0 %v103
    %2587 = vmatpush1.msra.mxu0 %v102
    %2588 = vmatprep.subr.mxu0 %v107
    %2589 = vmatpush1.msra.mxu0 %v106
    %2590 = vmatprep.subr.mxu0 %v111
    %2591 = vmatpush1.msra.mxu0 %v110
    %2592 = vmatprep.subr.mxu0 %v115
    %2593 = vmatpush1.msra.mxu0 %v114
    %2594 = vmatprep.subr.mxu0 %v119
    %2595 = vmatpush1.msra.mxu0 %v118
    %2596 = vmatprep.subr.mxu0 %v123
    %2597 = vmatpush1.msra.mxu0 %v122
    %2598 = vmatprep.subr.mxu0 %v127
    %2599 = vmatpush1.msra.mxu0 %v126
    %2600 = vmatprep.subr.mxu0 %v131
    %2601 = vmatpush1.msra.mxu0 %v130
    %2602 = vmatprep.subr.mxu0 %v135
    %2603 = vmatpush1.msra.mxu0 %v134
    %2604 = vmatprep.subr.mxu0 0.0
    %2605 = vmatpush1.msra.mxu0 0.0
    %2606 = vmatprep.subr.mxu0 0.0
    %2607 = vmatpush1.msra.mxu0 0.0
    %2608 = vmatprep.subr.mxu0 0.0
    %2609 = vmatpush1.msra.mxu0 0.0
    %2610 = vmatprep.subr.mxu0 0.0
    %2611 = vmatpush1.msra.mxu0 0.0
    %2612 = vmatprep.subr.mxu0 0.0
    %2613 = vmatpush1.msra.mxu0 0.0
    %2614 = vmatprep.subr.mxu0 0.0
    %2615 = vmatpush1.msra.mxu0 0.0
    %2616 = vmatprep.subr.mxu0 0.0
    %2617 = vmatpush1.msra.mxu0 0.0
    %2618 = vmatprep.subr.mxu0 0.0
    %2619 = vmatpush1.msra.mxu0 0.0
    %2620 = vmatprep.subr.mxu0 0.0
    %2621 = vmatpush1.msra.mxu0 0.0
    %2622 = vmatprep.subr.mxu0 0.0
    %2623 = vmatpush1.msra.mxu0 0.0
    %2624 = vmatprep.subr.mxu0 0.0
    %2625 = vmatpush1.msra.mxu0 0.0
    %2626 = vmatprep.subr.mxu0 0.0
    %2627 = vmatpush1.msra.mxu0 0.0
    %2628 = vmatprep.subr.mxu0 0.0
    %2629 = vmatpush1.msra.mxu0 0.0
    %2630 = vmatprep.subr.mxu0 0.0
    %2631 = vmatpush1.msra.mxu0 0.0
    %2632 = vmatprep.subr.mxu0 0.0
    %2633 = vmatpush1.msra.mxu0 0.0
    %2634 = vmatprep.subr.mxu0 0.0
    %2635 = vmatpush1.msra.mxu0 0.0
    %2636 = vmatprep.mubr.f32.mxu0 0.0
    %2637 = vmatmul.mubr.f32.gmra.mrb[0].mxu0 %v2405
    %v2638 = vpop.f32.mrb[0].mxu0
    %v2639 = vadd.f32 0.0, %v2638
    %v2640 = vpop.f32.mrb[0].mxu0
    %v2641 = vadd.f32 0.0, %v2640
    %2642 = vdwg.mxu0
    %2643 = vmatprep.subr.mxu0 %v77
    %2644 = vmatpush1.msra.mxu0 %v76
    %2645 = vmatprep.subr.mxu0 %v81
    %2646 = vmatpush1.msra.mxu0 %v80
    %2647 = vmatprep.subr.mxu0 %v85
    %2648 = vmatpush1.msra.mxu0 %v84
    %2649 = vmatprep.subr.mxu0 %v89
    %2650 = vmatpush1.msra.mxu0 %v88
    %2651 = vmatprep.subr.mxu0 %v93
    %2652 = vmatpush1.msra.mxu0 %v92
    %2653 = vmatprep.subr.mxu0 %v97
    %2654 = vmatpush1.msra.mxu0 %v96
    %2655 = vmatprep.subr.mxu0 %v101
    %2656 = vmatpush1.msra.mxu0 %v100
    %2657 = vmatprep.subr.mxu0 %v105
    %2658 = vmatpush1.msra.mxu0 %v104
    %2659 = vmatprep.subr.mxu0 %v109
    %2660 = vmatpush1.msra.mxu0 %v108
    %2661 = vmatprep.subr.mxu0 %v113
    %2662 = vmatpush1.msra.mxu0 %v112
    %2663 = vmatprep.subr.mxu0 %v117
    %2664 = vmatpush1.msra.mxu0 %v116
    %2665 = vmatprep.subr.mxu0 %v121
    %2666 = vmatpush1.msra.mxu0 %v120
    %2667 = vmatprep.subr.mxu0 %v125
    %2668 = vmatpush1.msra.mxu0 %v124
    %2669 = vmatprep.subr.mxu0 %v129
    %2670 = vmatpush1.msra.mxu0 %v128
    %2671 = vmatprep.subr.mxu0 %v133
    %2672 = vmatpush1.msra.mxu0 %v132
    %2673 = vmatprep.subr.mxu0 %v137
    %2674 = vmatpush1.msra.mxu0 %v136
    %2675 = vmatprep.subr.mxu0 0.0
    %2676 = vmatpush1.msra.mxu0 0.0
    %2677 = vmatprep.subr.mxu0 0.0
    %2678 = vmatpush1.msra.mxu0 0.0
    %2679 = vmatprep.subr.mxu0 0.0
    %2680 = vmatpush1.msra.mxu0 0.0
    %2681 = vmatprep.subr.mxu0 0.0
    %2682 = vmatpush1.msra.mxu0 0.0
    %2683 = vmatprep.subr.mxu0 0.0
    %2684 = vmatpush1.msra.mxu0 0.0
    %2685 = vmatprep.subr.mxu0 0.0
    %2686 = vmatpush1.msra.mxu0 0.0
    %2687 = vmatprep.subr.mxu0 0.0
    %2688 = vmatpush1.msra.mxu0 0.0
    %2689 = vmatprep.subr.mxu0 0.0
    %2690 = vmatpush1.msra.mxu0 0.0
    %2691 = vmatprep.subr.mxu0 0.0
    %2692 = vmatpush1.msra.mxu0 0.0
    %2693 = vmatprep.subr.mxu0 0.0
    %2694 = vmatpush1.msra.mxu0 0.0
    %2695 = vmatprep.subr.mxu0 0.0
    %2696 = vmatpush1.msra.mxu0 0.0
    %2697 = vmatprep.subr.mxu0 0.0
    %2698 = vmatpush1.msra.mxu0 0.0
    %2699 = vmatprep.subr.mxu0 0.0
    %2700 = vmatpush1.msra.mxu0 0.0
    %2701 = vmatprep.subr.mxu0 0.0
    %2702 = vmatpush1.msra.mxu0 0.0
    %2703 = vmatprep.subr.mxu0 0.0
    %2704 = vmatpush1.msra.mxu0 0.0
    %2705 = vmatprep.subr.mxu0 0.0
    %2706 = vmatpush1.msra.mxu0 0.0
    %2707 = vmatprep.mubr.f32.mxu0 0.0
    %2708 = vmatmul.mubr.f32.gmra.mrb[0].mxu0 %v2405
    %v2709 = vpop.f32.mrb[0].mxu0
    %v2710 = vadd.f32 0.0, %v2709
    %v2711 = vpop.f32.mrb[0].mxu0
    %v2712 = vadd.f32 0.0, %v2711
    %2713 = vdwg.mxu0
    %v2714 = vadd.f32 %v1143, %v2639
    %v2715 = vadd.f32 %v1144, %v2641
    %v2716 = vadd.f32 %v1145, %v2710
    %v2717 = vadd.f32 %v1146, %v2712
    %v2718 = vxor.u32 %v2714, 2147483648
    %v2719 = vxor.u32 %v2715, 2147483648
    %v2720 = vmul.f32 %v2718, 1.442695
    %v2721 = vpow.pop %v2720
    %v2722 = vmul.f32 %v2719, 1.442695
    %v2723 = vpow.pop %v2722
    %v2724 = vadd.f32 %v2721, 1.0
    %v2725 = vadd.f32 %v2723, 1.0
    %v2726 = vrcp.pop %v2724
    %v2727 = vmul.f32 1.0, %v2726
    %v2728 = vrcp.pop %v2725
    %v2729 = vmul.f32 1.0, %v2728
    %v2730 = vtanh.pop %v2716
    %v2731 = vxor.u32 %v2717, 2147483648
    %v2732 = vmul.f32 %v2731, 1.442695
    %v2733 = vpow.pop %v2732
    %v2734 = vadd.f32 %v2733, 1.0
    %v2735 = vrcp.pop %v2734
    %v2736 = vmul.f32 1.0, %v2735
    %v2737 = vmul.f32 %v2729, %v2403
    %v2738 = vmul.f32 %v2727, %v2730
    %v2739 = vadd.f32 %v2737, %v2738
    %v2740 = vtanh.pop %v2739
    %v2741 = vmul.f32 %v2736, %v2740
    %2742 = vmatprep.subr.mxu0 %v140
    %2743 = vmatpush1.msra.mxu0 %v139
    %2744 = vmatprep.subr.mxu0 %v144
    %2745 = vmatpush1.msra.mxu0 %v143
    %2746 = vmatprep.subr.mxu0 %v148
    %2747 = vmatpush1.msra.mxu0 %v147
    %2748 = vmatprep.subr.mxu0 %v152
    %2749 = vmatpush1.msra.mxu0 %v151
    %2750 = vmatprep.subr.mxu0 %v156
    %2751 = vmatpush1.msra.mxu0 %v155
    %2752 = vmatprep.subr.mxu0 %v160
    %2753 = vmatpush1.msra.mxu0 %v159
    %2754 = vmatprep.subr.mxu0 %v164
    %2755 = vmatpush1.msra.mxu0 %v163
    %2756 = vmatprep.subr.mxu0 %v168
    %2757 = vmatpush1.msra.mxu0 %v167
    %2758 = vmatprep.subr.mxu0 %v172
    %2759 = vmatpush1.msra.mxu0 %v171
    %2760 = vmatprep.subr.mxu0 %v176
    %2761 = vmatpush1.msra.mxu0 %v175
    %2762 = vmatprep.subr.mxu0 %v180
    %2763 = vmatpush1.msra.mxu0 %v179
    %2764 = vmatprep.subr.mxu0 %v184
    %2765 = vmatpush1.msra.mxu0 %v183
    %2766 = vmatprep.subr.mxu0 %v188
    %2767 = vmatpush1.msra.mxu0 %v187
    %2768 = vmatprep.subr.mxu0 %v192
    %2769 = vmatpush1.msra.mxu0 %v191
    %2770 = vmatprep.subr.mxu0 %v196
    %2771 = vmatpush1.msra.mxu0 %v195
    %2772 = vmatprep.subr.mxu0 %v200
    %2773 = vmatpush1.msra.mxu0 %v199
    %2774 = vmatprep.subr.mxu0 %v204
    %2775 = vmatpush1.msra.mxu0 %v203
    %2776 = vmatprep.subr.mxu0 %v208
    %2777 = vmatpush1.msra.mxu0 %v207
    %2778 = vmatprep.subr.mxu0 %v212
    %2779 = vmatpush1.msra.mxu0 %v211
    %2780 = vmatprep.subr.mxu0 %v216
    %2781 = vmatpush1.msra.mxu0 %v215
    %2782 = vmatprep.subr.mxu0 %v220
    %2783 = vmatpush1.msra.mxu0 %v219
    %2784 = vmatprep.subr.mxu0 %v224
    %2785 = vmatpush1.msra.mxu0 %v223
    %2786 = vmatprep.subr.mxu0 %v228
    %2787 = vmatpush1.msra.mxu0 %v227
    %2788 = vmatprep.subr.mxu0 %v232
    %2789 = vmatpush1.msra.mxu0 %v231
    %2790 = vmatprep.subr.mxu0 %v236
    %2791 = vmatpush1.msra.mxu0 %v235
    %2792 = vmatprep.subr.mxu0 %v240
    %2793 = vmatpush1.msra.mxu0 %v239
    %2794 = vmatprep.subr.mxu0 %v244
    %2795 = vmatpush1.msra.mxu0 %v243
    %2796 = vmatprep.subr.mxu0 %v248
    %2797 = vmatpush1.msra.mxu0 %v247
    %2798 = vmatprep.subr.mxu0 %v252
    %2799 = vmatpush1.msra.mxu0 %v251
    %2800 = vmatprep.subr.mxu0 %v256
    %2801 = vmatpush1.msra.mxu0 %v255
    %2802 = vmatprep.subr.mxu0 %v260
    %2803 = vmatpush1.msra.mxu0 %v259
    %2804 = vmatprep.subr.mxu0 %v264
    %2805 = vmatpush1.msra.mxu0 %v263
    %2806 = vmatprep.mubr.f32.mxu0 %v2571
    %2807 = vmatmul.mubr.f32.gmra.mrb[0].mxu0 %v2741
    %v2808 = vpop.f32.mrb[0].mxu0
    %v2809 = vadd.f32 %v1381, %v2808
    %v2810 = vpop.f32.mrb[0].mxu0
    %v2811 = vadd.f32 %v1385, %v2810
    %2812 = vdwg.mxu0
    %2813 = vmatprep.subr.mxu0 %v142
    %2814 = vmatpush1.msra.mxu0 %v141
    %2815 = vmatprep.subr.mxu0 %v146
    %2816 = vmatpush1.msra.mxu0 %v145
    %2817 = vmatprep.subr.mxu0 %v150
    %2818 = vmatpush1.msra.mxu0 %v149
    %2819 = vmatprep.subr.mxu0 %v154
    %2820 = vmatpush1.msra.mxu0 %v153
    %2821 = vmatprep.subr.mxu0 %v158
    %2822 = vmatpush1.msra.mxu0 %v157
    %2823 = vmatprep.subr.mxu0 %v162
    %2824 = vmatpush1.msra.mxu0 %v161
    %2825 = vmatprep.subr.mxu0 %v166
    %2826 = vmatpush1.msra.mxu0 %v165
    %2827 = vmatprep.subr.mxu0 %v170
    %2828 = vmatpush1.msra.mxu0 %v169
    %2829 = vmatprep.subr.mxu0 %v174
    %2830 = vmatpush1.msra.mxu0 %v173
    %2831 = vmatprep.subr.mxu0 %v178
    %2832 = vmatpush1.msra.mxu0 %v177
    %2833 = vmatprep.subr.mxu0 %v182
    %2834 = vmatpush1.msra.mxu0 %v181
    %2835 = vmatprep.subr.mxu0 %v186
    %2836 = vmatpush1.msra.mxu0 %v185
    %2837 = vmatprep.subr.mxu0 %v190
    %2838 = vmatpush1.msra.mxu0 %v189
    %2839 = vmatprep.subr.mxu0 %v194
    %2840 = vmatpush1.msra.mxu0 %v193
    %2841 = vmatprep.subr.mxu0 %v198
    %2842 = vmatpush1.msra.mxu0 %v197
    %2843 = vmatprep.subr.mxu0 %v202
    %2844 = vmatpush1.msra.mxu0 %v201
    %2845 = vmatprep.subr.mxu0 %v206
    %2846 = vmatpush1.msra.mxu0 %v205
    %2847 = vmatprep.subr.mxu0 %v210
    %2848 = vmatpush1.msra.mxu0 %v209
    %2849 = vmatprep.subr.mxu0 %v214
    %2850 = vmatpush1.msra.mxu0 %v213
    %2851 = vmatprep.subr.mxu0 %v218
    %2852 = vmatpush1.msra.mxu0 %v217
    %2853 = vmatprep.subr.mxu0 %v222
    %2854 = vmatpush1.msra.mxu0 %v221
    %2855 = vmatprep.subr.mxu0 %v226
    %2856 = vmatpush1.msra.mxu0 %v225
    %2857 = vmatprep.subr.mxu0 %v230
    %2858 = vmatpush1.msra.mxu0 %v229
    %2859 = vmatprep.subr.mxu0 %v234
    %2860 = vmatpush1.msra.mxu0 %v233
    %2861 = vmatprep.subr.mxu0 %v238
    %2862 = vmatpush1.msra.mxu0 %v237
    %2863 = vmatprep.subr.mxu0 %v242
    %2864 = vmatpush1.msra.mxu0 %v241
    %2865 = vmatprep.subr.mxu0 %v246
    %2866 = vmatpush1.msra.mxu0 %v245
    %2867 = vmatprep.subr.mxu0 %v250
    %2868 = vmatpush1.msra.mxu0 %v249
    %2869 = vmatprep.subr.mxu0 %v254
    %2870 = vmatpush1.msra.mxu0 %v253
    %2871 = vmatprep.subr.mxu0 %v258
    %2872 = vmatpush1.msra.mxu0 %v257
    %2873 = vmatprep.subr.mxu0 %v262
    %2874 = vmatpush1.msra.mxu0 %v261
    %2875 = vmatprep.subr.mxu0 %v266
    %2876 = vmatpush1.msra.mxu0 %v265
    %2877 = vmatprep.mubr.f32.mxu0 %v2571
    %2878 = vmatmul.mubr.f32.gmra.mrb[0].mxu0 %v2741
    %v2879 = vpop.f32.mrb[0].mxu0
    %v2880 = vadd.f32 %v1389, %v2879
    %v2881 = vpop.f32.mrb[0].mxu0
    %v2882 = vadd.f32 %v1393, %v2881
    %2883 = vdwg.mxu0
    %v2884 = vxor.u32 %v2809, 2147483648
    %v2885 = vxor.u32 %v2811, 2147483648
    %v2886 = vmul.f32 %v2884, 1.442695
    %v2887 = vpow.pop %v2886
    %v2888 = vmul.f32 %v2885, 1.442695
    %v2889 = vpow.pop %v2888
    %v2890 = vadd.f32 %v2887, 1.0
    %v2891 = vadd.f32 %v2889, 1.0
    %v2892 = vrcp.pop %v2890
    %v2893 = vmul.f32 1.0, %v2892
    %v2894 = vrcp.pop %v2891
    %v2895 = vmul.f32 1.0, %v2894
    %v2896 = vtanh.pop %v2880
    %v2897 = vxor.u32 %v2882, 2147483648
    %v2898 = vmul.f32 %v2897, 1.442695
    %v2899 = vpow.pop %v2898
    %v2900 = vadd.f32 %v2899, 1.0
    %v2901 = vrcp.pop %v2900
    %v2902 = vmul.f32 1.0, %v2901
    %v2903 = vmul.f32 %v2895, %v2569
    %v2904 = vmul.f32 %v2893, %v2896
    %v2905 = vadd.f32 %v2903, %v2904
    %v2906 = vtanh.pop %v2905
    %v2907 = vmul.f32 %v2902, %v2906
    %2908 = vmatprep.subr.mxu0 %v75
    %2909 = vmatpush1.msra.mxu0 %v74
    %2910 = vmatprep.subr.mxu0 %v79
    %2911 = vmatpush1.msra.mxu0 %v78
    %2912 = vmatprep.subr.mxu0 %v83
    %2913 = vmatpush1.msra.mxu0 %v82
    %2914 = vmatprep.subr.mxu0 %v87
    %2915 = vmatpush1.msra.mxu0 %v86
    %2916 = vmatprep.subr.mxu0 %v91
    %2917 = vmatpush1.msra.mxu0 %v90
    %2918 = vmatprep.subr.mxu0 %v95
    %2919 = vmatpush1.msra.mxu0 %v94
    %2920 = vmatprep.subr.mxu0 %v99
    %2921 = vmatpush1.msra.mxu0 %v98
    %2922 = vmatprep.subr.mxu0 %v103
    %2923 = vmatpush1.msra.mxu0 %v102
    %2924 = vmatprep.subr.mxu0 %v107
    %2925 = vmatpush1.msra.mxu0 %v106
    %2926 = vmatprep.subr.mxu0 %v111
    %2927 = vmatpush1.msra.mxu0 %v110
    %2928 = vmatprep.subr.mxu0 %v115
    %2929 = vmatpush1.msra.mxu0 %v114
    %2930 = vmatprep.subr.mxu0 %v119
    %2931 = vmatpush1.msra.mxu0 %v118
    %2932 = vmatprep.subr.mxu0 %v123
    %2933 = vmatpush1.msra.mxu0 %v122
    %2934 = vmatprep.subr.mxu0 %v127
    %2935 = vmatpush1.msra.mxu0 %v126
    %2936 = vmatprep.subr.mxu0 %v131
    %2937 = vmatpush1.msra.mxu0 %v130
    %2938 = vmatprep.subr.mxu0 %v135
    %2939 = vmatpush1.msra.mxu0 %v134
    %2940 = vmatprep.subr.mxu0 0.0
    %2941 = vmatpush1.msra.mxu0 0.0
    %2942 = vmatprep.subr.mxu0 0.0
    %2943 = vmatpush1.msra.mxu0 0.0
    %2944 = vmatprep.subr.mxu0 0.0
    %2945 = vmatpush1.msra.mxu0 0.0
    %2946 = vmatprep.subr.mxu0 0.0
    %2947 = vmatpush1.msra.mxu0 0.0
    %2948 = vmatprep.subr.mxu0 0.0
    %2949 = vmatpush1.msra.mxu0 0.0
    %2950 = vmatprep.subr.mxu0 0.0
    %2951 = vmatpush1.msra.mxu0 0.0
    %2952 = vmatprep.subr.mxu0 0.0
    %2953 = vmatpush1.msra.mxu0 0.0
    %2954 = vmatprep.subr.mxu0 0.0
    %2955 = vmatpush1.msra.mxu0 0.0
    %2956 = vmatprep.subr.mxu0 0.0
    %2957 = vmatpush1.msra.mxu0 0.0
    %2958 = vmatprep.subr.mxu0 0.0
    %2959 = vmatpush1.msra.mxu0 0.0
    %2960 = vmatprep.subr.mxu0 0.0
    %2961 = vmatpush1.msra.mxu0 0.0
    %2962 = vmatprep.subr.mxu0 0.0
    %2963 = vmatpush1.msra.mxu0 0.0
    %2964 = vmatprep.subr.mxu0 0.0
    %2965 = vmatpush1.msra.mxu0 0.0
    %2966 = vmatprep.subr.mxu0 0.0
    %2967 = vmatpush1.msra.mxu0 0.0
    %2968 = vmatprep.subr.mxu0 0.0
    %2969 = vmatpush1.msra.mxu0 0.0
    %2970 = vmatprep.subr.mxu0 0.0
    %2971 = vmatpush1.msra.mxu0 0.0
    %2972 = vmatprep.mubr.f32.mxu0 0.0
    %2973 = vmatmul.mubr.f32.gmra.mrb[0].mxu0 %v2741
    %v2974 = vpop.f32.mrb[0].mxu0
    %v2975 = vadd.f32 0.0, %v2974
    %v2976 = vpop.f32.mrb[0].mxu0
    %v2977 = vadd.f32 0.0, %v2976
    %2978 = vdwg.mxu0
    %2979 = vmatprep.subr.mxu0 %v77
    %2980 = vmatpush1.msra.mxu0 %v76
    %2981 = vmatprep.subr.mxu0 %v81
    %2982 = vmatpush1.msra.mxu0 %v80
    %2983 = vmatprep.subr.mxu0 %v85
    %2984 = vmatpush1.msra.mxu0 %v84
    %2985 = vmatprep.subr.mxu0 %v89
    %2986 = vmatpush1.msra.mxu0 %v88
    %2987 = vmatprep.subr.mxu0 %v93
    %2988 = vmatpush1.msra.mxu0 %v92
    %2989 = vmatprep.subr.mxu0 %v97
    %2990 = vmatpush1.msra.mxu0 %v96
    %2991 = vmatprep.subr.mxu0 %v101
    %2992 = vmatpush1.msra.mxu0 %v100
    %2993 = vmatprep.subr.mxu0 %v105
    %2994 = vmatpush1.msra.mxu0 %v104
    %2995 = vmatprep.subr.mxu0 %v109
    %2996 = vmatpush1.msra.mxu0 %v108
    %2997 = vmatprep.subr.mxu0 %v113
    %2998 = vmatpush1.msra.mxu0 %v112
    %2999 = vmatprep.subr.mxu0 %v117
    %3000 = vmatpush1.msra.mxu0 %v116
    %3001 = vmatprep.subr.mxu0 %v121
    %3002 = vmatpush1.msra.mxu0 %v120
    %3003 = vmatprep.subr.mxu0 %v125
    %3004 = vmatpush1.msra.mxu0 %v124
    %3005 = vmatprep.subr.mxu0 %v129
    %3006 = vmatpush1.msra.mxu0 %v128
    %3007 = vmatprep.subr.mxu0 %v133
    %3008 = vmatpush1.msra.mxu0 %v132
    %3009 = vmatprep.subr.mxu0 %v137
    %3010 = vmatpush1.msra.mxu0 %v136
    %3011 = vmatprep.subr.mxu0 0.0
    %3012 = vmatpush1.msra.mxu0 0.0
    %3013 = vmatprep.subr.mxu0 0.0
    %3014 = vmatpush1.msra.mxu0 0.0
    %3015 = vmatprep.subr.mxu0 0.0
    %3016 = vmatpush1.msra.mxu0 0.0
    %3017 = vmatprep.subr.mxu0 0.0
    %3018 = vmatpush1.msra.mxu0 0.0
    %3019 = vmatprep.subr.mxu0 0.0
    %3020 = vmatpush1.msra.mxu0 0.0
    %3021 = vmatprep.subr.mxu0 0.0
    %3022 = vmatpush1.msra.mxu0 0.0
    %3023 = vmatprep.subr.mxu0 0.0
    %3024 = vmatpush1.msra.mxu0 0.0
    %3025 = vmatprep.subr.mxu0 0.0
    %3026 = vmatpush1.msra.mxu0 0.0
    %3027 = vmatprep.subr.mxu0 0.0
    %3028 = vmatpush1.msra.mxu0 0.0
    %3029 = vmatprep.subr.mxu0 0.0
    %3030 = vmatpush1.msra.mxu0 0.0
    %3031 = vmatprep.subr.mxu0 0.0
    %3032 = vmatpush1.msra.mxu0 0.0
    %3033 = vmatprep.subr.mxu0 0.0
    %3034 = vmatpush1.msra.mxu0 0.0
    %3035 = vmatprep.subr.mxu0 0.0
    %3036 = vmatpush1.msra.mxu0 0.0
    %3037 = vmatprep.subr.mxu0 0.0
    %3038 = vmatpush1.msra.mxu0 0.0
    %3039 = vmatprep.subr.mxu0 0.0
    %3040 = vmatpush1.msra.mxu0 0.0
    %3041 = vmatprep.subr.mxu0 0.0
    %3042 = vmatpush1.msra.mxu0 0.0
    %3043 = vmatprep.mubr.f32.mxu0 0.0
    %3044 = vmatmul.mubr.f32.gmra.mrb[0].mxu0 %v2741
    %v3045 = vpop.f32.mrb[0].mxu0
    %v3046 = vadd.f32 0.0, %v3045
    %v3047 = vpop.f32.mrb[0].mxu0
    %v3048 = vadd.f32 0.0, %v3047
    %3049 = vdwg.mxu0
    %v3050 = vadd.f32 %v1163, %v2975
    %v3051 = vadd.f32 %v1164, %v2977
    %v3052 = vadd.f32 %v1165, %v3046
    %v3053 = vadd.f32 %v1166, %v3048
    %v3054 = vxor.u32 %v3050, 2147483648
    %v3055 = vxor.u32 %v3051, 2147483648
    %v3056 = vmul.f32 %v3054, 1.442695
    %v3057 = vpow.pop %v3056
    %v3058 = vmul.f32 %v3055, 1.442695
    %v3059 = vpow.pop %v3058
    %v3060 = vadd.f32 %v3057, 1.0
    %v3061 = vadd.f32 %v3059, 1.0
    %v3062 = vrcp.pop %v3060
    %v3063 = vmul.f32 1.0, %v3062
    %v3064 = vrcp.pop %v3061
    %v3065 = vmul.f32 1.0, %v3064
    %v3066 = vtanh.pop %v3052
    %v3067 = vxor.u32 %v3053, 2147483648
    %v3068 = vmul.f32 %v3067, 1.442695
    %v3069 = vpow.pop %v3068
    %v3070 = vadd.f32 %v3069, 1.0
    %v3071 = vrcp.pop %v3070
    %v3072 = vmul.f32 1.0, %v3071
    %v3073 = vmul.f32 %v3065, %v2739
    %v3074 = vmul.f32 %v3063, %v3066
    %v3075 = vadd.f32 %v3073, %v3074
    %v3076 = vtanh.pop %v3075
    %v3077 = vmul.f32 %v3072, %v3076
    %3078 = vmatprep.subr.mxu0 %v140
    %3079 = vmatpush1.msra.mxu0 %v139
    %3080 = vmatprep.subr.mxu0 %v144
    %3081 = vmatpush1.msra.mxu0 %v143
    %3082 = vmatprep.subr.mxu0 %v148
    %3083 = vmatpush1.msra.mxu0 %v147
    %3084 = vmatprep.subr.mxu0 %v152
    %3085 = vmatpush1.msra.mxu0 %v151
    %3086 = vmatprep.subr.mxu0 %v156
    %3087 = vmatpush1.msra.mxu0 %v155
    %3088 = vmatprep.subr.mxu0 %v160
    %3089 = vmatpush1.msra.mxu0 %v159
    %3090 = vmatprep.subr.mxu0 %v164
    %3091 = vmatpush1.msra.mxu0 %v163
    %3092 = vmatprep.subr.mxu0 %v168
    %3093 = vmatpush1.msra.mxu0 %v167
    %3094 = vmatprep.subr.mxu0 %v172
    %3095 = vmatpush1.msra.mxu0 %v171
    %3096 = vmatprep.subr.mxu0 %v176
    %3097 = vmatpush1.msra.mxu0 %v175
    %3098 = vmatprep.subr.mxu0 %v180
    %3099 = vmatpush1.msra.mxu0 %v179
    %3100 = vmatprep.subr.mxu0 %v184
    %3101 = vmatpush1.msra.mxu0 %v183
    %3102 = vmatprep.subr.mxu0 %v188
    %3103 = vmatpush1.msra.mxu0 %v187
    %3104 = vmatprep.subr.mxu0 %v192
    %3105 = vmatpush1.msra.mxu0 %v191
    %3106 = vmatprep.subr.mxu0 %v196
    %3107 = vmatpush1.msra.mxu0 %v195
    %3108 = vmatprep.subr.mxu0 %v200
    %3109 = vmatpush1.msra.mxu0 %v199
    %3110 = vmatprep.subr.mxu0 %v204
    %3111 = vmatpush1.msra.mxu0 %v203
    %3112 = vmatprep.subr.mxu0 %v208
    %3113 = vmatpush1.msra.mxu0 %v207
    %3114 = vmatprep.subr.mxu0 %v212
    %3115 = vmatpush1.msra.mxu0 %v211
    %3116 = vmatprep.subr.mxu0 %v216
    %3117 = vmatpush1.msra.mxu0 %v215
    %3118 = vmatprep.subr.mxu0 %v220
    %3119 = vmatpush1.msra.mxu0 %v219
    %3120 = vmatprep.subr.mxu0 %v224
    %3121 = vmatpush1.msra.mxu0 %v223
    %3122 = vmatprep.subr.mxu0 %v228
    %3123 = vmatpush1.msra.mxu0 %v227
    %3124 = vmatprep.subr.mxu0 %v232
    %3125 = vmatpush1.msra.mxu0 %v231
    %3126 = vmatprep.subr.mxu0 %v236
    %3127 = vmatpush1.msra.mxu0 %v235
    %3128 = vmatprep.subr.mxu0 %v240
    %3129 = vmatpush1.msra.mxu0 %v239
    %3130 = vmatprep.subr.mxu0 %v244
    %3131 = vmatpush1.msra.mxu0 %v243
    %3132 = vmatprep.subr.mxu0 %v248
    %3133 = vmatpush1.msra.mxu0 %v247
    %3134 = vmatprep.subr.mxu0 %v252
    %3135 = vmatpush1.msra.mxu0 %v251
    %3136 = vmatprep.subr.mxu0 %v256
    %3137 = vmatpush1.msra.mxu0 %v255
    %3138 = vmatprep.subr.mxu0 %v260
    %3139 = vmatpush1.msra.mxu0 %v259
    %3140 = vmatprep.subr.mxu0 %v264
    %3141 = vmatpush1.msra.mxu0 %v263
    %3142 = vmatprep.mubr.f32.mxu0 %v2907
    %3143 = vmatmul.mubr.f32.gmra.mrb[0].mxu0 %v3077
    %v3144 = vpop.f32.mrb[0].mxu0
    %v3145 = vadd.f32 %v1381, %v3144
    %v3146 = vpop.f32.mrb[0].mxu0
    %v3147 = vadd.f32 %v1385, %v3146
    %3148 = vdwg.mxu0
    %3149 = vmatprep.subr.mxu0 %v142
    %3150 = vmatpush1.msra.mxu0 %v141
    %3151 = vmatprep.subr.mxu0 %v146
    %3152 = vmatpush1.msra.mxu0 %v145
    %3153 = vmatprep.subr.mxu0 %v150
    %3154 = vmatpush1.msra.mxu0 %v149
    %3155 = vmatprep.subr.mxu0 %v154
    %3156 = vmatpush1.msra.mxu0 %v153
    %3157 = vmatprep.subr.mxu0 %v158
    %3158 = vmatpush1.msra.mxu0 %v157
    %3159 = vmatprep.subr.mxu0 %v162
    %3160 = vmatpush1.msra.mxu0 %v161
    %3161 = vmatprep.subr.mxu0 %v166
    %3162 = vmatpush1.msra.mxu0 %v165
    %3163 = vmatprep.subr.mxu0 %v170
    %3164 = vmatpush1.msra.mxu0 %v169
    %3165 = vmatprep.subr.mxu0 %v174
    %3166 = vmatpush1.msra.mxu0 %v173
    %3167 = vmatprep.subr.mxu0 %v178
    %3168 = vmatpush1.msra.mxu0 %v177
    %3169 = vmatprep.subr.mxu0 %v182
    %3170 = vmatpush1.msra.mxu0 %v181
    %3171 = vmatprep.subr.mxu0 %v186
    %3172 = vmatpush1.msra.mxu0 %v185
    %3173 = vmatprep.subr.mxu0 %v190
    %3174 = vmatpush1.msra.mxu0 %v189
    %3175 = vmatprep.subr.mxu0 %v194
    %3176 = vmatpush1.msra.mxu0 %v193
    %3177 = vmatprep.subr.mxu0 %v198
    %3178 = vmatpush1.msra.mxu0 %v197
    %3179 = vmatprep.subr.mxu0 %v202
    %3180 = vmatpush1.msra.mxu0 %v201
    %3181 = vmatprep.subr.mxu0 %v206
    %3182 = vmatpush1.msra.mxu0 %v205
    %3183 = vmatprep.subr.mxu0 %v210
    %3184 = vmatpush1.msra.mxu0 %v209
    %3185 = vmatprep.subr.mxu0 %v214
    %3186 = vmatpush1.msra.mxu0 %v213
    %3187 = vmatprep.subr.mxu0 %v218
    %3188 = vmatpush1.msra.mxu0 %v217
    %3189 = vmatprep.subr.mxu0 %v222
    %3190 = vmatpush1.msra.mxu0 %v221
    %3191 = vmatprep.subr.mxu0 %v226
    %3192 = vmatpush1.msra.mxu0 %v225
    %3193 = vmatprep.subr.mxu0 %v230
    %3194 = vmatpush1.msra.mxu0 %v229
    %3195 = vmatprep.subr.mxu0 %v234
    %3196 = vmatpush1.msra.mxu0 %v233
    %3197 = vmatprep.subr.mxu0 %v238
    %3198 = vmatpush1.msra.mxu0 %v237
    %3199 = vmatprep.subr.mxu0 %v242
    %3200 = vmatpush1.msra.mxu0 %v241
    %3201 = vmatprep.subr.mxu0 %v246
    %3202 = vmatpush1.msra.mxu0 %v245
    %3203 = vmatprep.subr.mxu0 %v250
    %3204 = vmatpush1.msra.mxu0 %v249
    %3205 = vmatprep.subr.mxu0 %v254
    %3206 = vmatpush1.msra.mxu0 %v253
    %3207 = vmatprep.subr.mxu0 %v258
    %3208 = vmatpush1.msra.mxu0 %v257
    %3209 = vmatprep.subr.mxu0 %v262
    %3210 = vmatpush1.msra.mxu0 %v261
    %3211 = vmatprep.subr.mxu0 %v266
    %3212 = vmatpush1.msra.mxu0 %v265
    %3213 = vmatprep.mubr.f32.mxu0 %v2907
    %3214 = vmatmul.mubr.f32.gmra.mrb[0].mxu0 %v3077
    %v3215 = vpop.f32.mrb[0].mxu0
    %v3216 = vadd.f32 %v1389, %v3215
    %v3217 = vpop.f32.mrb[0].mxu0
    %v3218 = vadd.f32 %v1393, %v3217
    %3219 = vdwg.mxu0
    %v3220 = vxor.u32 %v3145, 2147483648
    %v3221 = vxor.u32 %v3147, 2147483648
    %v3222 = vmul.f32 %v3220, 1.442695
    %v3223 = vpow.pop %v3222
    %v3224 = vmul.f32 %v3221, 1.442695
    %v3225 = vpow.pop %v3224
    %v3226 = vadd.f32 %v3223, 1.0
    %v3227 = vadd.f32 %v3225, 1.0
    %v3228 = vrcp.pop %v3226
    %v3229 = vmul.f32 1.0, %v3228
    %v3230 = vrcp.pop %v3227
    %v3231 = vmul.f32 1.0, %v3230
    %v3232 = vtanh.pop %v3216
    %v3233 = vxor.u32 %v3218, 2147483648
    %v3234 = vmul.f32 %v3233, 1.442695
    %v3235 = vpow.pop %v3234
    %v3236 = vadd.f32 %v3235, 1.0
    %v3237 = vrcp.pop %v3236
    %v3238 = vmul.f32 1.0, %v3237
    %v3239 = vmul.f32 %v3231, %v2905
    %v3240 = vmul.f32 %v3229, %v3232
    %v3241 = vadd.f32 %v3239, %v3240
    %v3242 = vtanh.pop %v3241
    %v3243 = vmul.f32 %v3238, %v3242
    %3244 = vmatprep.subr.mxu0 %v75
    %3245 = vmatpush1.msra.mxu0 %v74
    %3246 = vmatprep.subr.mxu0 %v79
    %3247 = vmatpush1.msra.mxu0 %v78
    %3248 = vmatprep.subr.mxu0 %v83
    %3249 = vmatpush1.msra.mxu0 %v82
    %3250 = vmatprep.subr.mxu0 %v87
    %3251 = vmatpush1.msra.mxu0 %v86
    %3252 = vmatprep.subr.mxu0 %v91
    %3253 = vmatpush1.msra.mxu0 %v90
    %3254 = vmatprep.subr.mxu0 %v95
    %3255 = vmatpush1.msra.mxu0 %v94
    %3256 = vmatprep.subr.mxu0 %v99
    %3257 = vmatpush1.msra.mxu0 %v98
    %3258 = vmatprep.subr.mxu0 %v103
    %3259 = vmatpush1.msra.mxu0 %v102
    %3260 = vmatprep.subr.mxu0 %v107
    %3261 = vmatpush1.msra.mxu0 %v106
    %3262 = vmatprep.subr.mxu0 %v111
    %3263 = vmatpush1.msra.mxu0 %v110
    %3264 = vmatprep.subr.mxu0 %v115
    %3265 = vmatpush1.msra.mxu0 %v114
    %3266 = vmatprep.subr.mxu0 %v119
    %3267 = vmatpush1.msra.mxu0 %v118
    %3268 = vmatprep.subr.mxu0 %v123
    %3269 = vmatpush1.msra.mxu0 %v122
    %3270 = vmatprep.subr.mxu0 %v127
    %3271 = vmatpush1.msra.mxu0 %v126
    %3272 = vmatprep.subr.mxu0 %v131
    %3273 = vmatpush1.msra.mxu0 %v130
    %3274 = vmatprep.subr.mxu0 %v135
    %3275 = vmatpush1.msra.mxu0 %v134
    %3276 = vmatprep.subr.mxu0 0.0
    %3277 = vmatpush1.msra.mxu0 0.0
    %3278 = vmatprep.subr.mxu0 0.0
    %3279 = vmatpush1.msra.mxu0 0.0
    %3280 = vmatprep.subr.mxu0 0.0
    %3281 = vmatpush1.msra.mxu0 0.0
    %3282 = vmatprep.subr.mxu0 0.0
    %3283 = vmatpush1.msra.mxu0 0.0
    %3284 = vmatprep.subr.mxu0 0.0
    %3285 = vmatpush1.msra.mxu0 0.0
    %3286 = vmatprep.subr.mxu0 0.0
    %3287 = vmatpush1.msra.mxu0 0.0
    %3288 = vmatprep.subr.mxu0 0.0
    %3289 = vmatpush1.msra.mxu0 0.0
    %3290 = vmatprep.subr.mxu0 0.0
    %3291 = vmatpush1.msra.mxu0 0.0
    %3292 = vmatprep.subr.mxu0 0.0
    %3293 = vmatpush1.msra.mxu0 0.0
    %3294 = vmatprep.subr.mxu0 0.0
    %3295 = vmatpush1.msra.mxu0 0.0
    %3296 = vmatprep.subr.mxu0 0.0
    %3297 = vmatpush1.msra.mxu0 0.0
    %3298 = vmatprep.subr.mxu0 0.0
    %3299 = vmatpush1.msra.mxu0 0.0
    %3300 = vmatprep.subr.mxu0 0.0
    %3301 = vmatpush1.msra.mxu0 0.0
    %3302 = vmatprep.subr.mxu0 0.0
    %3303 = vmatpush1.msra.mxu0 0.0
    %3304 = vmatprep.subr.mxu0 0.0
    %3305 = vmatpush1.msra.mxu0 0.0
    %3306 = vmatprep.subr.mxu0 0.0
    %3307 = vmatpush1.msra.mxu0 0.0
    %3308 = vmatprep.mubr.f32.mxu0 0.0
    %3309 = vmatmul.mubr.f32.gmra.mrb[0].mxu0 %v3077
    %v3310 = vpop.f32.mrb[0].mxu0
    %v3311 = vadd.f32 0.0, %v3310
    %v3312 = vpop.f32.mrb[0].mxu0
    %v3313 = vadd.f32 0.0, %v3312
    %3314 = vdwg.mxu0
    %3315 = vmatprep.subr.mxu0 %v77
    %3316 = vmatpush1.msra.mxu0 %v76
    %3317 = vmatprep.subr.mxu0 %v81
    %3318 = vmatpush1.msra.mxu0 %v80
    %3319 = vmatprep.subr.mxu0 %v85
    %3320 = vmatpush1.msra.mxu0 %v84
    %3321 = vmatprep.subr.mxu0 %v89
    %3322 = vmatpush1.msra.mxu0 %v88
    %3323 = vmatprep.subr.mxu0 %v93
    %3324 = vmatpush1.msra.mxu0 %v92
    %3325 = vmatprep.subr.mxu0 %v97
    %3326 = vmatpush1.msra.mxu0 %v96
    %3327 = vmatprep.subr.mxu0 %v101
    %3328 = vmatpush1.msra.mxu0 %v100
    %3329 = vmatprep.subr.mxu0 %v105
    %3330 = vmatpush1.msra.mxu0 %v104
    %3331 = vmatprep.subr.mxu0 %v109
    %3332 = vmatpush1.msra.mxu0 %v108
    %3333 = vmatprep.subr.mxu0 %v113
    %3334 = vmatpush1.msra.mxu0 %v112
    %3335 = vmatprep.subr.mxu0 %v117
    %3336 = vmatpush1.msra.mxu0 %v116
    %3337 = vmatprep.subr.mxu0 %v121
    %3338 = vmatpush1.msra.mxu0 %v120
    %3339 = vmatprep.subr.mxu0 %v125
    %3340 = vmatpush1.msra.mxu0 %v124
    %3341 = vmatprep.subr.mxu0 %v129
    %3342 = vmatpush1.msra.mxu0 %v128
    %3343 = vmatprep.subr.mxu0 %v133
    %3344 = vmatpush1.msra.mxu0 %v132
    %3345 = vmatprep.subr.mxu0 %v137
    %3346 = vmatpush1.msra.mxu0 %v136
    %3347 = vmatprep.subr.mxu0 0.0
    %3348 = vmatpush1.msra.mxu0 0.0
    %3349 = vmatprep.subr.mxu0 0.0
    %3350 = vmatpush1.msra.mxu0 0.0
    %3351 = vmatprep.subr.mxu0 0.0
    %3352 = vmatpush1.msra.mxu0 0.0
    %3353 = vmatprep.subr.mxu0 0.0
    %3354 = vmatpush1.msra.mxu0 0.0
    %3355 = vmatprep.subr.mxu0 0.0
    %3356 = vmatpush1.msra.mxu0 0.0
    %3357 = vmatprep.subr.mxu0 0.0
    %3358 = vmatpush1.msra.mxu0 0.0
    %3359 = vmatprep.subr.mxu0 0.0
    %3360 = vmatpush1.msra.mxu0 0.0
    %3361 = vmatprep.subr.mxu0 0.0
    %3362 = vmatpush1.msra.mxu0 0.0
    %3363 = vmatprep.subr.mxu0 0.0
    %3364 = vmatpush1.msra.mxu0 0.0
    %3365 = vmatprep.subr.mxu0 0.0
    %3366 = vmatpush1.msra.mxu0 0.0
    %3367 = vmatprep.subr.mxu0 0.0
    %3368 = vmatpush1.msra.mxu0 0.0
    %3369 = vmatprep.subr.mxu0 0.0
    %3370 = vmatpush1.msra.mxu0 0.0
    %3371 = vmatprep.subr.mxu0 0.0
    %3372 = vmatpush1.msra.mxu0 0.0
    %3373 = vmatprep.subr.mxu0 0.0
    %3374 = vmatpush1.msra.mxu0 0.0
    %3375 = vmatprep.subr.mxu0 0.0
    %3376 = vmatpush1.msra.mxu0 0.0
    %3377 = vmatprep.subr.mxu0 0.0
    %3378 = vmatpush1.msra.mxu0 0.0
    %3379 = vmatprep.mubr.f32.mxu0 0.0
    %3380 = vmatmul.mubr.f32.gmra.mrb[0].mxu0 %v3077
    %v3381 = vpop.f32.mrb[0].mxu0
    %v3382 = vadd.f32 0.0, %v3381
    %v3383 = vpop.f32.mrb[0].mxu0
    %v3384 = vadd.f32 0.0, %v3383
    %3385 = vdwg.mxu0
    %v3386 = vadd.f32 %v1183, %v3311
    %v3387 = vadd.f32 %v1184, %v3313
    %v3388 = vadd.f32 %v1185, %v3382
    %v3389 = vadd.f32 %v1186, %v3384
    %v3390 = vxor.u32 %v3386, 2147483648
    %v3391 = vxor.u32 %v3387, 2147483648
    %v3392 = vmul.f32 %v3390, 1.442695
    %v3393 = vpow.pop %v3392
    %v3394 = vmul.f32 %v3391, 1.442695
    %v3395 = vpow.pop %v3394
    %v3396 = vadd.f32 %v3393, 1.0
    %v3397 = vadd.f32 %v3395, 1.0
    %v3398 = vrcp.pop %v3396
    %v3399 = vmul.f32 1.0, %v3398
    %v3400 = vrcp.pop %v3397
    %v3401 = vmul.f32 1.0, %v3400
    %v3402 = vtanh.pop %v3388
    %v3403 = vxor.u32 %v3389, 2147483648
    %v3404 = vmul.f32 %v3403, 1.442695
    %v3405 = vpow.pop %v3404
    %v3406 = vadd.f32 %v3405, 1.0
    %v3407 = vrcp.pop %v3406
    %v3408 = vmul.f32 1.0, %v3407
    %v3409 = vmul.f32 %v3401, %v3075
    %v3410 = vmul.f32 %v3399, %v3402
    %v3411 = vadd.f32 %v3409, %v3410
    %v3412 = vtanh.pop %v3411
    %v3413 = vmul.f32 %v3408, %v3412
    %3414 = vmatprep.subr.mxu0 %v140
    %3415 = vmatpush1.msra.mxu0 %v139
    %3416 = vmatprep.subr.mxu0 %v144
    %3417 = vmatpush1.msra.mxu0 %v143
    %3418 = vmatprep.subr.mxu0 %v148
    %3419 = vmatpush1.msra.mxu0 %v147
    %3420 = vmatprep.subr.mxu0 %v152
    %3421 = vmatpush1.msra.mxu0 %v151
    %3422 = vmatprep.subr.mxu0 %v156
    %3423 = vmatpush1.msra.mxu0 %v155
    %3424 = vmatprep.subr.mxu0 %v160
    %3425 = vmatpush1.msra.mxu0 %v159
    %3426 = vmatprep.subr.mxu0 %v164
    %3427 = vmatpush1.msra.mxu0 %v163
    %3428 = vmatprep.subr.mxu0 %v168
    %3429 = vmatpush1.msra.mxu0 %v167
    %3430 = vmatprep.subr.mxu0 %v172
    %3431 = vmatpush1.msra.mxu0 %v171
    %3432 = vmatprep.subr.mxu0 %v176
    %3433 = vmatpush1.msra.mxu0 %v175
    %3434 = vmatprep.subr.mxu0 %v180
    %3435 = vmatpush1.msra.mxu0 %v179
    %3436 = vmatprep.subr.mxu0 %v184
    %3437 = vmatpush1.msra.mxu0 %v183
    %3438 = vmatprep.subr.mxu0 %v188
    %3439 = vmatpush1.msra.mxu0 %v187
    %3440 = vmatprep.subr.mxu0 %v192
    %3441 = vmatpush1.msra.mxu0 %v191
    %3442 = vmatprep.subr.mxu0 %v196
    %3443 = vmatpush1.msra.mxu0 %v195
    %3444 = vmatprep.subr.mxu0 %v200
    %3445 = vmatpush1.msra.mxu0 %v199
    %3446 = vmatprep.subr.mxu0 %v204
    %3447 = vmatpush1.msra.mxu0 %v203
    %3448 = vmatprep.subr.mxu0 %v208
    %3449 = vmatpush1.msra.mxu0 %v207
    %3450 = vmatprep.subr.mxu0 %v212
    %3451 = vmatpush1.msra.mxu0 %v211
    %3452 = vmatprep.subr.mxu0 %v216
    %3453 = vmatpush1.msra.mxu0 %v215
    %3454 = vmatprep.subr.mxu0 %v220
    %3455 = vmatpush1.msra.mxu0 %v219
    %3456 = vmatprep.subr.mxu0 %v224
    %3457 = vmatpush1.msra.mxu0 %v223
    %3458 = vmatprep.subr.mxu0 %v228
    %3459 = vmatpush1.msra.mxu0 %v227
    %3460 = vmatprep.subr.mxu0 %v232
    %3461 = vmatpush1.msra.mxu0 %v231
    %3462 = vmatprep.subr.mxu0 %v236
    %3463 = vmatpush1.msra.mxu0 %v235
    %3464 = vmatprep.subr.mxu0 %v240
    %3465 = vmatpush1.msra.mxu0 %v239
    %3466 = vmatprep.subr.mxu0 %v244
    %3467 = vmatpush1.msra.mxu0 %v243
    %3468 = vmatprep.subr.mxu0 %v248
    %3469 = vmatpush1.msra.mxu0 %v247
    %3470 = vmatprep.subr.mxu0 %v252
    %3471 = vmatpush1.msra.mxu0 %v251
    %3472 = vmatprep.subr.mxu0 %v256
    %3473 = vmatpush1.msra.mxu0 %v255
    %3474 = vmatprep.subr.mxu0 %v260
    %3475 = vmatpush1.msra.mxu0 %v259
    %3476 = vmatprep.subr.mxu0 %v264
    %3477 = vmatpush1.msra.mxu0 %v263
    %3478 = vmatprep.mubr.f32.mxu0 %v3243
    %3479 = vmatmul.mubr.f32.gmra.mrb[0].mxu0 %v3413
    %v3480 = vpop.f32.mrb[0].mxu0
    %v3481 = vadd.f32 %v1381, %v3480
    %v3482 = vpop.f32.mrb[0].mxu0
    %v3483 = vadd.f32 %v1385, %v3482
    %3484 = vdwg.mxu0
    %3485 = vmatprep.subr.mxu0 %v142
    %3486 = vmatpush1.msra.mxu0 %v141
    %3487 = vmatprep.subr.mxu0 %v146
    %3488 = vmatpush1.msra.mxu0 %v145
    %3489 = vmatprep.subr.mxu0 %v150
    %3490 = vmatpush1.msra.mxu0 %v149
    %3491 = vmatprep.subr.mxu0 %v154
    %3492 = vmatpush1.msra.mxu0 %v153
    %3493 = vmatprep.subr.mxu0 %v158
    %3494 = vmatpush1.msra.mxu0 %v157
    %3495 = vmatprep.subr.mxu0 %v162
    %3496 = vmatpush1.msra.mxu0 %v161
    %3497 = vmatprep.subr.mxu0 %v166
    %3498 = vmatpush1.msra.mxu0 %v165
    %3499 = vmatprep.subr.mxu0 %v170
    %3500 = vmatpush1.msra.mxu0 %v169
    %3501 = vmatprep.subr.mxu0 %v174
    %3502 = vmatpush1.msra.mxu0 %v173
    %3503 = vmatprep.subr.mxu0 %v178
    %3504 = vmatpush1.msra.mxu0 %v177
    %3505 = vmatprep.subr.mxu0 %v182
    %3506 = vmatpush1.msra.mxu0 %v181
    %3507 = vmatprep.subr.mxu0 %v186
    %3508 = vmatpush1.msra.mxu0 %v185
    %3509 = vmatprep.subr.mxu0 %v190
    %3510 = vmatpush1.msra.mxu0 %v189
    %3511 = vmatprep.subr.mxu0 %v194
    %3512 = vmatpush1.msra.mxu0 %v193
    %3513 = vmatprep.subr.mxu0 %v198
    %3514 = vmatpush1.msra.mxu0 %v197
    %3515 = vmatprep.subr.mxu0 %v202
    %3516 = vmatpush1.msra.mxu0 %v201
    %3517 = vmatprep.subr.mxu0 %v206
    %3518 = vmatpush1.msra.mxu0 %v205
    %3519 = vmatprep.subr.mxu0 %v210
    %3520 = vmatpush1.msra.mxu0 %v209
    %3521 = vmatprep.subr.mxu0 %v214
    %3522 = vmatpush1.msra.mxu0 %v213
    %3523 = vmatprep.subr.mxu0 %v218
    %3524 = vmatpush1.msra.mxu0 %v217
    %3525 = vmatprep.subr.mxu0 %v222
    %3526 = vmatpush1.msra.mxu0 %v221
    %3527 = vmatprep.subr.mxu0 %v226
    %3528 = vmatpush1.msra.mxu0 %v225
    %3529 = vmatprep.subr.mxu0 %v230
    %3530 = vmatpush1.msra.mxu0 %v229
    %3531 = vmatprep.subr.mxu0 %v234
    %3532 = vmatpush1.msra.mxu0 %v233
    %3533 = vmatprep.subr.mxu0 %v238
    %3534 = vmatpush1.msra.mxu0 %v237
    %3535 = vmatprep.subr.mxu0 %v242
    %3536 = vmatpush1.msra.mxu0 %v241
    %3537 = vmatprep.subr.mxu0 %v246
    %3538 = vmatpush1.msra.mxu0 %v245
    %3539 = vmatprep.subr.mxu0 %v250
    %3540 = vmatpush1.msra.mxu0 %v249
    %3541 = vmatprep.subr.mxu0 %v254
    %3542 = vmatpush1.msra.mxu0 %v253
    %3543 = vmatprep.subr.mxu0 %v258
    %3544 = vmatpush1.msra.mxu0 %v257
    %3545 = vmatprep.subr.mxu0 %v262
    %3546 = vmatpush1.msra.mxu0 %v261
    %3547 = vmatprep.subr.mxu0 %v266
    %3548 = vmatpush1.msra.mxu0 %v265
    %3549 = vmatprep.mubr.f32.mxu0 %v3243
    %3550 = vmatmul.mubr.f32.gmra.mrb[0].mxu0 %v3413
    %v3551 = vpop.f32.mrb[0].mxu0
    %v3552 = vadd.f32 %v1389, %v3551
    %v3553 = vpop.f32.mrb[0].mxu0
    %v3554 = vadd.f32 %v1393, %v3553
    %3555 = vdwg.mxu0
    %v3556 = vxor.u32 %v3481, 2147483648
    %v3557 = vxor.u32 %v3483, 2147483648
    %v3558 = vmul.f32 %v3556, 1.442695
    %v3559 = vpow.pop %v3558
    %v3560 = vmul.f32 %v3557, 1.442695
    %v3561 = vpow.pop %v3560
    %v3562 = vadd.f32 %v3559, 1.0
    %v3563 = vadd.f32 %v3561, 1.0
    %v3564 = vrcp.pop %v3562
    %v3565 = vmul.f32 1.0, %v3564
    %v3566 = vrcp.pop %v3563
    %v3567 = vmul.f32 1.0, %v3566
    %v3568 = vtanh.pop %v3552
    %v3569 = vxor.u32 %v3554, 2147483648
    %v3570 = vmul.f32 %v3569, 1.442695
    %v3571 = vpow.pop %v3570
    %v3572 = vadd.f32 %v3571, 1.0
    %v3573 = vrcp.pop %v3572
    %v3574 = vmul.f32 1.0, %v3573
    %v3575 = vmul.f32 %v3567, %v3241
    %v3576 = vmul.f32 %v3565, %v3568
    %v3577 = vadd.f32 %v3575, %v3576
    %v3578 = vtanh.pop %v3577
    %v3579 = vmul.f32 %v3574, %v3578
    %3580 = vmatprep.subr.mxu0 %v75
    %3581 = vmatpush1.msra.mxu0 %v74
    %3582 = vmatprep.subr.mxu0 %v79
    %3583 = vmatpush1.msra.mxu0 %v78
    %3584 = vmatprep.subr.mxu0 %v83
    %3585 = vmatpush1.msra.mxu0 %v82
    %3586 = vmatprep.subr.mxu0 %v87
    %3587 = vmatpush1.msra.mxu0 %v86
    %3588 = vmatprep.subr.mxu0 %v91
    %3589 = vmatpush1.msra.mxu0 %v90
    %3590 = vmatprep.subr.mxu0 %v95
    %3591 = vmatpush1.msra.mxu0 %v94
    %3592 = vmatprep.subr.mxu0 %v99
    %3593 = vmatpush1.msra.mxu0 %v98
    %3594 = vmatprep.subr.mxu0 %v103
    %3595 = vmatpush1.msra.mxu0 %v102
    %3596 = vmatprep.subr.mxu0 %v107
    %3597 = vmatpush1.msra.mxu0 %v106
    %3598 = vmatprep.subr.mxu0 %v111
    %3599 = vmatpush1.msra.mxu0 %v110
    %3600 = vmatprep.subr.mxu0 %v115
    %3601 = vmatpush1.msra.mxu0 %v114
    %3602 = vmatprep.subr.mxu0 %v119
    %3603 = vmatpush1.msra.mxu0 %v118
    %3604 = vmatprep.subr.mxu0 %v123
    %3605 = vmatpush1.msra.mxu0 %v122
    %3606 = vmatprep.subr.mxu0 %v127
    %3607 = vmatpush1.msra.mxu0 %v126
    %3608 = vmatprep.subr.mxu0 %v131
    %3609 = vmatpush1.msra.mxu0 %v130
    %3610 = vmatprep.subr.mxu0 %v135
    %3611 = vmatpush1.msra.mxu0 %v134
    %3612 = vmatprep.subr.mxu0 0.0
    %3613 = vmatpush1.msra.mxu0 0.0
    %3614 = vmatprep.subr.mxu0 0.0
    %3615 = vmatpush1.msra.mxu0 0.0
    %3616 = vmatprep.subr.mxu0 0.0
    %3617 = vmatpush1.msra.mxu0 0.0
    %3618 = vmatprep.subr.mxu0 0.0
    %3619 = vmatpush1.msra.mxu0 0.0
    %3620 = vmatprep.subr.mxu0 0.0
    %3621 = vmatpush1.msra.mxu0 0.0
    %3622 = vmatprep.subr.mxu0 0.0
    %3623 = vmatpush1.msra.mxu0 0.0
    %3624 = vmatprep.subr.mxu0 0.0
    %3625 = vmatpush1.msra.mxu0 0.0
    %3626 = vmatprep.subr.mxu0 0.0
    %3627 = vmatpush1.msra.mxu0 0.0
    %3628 = vmatprep.subr.mxu0 0.0
    %3629 = vmatpush1.msra.mxu0 0.0
    %3630 = vmatprep.subr.mxu0 0.0
    %3631 = vmatpush1.msra.mxu0 0.0
    %3632 = vmatprep.subr.mxu0 0.0
    %3633 = vmatpush1.msra.mxu0 0.0
    %3634 = vmatprep.subr.mxu0 0.0
    %3635 = vmatpush1.msra.mxu0 0.0
    %3636 = vmatprep.subr.mxu0 0.0
    %3637 = vmatpush1.msra.mxu0 0.0
    %3638 = vmatprep.subr.mxu0 0.0
    %3639 = vmatpush1.msra.mxu0 0.0
    %3640 = vmatprep.subr.mxu0 0.0
    %3641 = vmatpush1.msra.mxu0 0.0
    %3642 = vmatprep.subr.mxu0 0.0
    %3643 = vmatpush1.msra.mxu0 0.0
    %3644 = vmatprep.mubr.f32.mxu0 0.0
    %3645 = vmatmul.mubr.f32.gmra.mrb[0].mxu0 %v3413
    %v3646 = vpop.f32.mrb[0].mxu0
    %v3647 = vadd.f32 0.0, %v3646
    %v3648 = vpop.f32.mrb[0].mxu0
    %v3649 = vadd.f32 0.0, %v3648
    %3650 = vdwg.mxu0
    %3651 = vmatprep.subr.mxu0 %v77
    %3652 = vmatpush1.msra.mxu0 %v76
    %3653 = vmatprep.subr.mxu0 %v81
    %3654 = vmatpush1.msra.mxu0 %v80
    %3655 = vmatprep.subr.mxu0 %v85
    %3656 = vmatpush1.msra.mxu0 %v84
    %3657 = vmatprep.subr.mxu0 %v89
    %3658 = vmatpush1.msra.mxu0 %v88
    %3659 = vmatprep.subr.mxu0 %v93
    %3660 = vmatpush1.msra.mxu0 %v92
    %3661 = vmatprep.subr.mxu0 %v97
    %3662 = vmatpush1.msra.mxu0 %v96
    %3663 = vmatprep.subr.mxu0 %v101
    %3664 = vmatpush1.msra.mxu0 %v100
    %3665 = vmatprep.subr.mxu0 %v105
    %3666 = vmatpush1.msra.mxu0 %v104
    %3667 = vmatprep.subr.mxu0 %v109
    %3668 = vmatpush1.msra.mxu0 %v108
    %3669 = vmatprep.subr.mxu0 %v113
    %3670 = vmatpush1.msra.mxu0 %v112
    %3671 = vmatprep.subr.mxu0 %v117
    %3672 = vmatpush1.msra.mxu0 %v116
    %3673 = vmatprep.subr.mxu0 %v121
    %3674 = vmatpush1.msra.mxu0 %v120
    %3675 = vmatprep.subr.mxu0 %v125
    %3676 = vmatpush1.msra.mxu0 %v124
    %3677 = vmatprep.subr.mxu0 %v129
    %3678 = vmatpush1.msra.mxu0 %v128
    %3679 = vmatprep.subr.mxu0 %v133
    %3680 = vmatpush1.msra.mxu0 %v132
    %3681 = vmatprep.subr.mxu0 %v137
    %3682 = vmatpush1.msra.mxu0 %v136
    %3683 = vmatprep.subr.mxu0 0.0
    %3684 = vmatpush1.msra.mxu0 0.0
    %3685 = vmatprep.subr.mxu0 0.0
    %3686 = vmatpush1.msra.mxu0 0.0
    %3687 = vmatprep.subr.mxu0 0.0
    %3688 = vmatpush1.msra.mxu0 0.0
    %3689 = vmatprep.subr.mxu0 0.0
    %3690 = vmatpush1.msra.mxu0 0.0
    %3691 = vmatprep.subr.mxu0 0.0
    %3692 = vmatpush1.msra.mxu0 0.0
    %3693 = vmatprep.subr.mxu0 0.0
    %3694 = vmatpush1.msra.mxu0 0.0
    %3695 = vmatprep.subr.mxu0 0.0
    %3696 = vmatpush1.msra.mxu0 0.0
    %3697 = vmatprep.subr.mxu0 0.0
    %3698 = vmatpush1.msra.mxu0 0.0
    %3699 = vmatprep.subr.mxu0 0.0
    %3700 = vmatpush1.msra.mxu0 0.0
    %3701 = vmatprep.subr.mxu0 0.0
    %3702 = vmatpush1.msra.mxu0 0.0
    %3703 = vmatprep.subr.mxu0 0.0
    %3704 = vmatpush1.msra.mxu0 0.0
    %3705 = vmatprep.subr.mxu0 0.0
    %3706 = vmatpush1.msra.mxu0 0.0
    %3707 = vmatprep.subr.mxu0 0.0
    %3708 = vmatpush1.msra.mxu0 0.0
    %3709 = vmatprep.subr.mxu0 0.0
    %3710 = vmatpush1.msra.mxu0 0.0
    %3711 = vmatprep.subr.mxu0 0.0
    %3712 = vmatpush1.msra.mxu0 0.0
    %3713 = vmatprep.subr.mxu0 0.0
    %3714 = vmatpush1.msra.mxu0 0.0
    %3715 = vmatprep.mubr.f32.mxu0 0.0
    %3716 = vmatmul.mubr.f32.gmra.mrb[0].mxu0 %v3413
    %v3717 = vpop.f32.mrb[0].mxu0
    %v3718 = vadd.f32 0.0, %v3717
    %v3719 = vpop.f32.mrb[0].mxu0
    %v3720 = vadd.f32 0.0, %v3719
    %3721 = vdwg.mxu0
    %v3722 = vadd.f32 %v1203, %v3647
    %v3723 = vadd.f32 %v1204, %v3649
    %v3724 = vadd.f32 %v1205, %v3718
    %v3725 = vadd.f32 %v1206, %v3720
    %v3726 = vxor.u32 %v3722, 2147483648
    %v3727 = vxor.u32 %v3723, 2147483648
    %v3728 = vmul.f32 %v3726, 1.442695
    %v3729 = vpow.pop %v3728
    %v3730 = vmul.f32 %v3727, 1.442695
    %v3731 = vpow.pop %v3730
    %v3732 = vadd.f32 %v3729, 1.0
    %v3733 = vadd.f32 %v3731, 1.0
    %v3734 = vrcp.pop %v3732
    %v3735 = vmul.f32 1.0, %v3734
    %v3736 = vrcp.pop %v3733
    %v3737 = vmul.f32 1.0, %v3736
    %v3738 = vtanh.pop %v3724
    %v3739 = vxor.u32 %v3725, 2147483648
    %v3740 = vmul.f32 %v3739, 1.442695
    %v3741 = vpow.pop %v3740
    %v3742 = vadd.f32 %v3741, 1.0
    %v3743 = vrcp.pop %v3742
    %v3744 = vmul.f32 1.0, %v3743
    %v3745 = vmul.f32 %v3737, %v3411
    %v3746 = vmul.f32 %v3735, %v3738
    %v3747 = vadd.f32 %v3745, %v3746
    %v3748 = vtanh.pop %v3747
    %v3749 = vmul.f32 %v3744, %v3748
    %3750 = vmatprep.subr.mxu0 %v140
    %3751 = vmatpush1.msra.mxu0 %v139
    %3752 = vmatprep.subr.mxu0 %v144
    %3753 = vmatpush1.msra.mxu0 %v143
    %3754 = vmatprep.subr.mxu0 %v148
    %3755 = vmatpush1.msra.mxu0 %v147
    %3756 = vmatprep.subr.mxu0 %v152
    %3757 = vmatpush1.msra.mxu0 %v151
    %3758 = vmatprep.subr.mxu0 %v156
    %3759 = vmatpush1.msra.mxu0 %v155
    %3760 = vmatprep.subr.mxu0 %v160
    %3761 = vmatpush1.msra.mxu0 %v159
    %3762 = vmatprep.subr.mxu0 %v164
    %3763 = vmatpush1.msra.mxu0 %v163
    %3764 = vmatprep.subr.mxu0 %v168
    %3765 = vmatpush1.msra.mxu0 %v167
    %3766 = vmatprep.subr.mxu0 %v172
    %3767 = vmatpush1.msra.mxu0 %v171
    %3768 = vmatprep.subr.mxu0 %v176
    %3769 = vmatpush1.msra.mxu0 %v175
    %3770 = vmatprep.subr.mxu0 %v180
    %3771 = vmatpush1.msra.mxu0 %v179
    %3772 = vmatprep.subr.mxu0 %v184
    %3773 = vmatpush1.msra.mxu0 %v183
    %3774 = vmatprep.subr.mxu0 %v188
    %3775 = vmatpush1.msra.mxu0 %v187
    %3776 = vmatprep.subr.mxu0 %v192
    %3777 = vmatpush1.msra.mxu0 %v191
    %3778 = vmatprep.subr.mxu0 %v196
    %3779 = vmatpush1.msra.mxu0 %v195
    %3780 = vmatprep.subr.mxu0 %v200
    %3781 = vmatpush1.msra.mxu0 %v199
    %3782 = vmatprep.subr.mxu0 %v204
    %3783 = vmatpush1.msra.mxu0 %v203
    %3784 = vmatprep.subr.mxu0 %v208
    %3785 = vmatpush1.msra.mxu0 %v207
    %3786 = vmatprep.subr.mxu0 %v212
    %3787 = vmatpush1.msra.mxu0 %v211
    %3788 = vmatprep.subr.mxu0 %v216
    %3789 = vmatpush1.msra.mxu0 %v215
    %3790 = vmatprep.subr.mxu0 %v220
    %3791 = vmatpush1.msra.mxu0 %v219
    %3792 = vmatprep.subr.mxu0 %v224
    %3793 = vmatpush1.msra.mxu0 %v223
    %3794 = vmatprep.subr.mxu0 %v228
    %3795 = vmatpush1.msra.mxu0 %v227
    %3796 = vmatprep.subr.mxu0 %v232
    %3797 = vmatpush1.msra.mxu0 %v231
    %3798 = vmatprep.subr.mxu0 %v236
    %3799 = vmatpush1.msra.mxu0 %v235
    %3800 = vmatprep.subr.mxu0 %v240
    %3801 = vmatpush1.msra.mxu0 %v239
    %3802 = vmatprep.subr.mxu0 %v244
    %3803 = vmatpush1.msra.mxu0 %v243
    %3804 = vmatprep.subr.mxu0 %v248
    %3805 = vmatpush1.msra.mxu0 %v247
    %3806 = vmatprep.subr.mxu0 %v252
    %3807 = vmatpush1.msra.mxu0 %v251
    %3808 = vmatprep.subr.mxu0 %v256
    %3809 = vmatpush1.msra.mxu0 %v255
    %3810 = vmatprep.subr.mxu0 %v260
    %3811 = vmatpush1.msra.mxu0 %v259
    %3812 = vmatprep.subr.mxu0 %v264
    %3813 = vmatpush1.msra.mxu0 %v263
    %3814 = vmatprep.mubr.f32.mxu0 %v3579
    %3815 = vmatmul.mubr.f32.gmra.mrb[0].mxu0 %v3749
    %v3816 = vpop.f32.mrb[0].mxu0
    %v3817 = vadd.f32 %v1381, %v3816
    %v3818 = vpop.f32.mrb[0].mxu0
    %v3819 = vadd.f32 %v1385, %v3818
    %3820 = vdwg.mxu0
    %3821 = vmatprep.subr.mxu0 %v142
    %3822 = vmatpush1.msra.mxu0 %v141
    %3823 = vmatprep.subr.mxu0 %v146
    %3824 = vmatpush1.msra.mxu0 %v145
    %3825 = vmatprep.subr.mxu0 %v150
    %3826 = vmatpush1.msra.mxu0 %v149
    %3827 = vmatprep.subr.mxu0 %v154
    %3828 = vmatpush1.msra.mxu0 %v153
    %3829 = vmatprep.subr.mxu0 %v158
    %3830 = vmatpush1.msra.mxu0 %v157
    %3831 = vmatprep.subr.mxu0 %v162
    %3832 = vmatpush1.msra.mxu0 %v161
    %3833 = vmatprep.subr.mxu0 %v166
    %3834 = vmatpush1.msra.mxu0 %v165
    %3835 = vmatprep.subr.mxu0 %v170
    %3836 = vmatpush1.msra.mxu0 %v169
    %3837 = vmatprep.subr.mxu0 %v174
    %3838 = vmatpush1.msra.mxu0 %v173
    %3839 = vmatprep.subr.mxu0 %v178
    %3840 = vmatpush1.msra.mxu0 %v177
    %3841 = vmatprep.subr.mxu0 %v182
    %3842 = vmatpush1.msra.mxu0 %v181
    %3843 = vmatprep.subr.mxu0 %v186
    %3844 = vmatpush1.msra.mxu0 %v185
    %3845 = vmatprep.subr.mxu0 %v190
    %3846 = vmatpush1.msra.mxu0 %v189
    %3847 = vmatprep.subr.mxu0 %v194
    %3848 = vmatpush1.msra.mxu0 %v193
    %3849 = vmatprep.subr.mxu0 %v198
    %3850 = vmatpush1.msra.mxu0 %v197
    %3851 = vmatprep.subr.mxu0 %v202
    %3852 = vmatpush1.msra.mxu0 %v201
    %3853 = vmatprep.subr.mxu0 %v206
    %3854 = vmatpush1.msra.mxu0 %v205
    %3855 = vmatprep.subr.mxu0 %v210
    %3856 = vmatpush1.msra.mxu0 %v209
    %3857 = vmatprep.subr.mxu0 %v214
    %3858 = vmatpush1.msra.mxu0 %v213
    %3859 = vmatprep.subr.mxu0 %v218
    %3860 = vmatpush1.msra.mxu0 %v217
    %3861 = vmatprep.subr.mxu0 %v222
    %3862 = vmatpush1.msra.mxu0 %v221
    %3863 = vmatprep.subr.mxu0 %v226
    %3864 = vmatpush1.msra.mxu0 %v225
    %3865 = vmatprep.subr.mxu0 %v230
    %3866 = vmatpush1.msra.mxu0 %v229
    %3867 = vmatprep.subr.mxu0 %v234
    %3868 = vmatpush1.msra.mxu0 %v233
    %3869 = vmatprep.subr.mxu0 %v238
    %3870 = vmatpush1.msra.mxu0 %v237
    %3871 = vmatprep.subr.mxu0 %v242
    %3872 = vmatpush1.msra.mxu0 %v241
    %3873 = vmatprep.subr.mxu0 %v246
    %3874 = vmatpush1.msra.mxu0 %v245
    %3875 = vmatprep.subr.mxu0 %v250
    %3876 = vmatpush1.msra.mxu0 %v249
    %3877 = vmatprep.subr.mxu0 %v254
    %3878 = vmatpush1.msra.mxu0 %v253
    %3879 = vmatprep.subr.mxu0 %v258
    %3880 = vmatpush1.msra.mxu0 %v257
    %3881 = vmatprep.subr.mxu0 %v262
    %3882 = vmatpush1.msra.mxu0 %v261
    %3883 = vmatprep.subr.mxu0 %v266
    %3884 = vmatpush1.msra.mxu0 %v265
    %3885 = vmatprep.mubr.f32.mxu0 %v3579
    %3886 = vmatmul.mubr.f32.gmra.mrb[0].mxu0 %v3749
    %v3887 = vpop.f32.mrb[0].mxu0
    %v3888 = vadd.f32 %v1389, %v3887
    %v3889 = vpop.f32.mrb[0].mxu0
    %v3890 = vadd.f32 %v1393, %v3889
    %3891 = vdwg.mxu0
    %v3892 = vxor.u32 %v3817, 2147483648
    %v3893 = vxor.u32 %v3819, 2147483648
    %v3894 = vmul.f32 %v3892, 1.442695
    %v3895 = vpow.pop %v3894
    %v3896 = vmul.f32 %v3893, 1.442695
    %v3897 = vpow.pop %v3896
    %v3898 = vadd.f32 %v3895, 1.0
    %v3899 = vadd.f32 %v3897, 1.0
    %v3900 = vrcp.pop %v3898
    %v3901 = vmul.f32 1.0, %v3900
    %v3902 = vrcp.pop %v3899
    %v3903 = vmul.f32 1.0, %v3902
    %v3904 = vtanh.pop %v3888
    %v3905 = vxor.u32 %v3890, 2147483648
    %v3906 = vmul.f32 %v3905, 1.442695
    %v3907 = vpow.pop %v3906
    %v3908 = vadd.f32 %v3907, 1.0
    %v3909 = vrcp.pop %v3908
    %v3910 = vmul.f32 1.0, %v3909
    %v3911 = vmul.f32 %v3903, %v3577
    %v3912 = vmul.f32 %v3901, %v3904
    %v3913 = vadd.f32 %v3911, %v3912
    %v3914 = vtanh.pop %v3913
    %v3915 = vmul.f32 %v3910, %v3914
    %v3916 = vld [vmem:[%s8] sm:$0xff]
    %v3917 = vld [vmem:[%s8 + $0x8] sm:$0xff]
    %v3918 = vld [vmem:[%s8 + $0x10] sm:$0xff]
    %v3919 = vld [vmem:[%s8 + $0x18] sm:$0xff]
    %v3920 = vld [vmem:[%s8 + $0x20] sm:$0xff]
    %v3921 = vld [vmem:[%s8 + $0x28] sm:$0xff]
    %v3922 = vld [vmem:[%s8 + $0x30] sm:$0xff]
    %v3923 = vld [vmem:[%s8 + $0x38] sm:$0xff]
    %v3924 = vld [vmem:[%s8 + $0x40] sm:$0xff]
    %v3925 = vld [vmem:[%s8 + $0x48] sm:$0xff]
    %v3926 = vld [vmem:[%s8 + $0x50] sm:$0xff]
    %v3927 = vld [vmem:[%s8 + $0x58] sm:$0xff]
    %v3928 = vld [vmem:[%s8 + $0x60] sm:$0xff]
    %v3929 = vld [vmem:[%s8 + $0x68] sm:$0xff]
    %v3930 = vld [vmem:[%s8 + $0x70] sm:$0xff]
    %v3931 = vld [vmem:[%s8 + $0x78] sm:$0xff]
    %v3932 = vld [vmem:[%s9] sm:$0x1]
    %v3934 = vlaneseq
    %v3935 = vshrl.u32 %v3934, 7
    %v3936 = vsub.s32 0, %v3935
    %v3937 = vrot.slane %v3932, %v3936
    %3939 = vmatprep.subr.mxu0 0.0
    %3940 = vmatpush1.msra.mxu0 %v3916
    %3941 = vmatprep.subr.mxu0 0.0
    %3942 = vmatpush1.msra.mxu0 %v3917
    %3943 = vmatprep.subr.mxu0 0.0
    %3944 = vmatpush1.msra.mxu0 %v3918
    %3945 = vmatprep.subr.mxu0 0.0
    %3946 = vmatpush1.msra.mxu0 %v3919
    %3947 = vmatprep.subr.mxu0 0.0
    %3948 = vmatpush1.msra.mxu0 %v3920
    %3949 = vmatprep.subr.mxu0 0.0
    %3950 = vmatpush1.msra.mxu0 %v3921
    %3951 = vmatprep.subr.mxu0 0.0
    %3952 = vmatpush1.msra.mxu0 %v3922
    %3953 = vmatprep.subr.mxu0 0.0
    %3954 = vmatpush1.msra.mxu0 %v3923
    %3955 = vmatprep.subr.mxu0 0.0
    %3956 = vmatpush1.msra.mxu0 %v3924
    %3957 = vmatprep.subr.mxu0 0.0
    %3958 = vmatpush1.msra.mxu0 %v3925
    %3959 = vmatprep.subr.mxu0 0.0
    %3960 = vmatpush1.msra.mxu0 %v3926
    %3961 = vmatprep.subr.mxu0 0.0
    %3962 = vmatpush1.msra.mxu0 %v3927
    %3963 = vmatprep.subr.mxu0 0.0
    %3964 = vmatpush1.msra.mxu0 %v3928
    %3965 = vmatprep.subr.mxu0 0.0
    %3966 = vmatpush1.msra.mxu0 %v3929
    %3967 = vmatprep.subr.mxu0 0.0
    %3968 = vmatpush1.msra.mxu0 %v3930
    %3969 = vmatprep.subr.mxu0 0.0
    %3970 = vmatpush1.msra.mxu0 %v3931
    %3971 = vmatprep.subr.mxu0 0.0
    %3972 = vmatpush1.msra.mxu0 0.0
    %3973 = vmatprep.subr.mxu0 0.0
    %3974 = vmatpush1.msra.mxu0 0.0
    %3975 = vmatprep.subr.mxu0 0.0
    %3976 = vmatpush1.msra.mxu0 0.0
    %3977 = vmatprep.subr.mxu0 0.0
    %3978 = vmatpush1.msra.mxu0 0.0
    %3979 = vmatprep.subr.mxu0 0.0
    %3980 = vmatpush1.msra.mxu0 0.0
    %3981 = vmatprep.subr.mxu0 0.0
    %3982 = vmatpush1.msra.mxu0 0.0
    %3983 = vmatprep.subr.mxu0 0.0
    %3984 = vmatpush1.msra.mxu0 0.0
    %3985 = vmatprep.subr.mxu0 0.0
    %3986 = vmatpush1.msra.mxu0 0.0
    %3987 = vmatprep.subr.mxu0 0.0
    %3988 = vmatpush1.msra.mxu0 0.0
    %3989 = vmatprep.subr.mxu0 0.0
    %3990 = vmatpush1.msra.mxu0 0.0
    %3991 = vmatprep.subr.mxu0 0.0
    %3992 = vmatpush1.msra.mxu0 0.0
    %3993 = vmatprep.subr.mxu0 0.0
    %3994 = vmatpush1.msra.mxu0 0.0
    %3995 = vmatprep.subr.mxu0 0.0
    %3996 = vmatpush1.msra.mxu0 0.0
    %3997 = vmatprep.subr.mxu0 0.0
    %3998 = vmatpush1.msra.mxu0 0.0
    %3999 = vmatprep.subr.mxu0 0.0
    %4000 = vmatpush1.msra.mxu0 0.0
    %4001 = vmatprep.subr.mxu0 0.0
    %4002 = vmatpush1.msra.mxu0 0.0
    %4003 = vmatprep.mubr.f32.mxu0 0.0
    %4004 = vmatmul.mubr.f32.gmra.mrb[0].mxu0 %v3915
    %v4005 = vpop.f32.mrb[0].mxu0
    %v4006 = vadd.f32 %v3937, %v4005
    %v4007 = vpop.f32.mrb[0].mxu0
    %4008 = vdwg.mxu0
    %vm4009 = vcmask 25600
    %4010 = vst.msk [vmem:[#allocation7] sm:$0x3] %vm4009, %v4006
    // Predicated region
    $region50: #{tpu_custom_call.1} parent=1 // pred_check
      _
    $region51: #{tpu_custom_call.1} parent=1 // pred_check_branch
      %4012 = sbr.rel (0) target = $region53
    $region52: #{tpu_custom_call.1} parent=1 // pred_region
      %s4014 = ssub.s32 32, 32
      %4015 = vsyncadd [#allocation4], %s4014
      %s4017 = sshll.u32 [#allocation7], 4
      %s4018 = int_to_ptr.vmem [resolvable:$true] %s4017
      %4020 = dma.vmem_to_hbm [thread:$0]  %s4018, 32, %s10, [#allocation4]
    $region53: #{tpu_custom_call.1} parent=1 // pred_fallthru
      _
    // Predicated region
    $region54: #{tpu_custom_call.1} parent=1 // pred_check
      _
    $region55: #{tpu_custom_call.1} parent=1 // pred_check_branch
      %4022 = sbr.rel (0) target = $region57
    $region56: #{tpu_custom_call.1} parent=1 // pred_region
      %4023 = dma.done [#allocation4], 32
    $region57: #{tpu_custom_call.1} parent=1 // pred_fallthru
      _
    %4024 = vsyncpa [#allocation3], 1
    %4025 = vsyncpa [#allocation6], 1
    %4026 = vsyncpa [#allocation4], 1

</llo_original>
